<compile_context>
chip_gen: v6e
topology: v6e:2x2x1
jax: 0.10.0
libtpu: 0.0.40
codegen_flags: <defaults>
</compile_context>

<pallas_src>
import functools

import jax
import jax.numpy as jnp
import numpy as np
from jax.experimental import pallas as pl
from jax.experimental.pallas import tpu as pltpu  # noqa: F401  (TPU backend)


# --------------------------- fused Pallas kernel ----------------------------

def _fused_agent_kernel(cols1_ref, w1c_ref, b1c_ref, w2c_ref, b2c_ref,
                        w3c_ref, b3c_ref, w1h_ref, b1h_ref, wc_ref, bc_ref,
                        o_ref, *, batch, n_pos, n_taps, tap_rows, c1, c2):
    # ---- conv1 on duplicated im2col rows, ordered (tap, pos, batch), each tap
    # block zero-padded to tap_rows rows so every slice below is 8-aligned.
    h1 = jnp.dot(cols1_ref[...], w1c_ref[...],
                 preferred_element_type=jnp.float32)
    h1 = jnp.maximum(h1 + b1c_ref[...], 0.0).astype(jnp.bfloat16)

    # ---- conv2 as n_taps accumulating tap-dots (no im2col relayout in-kernel).
    w2 = w2c_ref[...]
    h2 = jnp.dot(h1[0:tap_rows, :], w2[0:c1, :],
                 preferred_element_type=jnp.float32)
    for t in range(1, n_taps):
        h2 = h2 + jnp.dot(h1[t * tap_rows:(t + 1) * tap_rows, :],
                          w2[t * c1:(t + 1) * c1, :],
                          preferred_element_type=jnp.float32)
    h2 = jnp.maximum(h2 + b2c_ref[...], 0.0).astype(jnp.bfloat16)
    # rows 0 .. n_pos*batch-1 of h2 are valid, ordered (pos, batch)

    # ---- conv3: 3x3 kernel on the 3x3 map (1x1 output) == full contraction,
    # expressed as n_pos accumulating dots against 64-row-aligned w3 blocks.
    w3 = w3c_ref[...]
    feat = jnp.dot(h2[0:batch, :], w3[0:c2, :],
                   preferred_element_type=jnp.float32)
    for p in range(1, n_pos):
        feat = feat + jnp.dot(h2[p * batch:(p + 1) * batch, :],
                              w3[p * c2:(p + 1) * c2, :],
                              preferred_element_type=jnp.float32)
    feat = jnp.maximum(feat + b3c_ref[...], 0.0).astype(jnp.bfloat16)

    # ---- packed [value1 | advantage1] first FC layer (one wide dot)
    h = jnp.dot(feat, w1h_ref[...], preferred_element_type=jnp.float32)
    h = jnp.maximum(h + b1h_ref[...], 0.0).astype(jnp.bfloat16)

    # ---- dueling combine + both second-layer heads folded into ONE matmul
    # (W_comb / b_comb precomputed in prepare_params, 128-lane padded so the
    # store is unmasked).  f32 epilogue.
    q = jnp.dot(h, wc_ref[...], preferred_element_type=jnp.float32)
    o_ref[...] = q + bc_ref[...]


def _fused_forward(cols1_dup, prep, *, batch, n_pos, n_taps, tap_rows,
                   c1, c2, out_pad):
    operands = (cols1_dup, prep['w1c'], prep['b1c'], prep['w2c'], prep['b2c'],
                prep['w3c'], prep['b3c'], prep['w1h'], prep['b1h'],
                prep['wcomb'], prep['bcomb'])
    in_specs = [pl.BlockSpec(op.shape, lambda: (0, 0)) for op in operands]

    flops = 2 * (cols1_dup.shape[0] * cols1_dup.shape[1] * c1
                 + n_taps * tap_rows * c1 * c2
                 + n_pos * batch * c2 * prep['w3c'].shape[1]
                 + batch * prep['w1h'].shape[0] * prep['w1h'].shape[1]
                 + batch * prep['wcomb'].shape[0] * prep['wcomb'].shape[1])
    bytes_accessed = (sum(int(op.size) * op.dtype.itemsize for op in operands)
                      + batch * out_pad * 4)

    kernel = functools.partial(
        _fused_agent_kernel, batch=batch, n_pos=n_pos, n_taps=n_taps,
        tap_rows=tap_rows, c1=c1, c2=c2)
    return pl.pallas_call(
        kernel,
        out_shape=jax.ShapeDtypeStruct((batch, out_pad), jnp.float32),
        in_specs=in_specs,
        out_specs=pl.BlockSpec((batch, out_pad), lambda: (0, 0)),
        cost_estimate=pl.CostEstimate(flops=flops, transcendentals=0,
                                      bytes_accessed=bytes_accessed),
    )(*operands)


# ----------------------------- Agent definition -----------------------------

def _conv_out(h, k, s):
    return (h - k) // s + 1


def init_agent_params(key, input_shape, num_atoms, num_actions=4):
    C, H, W = input_shape
    keys = jax.random.split(key, 14)

    def u(k, shape, scale=0.05):
        return jax.random.uniform(k, shape, jnp.float32, -scale, scale)

    oh = _conv_out(_conv_out(_conv_out(H, 8, 4), 4, 2), 3, 1)
    ow = _conv_out(_conv_out(_conv_out(W, 8, 4), 4, 2), 3, 1)
    feat = 64 * oh * ow

    # TODO(synk): NoisyLinear factorized noise (reset_noise) is collapsed into
    # deterministic effective weights (w_mu + w_sigma*eps) at init time.
    return dict(
        conv1_w=u(keys[0], (32, C, 8, 8)),   conv1_b=u(keys[1], (32,)),
        conv2_w=u(keys[2], (64, 32, 4, 4)),  conv2_b=u(keys[3], (64,)),
        conv3_w=u(keys[4], (64, 64, 3, 3)),  conv3_b=u(keys[5], (64,)),
        v1_w=u(keys[6], (feat, 512)),        v1_b=u(keys[7], (512,)),
        v2_w=u(keys[8], (512, num_atoms)),   v2_b=u(keys[9], (num_atoms,)),
        a1_w=u(keys[10], (feat, 512)),       a1_b=u(keys[11], (512,)),
        a2_w=u(keys[12], (512, num_atoms * num_actions)),
        a2_b=u(keys[13], (num_atoms * num_actions,)),
    )


def prepare_params(params, num_actions, num_atoms):
    """One-time repack: conv weights -> im2col matrices, heads/dueling folded, bf16."""
    def conv_w(w):  # (Cout, Cin, kh, kw) -> (kh*kw*Cin, Cout) bf16
        Cout, Cin, kh, kw = w.shape
        return (jnp.transpose(w, (2, 3, 1, 0))
                .reshape(kh * kw * Cin, Cout).astype(jnp.bfloat16))

    p = params
    A, N = num_actions, num_atoms
    out_n = A * N
    out_pad = max(128, ((out_n + 127) // 128) * 128)   # lane-dense output
    hidden = p['v2_w'].shape[0]

    # Fold dueling combine + both second-layer heads into one matmul:
    #   q[:, a*N+n] = value[:, n] + adv[:, a*N+n] - mean_a(adv)[:, n]
    #              = [hv | ha] @ W_comb[:, a*N+n] + b_comb[a*N+n]
    a2w_r = p['a2_w'].reshape(hidden, A, N)
    a2w_c = (a2w_r - a2w_r.mean(axis=1, keepdims=True)).reshape(hidden, out_n)
    a2b_r = p['a2_b'].reshape(A, N)
    a2b_c = (a2b_r - a2b_r.mean(axis=0, keepdims=True)).reshape(out_n)
    w_comb = jnp.concatenate([jnp.tile(p['v2_w'], (1, A)), a2w_c], axis=0)
    b_comb = jnp.tile(p['v2_b'], A) + a2b_c
    w_comb = jnp.pad(w_comb, ((0, 0), (0, out_pad - out_n))).astype(jnp.bfloat16)
    b_comb = jnp.pad(b_comb, (0, out_pad - out_n)).reshape(1, out_pad)

    return dict(
        w1c=conv_w(p['conv1_w']),
        b1c=p['conv1_b'].reshape(1, -1).astype(jnp.float32),
        w2c=conv_w(p['conv2_w']),
        b2c=p['conv2_b'].reshape(1, -1).astype(jnp.float32),
        w3c=conv_w(p['conv3_w']),
        b3c=p['conv3_b'].reshape(1, -1).astype(jnp.float32),
        # packed [value1 | advantage1]: single lane-dense (feat, 1024) MXU dot
        w1h=jnp.concatenate([p['v1_w'], p['a1_w']], axis=1).astype(jnp.bfloat16),
        b1h=jnp.concatenate([p['v1_b'], p['a1_b']]).reshape(1, -1).astype(jnp.float32),
        wcomb=w_comb,
        bcomb=b_comb.astype(jnp.float32),
    )


def agent_forward(prep, x_nchw, *, num_atoms, num_actions=4):
    B = x_nchw.shape[0]
    C, H, W = x_nchw.shape[1:]
    x = jnp.transpose(x_nchw, (0, 2, 3, 1))          # NCHW -> NHWC

    k1, s1, k2, s2, k3 = 8, 4, 4, 2, 3
    oh1, ow1 = _conv_out(H, k1, s1), _conv_out(W, k1, s1)
    oh2, ow2 = _conv_out(oh1, k2, s2), _conv_out(ow1, k2, s2)
    oh3, ow3 = _conv_out(oh2, k3, 1), _conv_out(ow2, k3, 1)
    assert oh3 == 1 and ow3 == 1, "fused kernel assumes conv3 output is 1x1"
    # TODO(synk): for larger inputs (conv3 output > 1x1) the features must be
    # flattened in NCHW order before the FC head; not needed at this shape.

    n_taps = k2 * k2
    n_pos = oh2 * ow2
    tap_rows = -(-(n_pos * B) // 8) * 8              # 8-aligned rows per tap

    # conv1 im2col, duplicated & reordered as (conv2 tap, conv2 pos, batch) so
    # every conv2 tap block inside the kernel is a contiguous aligned slice.
    # Only the tiny raw input is touched by XLA glue — no activation HBM trips.
    patches = [x[:, i:i + s1 * oh1:s1, j:j + s1 * ow1:s1, :]
               for i in range(k1) for j in range(k1)]
    p1 = jnp.stack(patches, axis=3).reshape(B, oh1 * ow1, k1 * k1 * C)
    idx = np.asarray([(s2 * oh + ki) * ow1 + (s2 * ow + kj)
                      for ki in range(k2) for kj in range(k2)
                      for oh in range(oh2) for ow in range(ow2)], np.int32)
    sel = jnp.transpose(p1[:, idx, :], (1, 0, 2))    # ((tap,pos), B, F1)
    sel = sel.reshape(n_taps, n_pos * B, k1 * k1 * C)
    sel = jnp.pad(sel, ((0, 0), (0, tap_rows - n_pos * B), (0, 0)))
    cols1_dup = sel.reshape(n_taps * tap_rows, k1 * k1 * C).astype(jnp.bfloat16)

    out_pad = prep['wcomb'].shape[1]
    q_pad = _fused_forward(cols1_dup, prep, batch=B, n_pos=n_pos,
                           n_taps=n_taps, tap_rows=tap_rows,
                           c1=prep['w1c'].shape[1], c2=prep['w2c'].shape[1],
                           out_pad=out_pad)
    return q_pad[:, :num_actions * num_atoms].reshape(B, num_actions, num_atoms)


# --------------------------- pure-JAX f32 reference -------------------------

def agent_forward_ref(params, x_nchw, *, num_atoms, num_actions=4):
    def conv(x, w, b, s):
        y = jax.lax.conv_general_dilated(
            x, w, window_strides=(s, s), padding='VALID',
            dimension_numbers=('NCHW', 'OIHW', 'NCHW'))
        return jax.nn.relu(y + b[None, :, None, None])

    B = x_nchw.shape[0]
    h = conv(x_nchw, params['conv1_w'], params['conv1_b'], 4)
    h = conv(h, params['conv2_w'], params['conv2_b'], 2)
    h = conv(h, params['conv3_w'], params['conv3_b'], 1)
    f = h.reshape(B, -1)
    v = jax.nn.relu(f @ params['v1_w'] + params['v1_b'])
    v = (v @ params['v2_w'] + params['v2_b']).reshape(B, 1, num_atoms)
    a = jax.nn.relu(f @ params['a1_w'] + params['a1_b'])
    a = (a @ params['a2_w'] + params['a2_b']).reshape(B, num_actions, num_atoms)
    return v + a - a.mean(axis=1, keepdims=True)


# ----------------------------------- main -----------------------------------

if __name__ == "__main__":
    key = jax.random.PRNGKey(0)
    input_shape = (4, 36, 36)      # (C, H, W): 36 -> 8 -> 3 -> 1, feat = 64
    num_atoms, num_actions, batch = 16, 4, 2

    pkey, xkey = jax.random.split(key)
    params = init_agent_params(pkey, input_shape, num_atoms, num_actions)
    prep = prepare_params(params, num_actions, num_atoms)     # one-time repack
    x = jax.random.normal(xkey, (batch,) + input_shape, jnp.float32)

    fwd = jax.jit(functools.partial(
        agent_forward, num_atoms=num_atoms, num_actions=num_actions))
    out = jax.block_until_ready(fwd(prep, x))
    assert out.shape == (batch, num_actions, num_atoms), out.shape
    assert out.dtype == jnp.float32
    assert bool(jnp.all(jnp.isfinite(out)))

    # validate against a pure-JAX f32 reference (bf16 MXU inputs -> loose tol)
    ref = agent_forward_ref(params, x, num_atoms=num_atoms,
                            num_actions=num_actions)
    max_err = float(jnp.max(jnp.abs(out - ref)))
    tol = 5e-3 + 5e-2 * float(jnp.max(jnp.abs(ref)))
    assert max_err < tol, (max_err, tol)

    print("KERNEL_OK")
</pallas_src>

<mosaic_0001>
module attributes {stable_mosaic.version = 11 : i64} {
  func.func @_fused_agent_kernel(%arg0: memref<384x256xbf16, #tpu.memory_space<vmem>>, %arg1: memref<256x32xbf16, #tpu.memory_space<vmem>>, %arg2: memref<1x32xf32, #tpu.memory_space<vmem>>, %arg3: memref<512x64xbf16, #tpu.memory_space<vmem>>, %arg4: memref<1x64xf32, #tpu.memory_space<vmem>>, %arg5: memref<576x64xbf16, #tpu.memory_space<vmem>>, %arg6: memref<1x64xf32, #tpu.memory_space<vmem>>, %arg7: memref<64x1024xbf16, #tpu.memory_space<vmem>>, %arg8: memref<1x1024xf32, #tpu.memory_space<vmem>>, %arg9: memref<1024x128xbf16, #tpu.memory_space<vmem>>, %arg10: memref<1x128xf32, #tpu.memory_space<vmem>>, %arg11: memref<2x128xf32, #tpu.memory_space<vmem>>) attributes {dimension_semantics = [], scalar_prefetch = 0 : i64, scratch_operands = 0 : i64, tpu.core_type = #tpu.core_type<tc>} {
    %c0 = arith.constant 0 : index
    %c0_0 = arith.constant 0 : index
    %0 = vector.load %arg0[%c0, %c0_0] : memref<384x256xbf16, #tpu.memory_space<vmem>>, vector<384x256xbf16>
    %c0_1 = arith.constant 0 : index
    %c0_2 = arith.constant 0 : index
    %1 = vector.load %arg1[%c0_1, %c0_2] : memref<256x32xbf16, #tpu.memory_space<vmem>>, vector<256x32xbf16>
    %cst = arith.constant dense<0.000000e+00> : vector<384x32xf32>
    %2 = tpu.matmul %0, %1, %cst {dimension_numbers = #tpu.dot_dimension_numbers<[1], [0], [0], [1], [0, 0, 1, 1], [], []>} : vector<384x256xbf16>, vector<256x32xbf16>, vector<384x32xf32> -> vector<384x32xf32>
    %c0_3 = arith.constant 0 : index
    %c0_4 = arith.constant 0 : index
    %3 = vector.load %arg2[%c0_3, %c0_4] : memref<1x32xf32, #tpu.memory_space<vmem>>, vector<1x32xf32>
    %4 = vector.broadcast %3 : vector<1x32xf32> to vector<384x32xf32>
    %5 = arith.addf %2, %4 : vector<384x32xf32>
    %cst_5 = arith.constant 0.000000e+00 : f32
    %6 = vector.broadcast %cst_5 : f32 to vector<384x32xf32>
    %7 = arith.maximumf %5, %6 : vector<384x32xf32>
    %8 = arith.truncf %7 : vector<384x32xf32> to vector<384x32xbf16>
    %c0_6 = arith.constant 0 : index
    %c0_7 = arith.constant 0 : index
    %9 = vector.load %arg3[%c0_6, %c0_7] : memref<512x64xbf16, #tpu.memory_space<vmem>>, vector<512x64xbf16>
    %10 = vector.extract_strided_slice %8 {offsets = [0, 0], sizes = [24, 32], strides = [1, 1]} : vector<384x32xbf16> to vector<24x32xbf16>
    %11 = vector.extract_strided_slice %9 {offsets = [0, 0], sizes = [32, 64], strides = [1, 1]} : vector<512x64xbf16> to vector<32x64xbf16>
    %cst_8 = arith.constant dense<0.000000e+00> : vector<24x64xf32>
    %12 = tpu.matmul %10, %11, %cst_8 {dimension_numbers = #tpu.dot_dimension_numbers<[1], [0], [0], [1], [0, 0, 1, 1], [], []>} : vector<24x32xbf16>, vector<32x64xbf16>, vector<24x64xf32> -> vector<24x64xf32>
    %13 = vector.extract_strided_slice %8 {offsets = [24, 0], sizes = [24, 32], strides = [1, 1]} : vector<384x32xbf16> to vector<24x32xbf16>
    %14 = vector.extract_strided_slice %9 {offsets = [32, 0], sizes = [32, 64], strides = [1, 1]} : vector<512x64xbf16> to vector<32x64xbf16>
    %cst_9 = arith.constant dense<0.000000e+00> : vector<24x64xf32>
    %15 = tpu.matmul %13, %14, %cst_9 {dimension_numbers = #tpu.dot_dimension_numbers<[1], [0], [0], [1], [0, 0, 1, 1], [], []>} : vector<24x32xbf16>, vector<32x64xbf16>, vector<24x64xf32> -> vector<24x64xf32>
    %16 = arith.addf %12, %15 : vector<24x64xf32>
    %17 = vector.extract_strided_slice %8 {offsets = [48, 0], sizes = [24, 32], strides = [1, 1]} : vector<384x32xbf16> to vector<24x32xbf16>
    %18 = vector.extract_strided_slice %9 {offsets = [64, 0], sizes = [32, 64], strides = [1, 1]} : vector<512x64xbf16> to vector<32x64xbf16>
    %cst_10 = arith.constant dense<0.000000e+00> : vector<24x64xf32>
    %19 = tpu.matmul %17, %18, %cst_10 {dimension_numbers = #tpu.dot_dimension_numbers<[1], [0], [0], [1], [0, 0, 1, 1], [], []>} : vector<24x32xbf16>, vector<32x64xbf16>, vector<24x64xf32> -> vector<24x64xf32>
    %20 = arith.addf %16, %19 : vector<24x64xf32>
    %21 = vector.extract_strided_slice %8 {offsets = [72, 0], sizes = [24, 32], strides = [1, 1]} : vector<384x32xbf16> to vector<24x32xbf16>
    %22 = vector.extract_strided_slice %9 {offsets = [96, 0], sizes = [32, 64], strides = [1, 1]} : vector<512x64xbf16> to vector<32x64xbf16>
    %cst_11 = arith.constant dense<0.000000e+00> : vector<24x64xf32>
    %23 = tpu.matmul %21, %22, %cst_11 {dimension_numbers = #tpu.dot_dimension_numbers<[1], [0], [0], [1], [0, 0, 1, 1], [], []>} : vector<24x32xbf16>, vector<32x64xbf16>, vector<24x64xf32> -> vector<24x64xf32>
    %24 = arith.addf %20, %23 : vector<24x64xf32>
    %25 = vector.extract_strided_slice %8 {offsets = [96, 0], sizes = [24, 32], strides = [1, 1]} : vector<384x32xbf16> to vector<24x32xbf16>
    %26 = vector.extract_strided_slice %9 {offsets = [128, 0], sizes = [32, 64], strides = [1, 1]} : vector<512x64xbf16> to vector<32x64xbf16>
    %cst_12 = arith.constant dense<0.000000e+00> : vector<24x64xf32>
    %27 = tpu.matmul %25, %26, %cst_12 {dimension_numbers = #tpu.dot_dimension_numbers<[1], [0], [0], [1], [0, 0, 1, 1], [], []>} : vector<24x32xbf16>, vector<32x64xbf16>, vector<24x64xf32> -> vector<24x64xf32>
    %28 = arith.addf %24, %27 : vector<24x64xf32>
    %29 = vector.extract_strided_slice %8 {offsets = [120, 0], sizes = [24, 32], strides = [1, 1]} : vector<384x32xbf16> to vector<24x32xbf16>
    %30 = vector.extract_strided_slice %9 {offsets = [160, 0], sizes = [32, 64], strides = [1, 1]} : vector<512x64xbf16> to vector<32x64xbf16>
    %cst_13 = arith.constant dense<0.000000e+00> : vector<24x64xf32>
    %31 = tpu.matmul %29, %30, %cst_13 {dimension_numbers = #tpu.dot_dimension_numbers<[1], [0], [0], [1], [0, 0, 1, 1], [], []>} : vector<24x32xbf16>, vector<32x64xbf16>, vector<24x64xf32> -> vector<24x64xf32>
    %32 = arith.addf %28, %31 : vector<24x64xf32>
    %33 = vector.extract_strided_slice %8 {offsets = [144, 0], sizes = [24, 32], strides = [1, 1]} : vector<384x32xbf16> to vector<24x32xbf16>
    %34 = vector.extract_strided_slice %9 {offsets = [192, 0], sizes = [32, 64], strides = [1, 1]} : vector<512x64xbf16> to vector<32x64xbf16>
    %cst_14 = arith.constant dense<0.000000e+00> : vector<24x64xf32>
    %35 = tpu.matmul %33, %34, %cst_14 {dimension_numbers = #tpu.dot_dimension_numbers<[1], [0], [0], [1], [0, 0, 1, 1], [], []>} : vector<24x32xbf16>, vector<32x64xbf16>, vector<24x64xf32> -> vector<24x64xf32>
    %36 = arith.addf %32, %35 : vector<24x64xf32>
    %37 = vector.extract_strided_slice %8 {offsets = [168, 0], sizes = [24, 32], strides = [1, 1]} : vector<384x32xbf16> to vector<24x32xbf16>
    %38 = vector.extract_strided_slice %9 {offsets = [224, 0], sizes = [32, 64], strides = [1, 1]} : vector<512x64xbf16> to vector<32x64xbf16>
    %cst_15 = arith.constant dense<0.000000e+00> : vector<24x64xf32>
    %39 = tpu.matmul %37, %38, %cst_15 {dimension_numbers = #tpu.dot_dimension_numbers<[1], [0], [0], [1], [0, 0, 1, 1], [], []>} : vector<24x32xbf16>, vector<32x64xbf16>, vector<24x64xf32> -> vector<24x64xf32>
    %40 = arith.addf %36, %39 : vector<24x64xf32>
    %41 = vector.extract_strided_slice %8 {offsets = [192, 0], sizes = [24, 32], strides = [1, 1]} : vector<384x32xbf16> to vector<24x32xbf16>
    %42 = vector.extract_strided_slice %9 {offsets = [256, 0], sizes = [32, 64], strides = [1, 1]} : vector<512x64xbf16> to vector<32x64xbf16>
    %cst_16 = arith.constant dense<0.000000e+00> : vector<24x64xf32>
    %43 = tpu.matmul %41, %42, %cst_16 {dimension_numbers = #tpu.dot_dimension_numbers<[1], [0], [0], [1], [0, 0, 1, 1], [], []>} : vector<24x32xbf16>, vector<32x64xbf16>, vector<24x64xf32> -> vector<24x64xf32>
    %44 = arith.addf %40, %43 : vector<24x64xf32>
    %45 = vector.extract_strided_slice %8 {offsets = [216, 0], sizes = [24, 32], strides = [1, 1]} : vector<384x32xbf16> to vector<24x32xbf16>
    %46 = vector.extract_strided_slice %9 {offsets = [288, 0], sizes = [32, 64], strides = [1, 1]} : vector<512x64xbf16> to vector<32x64xbf16>
    %cst_17 = arith.constant dense<0.000000e+00> : vector<24x64xf32>
    %47 = tpu.matmul %45, %46, %cst_17 {dimension_numbers = #tpu.dot_dimension_numbers<[1], [0], [0], [1], [0, 0, 1, 1], [], []>} : vector<24x32xbf16>, vector<32x64xbf16>, vector<24x64xf32> -> vector<24x64xf32>
    %48 = arith.addf %44, %47 : vector<24x64xf32>
    %49 = vector.extract_strided_slice %8 {offsets = [240, 0], sizes = [24, 32], strides = [1, 1]} : vector<384x32xbf16> to vector<24x32xbf16>
    %50 = vector.extract_strided_slice %9 {offsets = [320, 0], sizes = [32, 64], strides = [1, 1]} : vector<512x64xbf16> to vector<32x64xbf16>
    %cst_18 = arith.constant dense<0.000000e+00> : vector<24x64xf32>
    %51 = tpu.matmul %49, %50, %cst_18 {dimension_numbers = #tpu.dot_dimension_numbers<[1], [0], [0], [1], [0, 0, 1, 1], [], []>} : vector<24x32xbf16>, vector<32x64xbf16>, vector<24x64xf32> -> vector<24x64xf32>
    %52 = arith.addf %48, %51 : vector<24x64xf32>
    %53 = vector.extract_strided_slice %8 {offsets = [264, 0], sizes = [24, 32], strides = [1, 1]} : vector<384x32xbf16> to vector<24x32xbf16>
    %54 = vector.extract_strided_slice %9 {offsets = [352, 0], sizes = [32, 64], strides = [1, 1]} : vector<512x64xbf16> to vector<32x64xbf16>
    %cst_19 = arith.constant dense<0.000000e+00> : vector<24x64xf32>
    %55 = tpu.matmul %53, %54, %cst_19 {dimension_numbers = #tpu.dot_dimension_numbers<[1], [0], [0], [1], [0, 0, 1, 1], [], []>} : vector<24x32xbf16>, vector<32x64xbf16>, vector<24x64xf32> -> vector<24x64xf32>
    %56 = arith.addf %52, %55 : vector<24x64xf32>
    %57 = vector.extract_strided_slice %8 {offsets = [288, 0], sizes = [24, 32], strides = [1, 1]} : vector<384x32xbf16> to vector<24x32xbf16>
    %58 = vector.extract_strided_slice %9 {offsets = [384, 0], sizes = [32, 64], strides = [1, 1]} : vector<512x64xbf16> to vector<32x64xbf16>
    %cst_20 = arith.constant dense<0.000000e+00> : vector<24x64xf32>
    %59 = tpu.matmul %57, %58, %cst_20 {dimension_numbers = #tpu.dot_dimension_numbers<[1], [0], [0], [1], [0, 0, 1, 1], [], []>} : vector<24x32xbf16>, vector<32x64xbf16>, vector<24x64xf32> -> vector<24x64xf32>
    %60 = arith.addf %56, %59 : vector<24x64xf32>
    %61 = vector.extract_strided_slice %8 {offsets = [312, 0], sizes = [24, 32], strides = [1, 1]} : vector<384x32xbf16> to vector<24x32xbf16>
    %62 = vector.extract_strided_slice %9 {offsets = [416, 0], sizes = [32, 64], strides = [1, 1]} : vector<512x64xbf16> to vector<32x64xbf16>
    %cst_21 = arith.constant dense<0.000000e+00> : vector<24x64xf32>
    %63 = tpu.matmul %61, %62, %cst_21 {dimension_numbers = #tpu.dot_dimension_numbers<[1], [0], [0], [1], [0, 0, 1, 1], [], []>} : vector<24x32xbf16>, vector<32x64xbf16>, vector<24x64xf32> -> vector<24x64xf32>
    %64 = arith.addf %60, %63 : vector<24x64xf32>
    %65 = vector.extract_strided_slice %8 {offsets = [336, 0], sizes = [24, 32], strides = [1, 1]} : vector<384x32xbf16> to vector<24x32xbf16>
    %66 = vector.extract_strided_slice %9 {offsets = [448, 0], sizes = [32, 64], strides = [1, 1]} : vector<512x64xbf16> to vector<32x64xbf16>
    %cst_22 = arith.constant dense<0.000000e+00> : vector<24x64xf32>
    %67 = tpu.matmul %65, %66, %cst_22 {dimension_numbers = #tpu.dot_dimension_numbers<[1], [0], [0], [1], [0, 0, 1, 1], [], []>} : vector<24x32xbf16>, vector<32x64xbf16>, vector<24x64xf32> -> vector<24x64xf32>
    %68 = arith.addf %64, %67 : vector<24x64xf32>
    %69 = vector.extract_strided_slice %8 {offsets = [360, 0], sizes = [24, 32], strides = [1, 1]} : vector<384x32xbf16> to vector<24x32xbf16>
    %70 = vector.extract_strided_slice %9 {offsets = [480, 0], sizes = [32, 64], strides = [1, 1]} : vector<512x64xbf16> to vector<32x64xbf16>
    %cst_23 = arith.constant dense<0.000000e+00> : vector<24x64xf32>
    %71 = tpu.matmul %69, %70, %cst_23 {dimension_numbers = #tpu.dot_dimension_numbers<[1], [0], [0], [1], [0, 0, 1, 1], [], []>} : vector<24x32xbf16>, vector<32x64xbf16>, vector<24x64xf32> -> vector<24x64xf32>
    %72 = arith.addf %68, %71 : vector<24x64xf32>
    %c0_24 = arith.constant 0 : index
    %c0_25 = arith.constant 0 : index
    %73 = vector.load %arg4[%c0_24, %c0_25] : memref<1x64xf32, #tpu.memory_space<vmem>>, vector<1x64xf32>
    %74 = vector.broadcast %73 : vector<1x64xf32> to vector<24x64xf32>
    %75 = arith.addf %72, %74 : vector<24x64xf32>
    %cst_26 = arith.constant 0.000000e+00 : f32
    %76 = vector.broadcast %cst_26 : f32 to vector<24x64xf32>
    %77 = arith.maximumf %75, %76 : vector<24x64xf32>
    %78 = arith.truncf %77 : vector<24x64xf32> to vector<24x64xbf16>
    %c0_27 = arith.constant 0 : index
    %c0_28 = arith.constant 0 : index
    %79 = vector.load %arg5[%c0_27, %c0_28] : memref<576x64xbf16, #tpu.memory_space<vmem>>, vector<576x64xbf16>
    %80 = vector.extract_strided_slice %78 {offsets = [0, 0], sizes = [2, 64], strides = [1, 1]} : vector<24x64xbf16> to vector<2x64xbf16>
    %81 = vector.extract_strided_slice %79 {offsets = [0, 0], sizes = [64, 64], strides = [1, 1]} : vector<576x64xbf16> to vector<64x64xbf16>
    %cst_29 = arith.constant dense<0.000000e+00> : vector<2x64xf32>
    %82 = tpu.matmul %80, %81, %cst_29 {dimension_numbers = #tpu.dot_dimension_numbers<[1], [0], [0], [1], [0, 0, 1, 1], [], []>} : vector<2x64xbf16>, vector<64x64xbf16>, vector<2x64xf32> -> vector<2x64xf32>
    %83 = vector.extract_strided_slice %78 {offsets = [2, 0], sizes = [2, 64], strides = [1, 1]} : vector<24x64xbf16> to vector<2x64xbf16>
    %84 = vector.extract_strided_slice %79 {offsets = [64, 0], sizes = [64, 64], strides = [1, 1]} : vector<576x64xbf16> to vector<64x64xbf16>
    %cst_30 = arith.constant dense<0.000000e+00> : vector<2x64xf32>
    %85 = tpu.matmul %83, %84, %cst_30 {dimension_numbers = #tpu.dot_dimension_numbers<[1], [0], [0], [1], [0, 0, 1, 1], [], []>} : vector<2x64xbf16>, vector<64x64xbf16>, vector<2x64xf32> -> vector<2x64xf32>
    %86 = arith.addf %82, %85 : vector<2x64xf32>
    %87 = vector.extract_strided_slice %78 {offsets = [4, 0], sizes = [2, 64], strides = [1, 1]} : vector<24x64xbf16> to vector<2x64xbf16>
    %88 = vector.extract_strided_slice %79 {offsets = [128, 0], sizes = [64, 64], strides = [1, 1]} : vector<576x64xbf16> to vector<64x64xbf16>
    %cst_31 = arith.constant dense<0.000000e+00> : vector<2x64xf32>
    %89 = tpu.matmul %87, %88, %cst_31 {dimension_numbers = #tpu.dot_dimension_numbers<[1], [0], [0], [1], [0, 0, 1, 1], [], []>} : vector<2x64xbf16>, vector<64x64xbf16>, vector<2x64xf32> -> vector<2x64xf32>
    %90 = arith.addf %86, %89 : vector<2x64xf32>
    %91 = vector.extract_strided_slice %78 {offsets = [6, 0], sizes = [2, 64], strides = [1, 1]} : vector<24x64xbf16> to vector<2x64xbf16>
    %92 = vector.extract_strided_slice %79 {offsets = [192, 0], sizes = [64, 64], strides = [1, 1]} : vector<576x64xbf16> to vector<64x64xbf16>
    %cst_32 = arith.constant dense<0.000000e+00> : vector<2x64xf32>
    %93 = tpu.matmul %91, %92, %cst_32 {dimension_numbers = #tpu.dot_dimension_numbers<[1], [0], [0], [1], [0, 0, 1, 1], [], []>} : vector<2x64xbf16>, vector<64x64xbf16>, vector<2x64xf32> -> vector<2x64xf32>
    %94 = arith.addf %90, %93 : vector<2x64xf32>
    %95 = vector.extract_strided_slice %78 {offsets = [8, 0], sizes = [2, 64], strides = [1, 1]} : vector<24x64xbf16> to vector<2x64xbf16>
    %96 = vector.extract_strided_slice %79 {offsets = [256, 0], sizes = [64, 64], strides = [1, 1]} : vector<576x64xbf16> to vector<64x64xbf16>
    %cst_33 = arith.constant dense<0.000000e+00> : vector<2x64xf32>
    %97 = tpu.matmul %95, %96, %cst_33 {dimension_numbers = #tpu.dot_dimension_numbers<[1], [0], [0], [1], [0, 0, 1, 1], [], []>} : vector<2x64xbf16>, vector<64x64xbf16>, vector<2x64xf32> -> vector<2x64xf32>
    %98 = arith.addf %94, %97 : vector<2x64xf32>
    %99 = vector.extract_strided_slice %78 {offsets = [10, 0], sizes = [2, 64], strides = [1, 1]} : vector<24x64xbf16> to vector<2x64xbf16>
    %100 = vector.extract_strided_slice %79 {offsets = [320, 0], sizes = [64, 64], strides = [1, 1]} : vector<576x64xbf16> to vector<64x64xbf16>
    %cst_34 = arith.constant dense<0.000000e+00> : vector<2x64xf32>
    %101 = tpu.matmul %99, %100, %cst_34 {dimension_numbers = #tpu.dot_dimension_numbers<[1], [0], [0], [1], [0, 0, 1, 1], [], []>} : vector<2x64xbf16>, vector<64x64xbf16>, vector<2x64xf32> -> vector<2x64xf32>
    %102 = arith.addf %98, %101 : vector<2x64xf32>
    %103 = vector.extract_strided_slice %78 {offsets = [12, 0], sizes = [2, 64], strides = [1, 1]} : vector<24x64xbf16> to vector<2x64xbf16>
    %104 = vector.extract_strided_slice %79 {offsets = [384, 0], sizes = [64, 64], strides = [1, 1]} : vector<576x64xbf16> to vector<64x64xbf16>
    %cst_35 = arith.constant dense<0.000000e+00> : vector<2x64xf32>
    %105 = tpu.matmul %103, %104, %cst_35 {dimension_numbers = #tpu.dot_dimension_numbers<[1], [0], [0], [1], [0, 0, 1, 1], [], []>} : vector<2x64xbf16>, vector<64x64xbf16>, vector<2x64xf32> -> vector<2x64xf32>
    %106 = arith.addf %102, %105 : vector<2x64xf32>
    %107 = vector.extract_strided_slice %78 {offsets = [14, 0], sizes = [2, 64], strides = [1, 1]} : vector<24x64xbf16> to vector<2x64xbf16>
    %108 = vector.extract_strided_slice %79 {offsets = [448, 0], sizes = [64, 64], strides = [1, 1]} : vector<576x64xbf16> to vector<64x64xbf16>
    %cst_36 = arith.constant dense<0.000000e+00> : vector<2x64xf32>
    %109 = tpu.matmul %107, %108, %cst_36 {dimension_numbers = #tpu.dot_dimension_numbers<[1], [0], [0], [1], [0, 0, 1, 1], [], []>} : vector<2x64xbf16>, vector<64x64xbf16>, vector<2x64xf32> -> vector<2x64xf32>
    %110 = arith.addf %106, %109 : vector<2x64xf32>
    %111 = vector.extract_strided_slice %78 {offsets = [16, 0], sizes = [2, 64], strides = [1, 1]} : vector<24x64xbf16> to vector<2x64xbf16>
    %112 = vector.extract_strided_slice %79 {offsets = [512, 0], sizes = [64, 64], strides = [1, 1]} : vector<576x64xbf16> to vector<64x64xbf16>
    %cst_37 = arith.constant dense<0.000000e+00> : vector<2x64xf32>
    %113 = tpu.matmul %111, %112, %cst_37 {dimension_numbers = #tpu.dot_dimension_numbers<[1], [0], [0], [1], [0, 0, 1, 1], [], []>} : vector<2x64xbf16>, vector<64x64xbf16>, vector<2x64xf32> -> vector<2x64xf32>
    %114 = arith.addf %110, %113 : vector<2x64xf32>
    %c0_38 = arith.constant 0 : index
    %c0_39 = arith.constant 0 : index
    %115 = vector.load %arg6[%c0_38, %c0_39] : memref<1x64xf32, #tpu.memory_space<vmem>>, vector<1x64xf32>
    %116 = vector.broadcast %115 : vector<1x64xf32> to vector<2x64xf32>
    %117 = arith.addf %114, %116 : vector<2x64xf32>
    %cst_40 = arith.constant 0.000000e+00 : f32
    %118 = vector.broadcast %cst_40 : f32 to vector<2x64xf32>
    %119 = arith.maximumf %117, %118 : vector<2x64xf32>
    %120 = arith.truncf %119 : vector<2x64xf32> to vector<2x64xbf16>
    %c0_41 = arith.constant 0 : index
    %c0_42 = arith.constant 0 : index
    %121 = vector.load %arg7[%c0_41, %c0_42] : memref<64x1024xbf16, #tpu.memory_space<vmem>>, vector<64x1024xbf16>
    %cst_43 = arith.constant dense<0.000000e+00> : vector<2x1024xf32>
    %122 = tpu.matmul %120, %121, %cst_43 {dimension_numbers = #tpu.dot_dimension_numbers<[1], [0], [0], [1], [0, 0, 1, 1], [], []>} : vector<2x64xbf16>, vector<64x1024xbf16>, vector<2x1024xf32> -> vector<2x1024xf32>
    %c0_44 = arith.constant 0 : index
    %c0_45 = arith.constant 0 : index
    %123 = vector.load %arg8[%c0_44, %c0_45] : memref<1x1024xf32, #tpu.memory_space<vmem>>, vector<1x1024xf32>
    %124 = vector.broadcast %123 : vector<1x1024xf32> to vector<2x1024xf32>
    %125 = arith.addf %122, %124 : vector<2x1024xf32>
    %cst_46 = arith.constant 0.000000e+00 : f32
    %126 = vector.broadcast %cst_46 : f32 to vector<2x1024xf32>
    %127 = arith.maximumf %125, %126 : vector<2x1024xf32>
    %128 = arith.truncf %127 : vector<2x1024xf32> to vector<2x1024xbf16>
    %c0_47 = arith.constant 0 : index
    %c0_48 = arith.constant 0 : index
    %129 = vector.load %arg9[%c0_47, %c0_48] : memref<1024x128xbf16, #tpu.memory_space<vmem>>, vector<1024x128xbf16>
    %cst_49 = arith.constant dense<0.000000e+00> : vector<2x128xf32>
    %130 = tpu.matmul %128, %129, %cst_49 {dimension_numbers = #tpu.dot_dimension_numbers<[1], [0], [0], [1], [0, 0, 1, 1], [], []>} : vector<2x1024xbf16>, vector<1024x128xbf16>, vector<2x128xf32> -> vector<2x128xf32>
    %c0_50 = arith.constant 0 : index
    %c0_51 = arith.constant 0 : index
    %131 = vector.load %arg10[%c0_50, %c0_51] : memref<1x128xf32, #tpu.memory_space<vmem>>, vector<1x128xf32>
    %132 = vector.broadcast %131 : vector<1x128xf32> to vector<2x128xf32>
    %133 = arith.addf %130, %132 : vector<2x128xf32>
    %c0_52 = arith.constant 0 : index
    %c0_53 = arith.constant 0 : index
    %134 = vector.load %arg11[%c0_52, %c0_53] : memref<2x128xf32, #tpu.memory_space<vmem>>, vector<2x128xf32>
    tpu.vector_store %arg11[%c0_52, %c0_53], %133 {strides = array<i32>} : memref<2x128xf32, #tpu.memory_space<vmem>>, vector<2x128xf32>,
    return
  }
}

</mosaic_0001>

<llo_original>
// kernel: agent_forward.1
$region0: #{agent_forward.1}
  #allocation0 [shape = 'u32[]', space=smem, size = 0x4, offset = 0x4, fixed_abs, tag = 'smem constant byte address 0x4 - core index']
  #allocation1 [shape = 'u32[144,128]{1,0:T(1,128)}', space=vmem, size = 0x12000, scoped, tag = 'internal scratch']
  %s0 = inlined_call_operand.vmem [shape: bf16[384,256], index: 0, kind: input, shape index: {}]
  %s1 = inlined_call_operand.vmem [shape: bf16[256,32], index: 1, kind: input, shape index: {}]
  %s2 = inlined_call_operand.vmem [shape: f32[1,32], index: 2, kind: input, shape index: {}]
  %s3 = inlined_call_operand.vmem [shape: bf16[512,64], index: 3, kind: input, shape index: {}]
  %s4 = inlined_call_operand.vmem [shape: f32[1,64], index: 4, kind: input, shape index: {}]
  %s5 = inlined_call_operand.vmem [shape: bf16[576,64], index: 5, kind: input, shape index: {}]
  %s6 = inlined_call_operand.vmem [shape: f32[1,64], index: 6, kind: input, shape index: {}]
  %s7 = inlined_call_operand.vmem [shape: bf16[64,1024], index: 7, kind: input, shape index: {}]
  %s8 = inlined_call_operand.vmem [shape: f32[1,1024], index: 8, kind: input, shape index: {}]
  %s9 = inlined_call_operand.vmem [shape: bf16[1024,128], index: 9, kind: input, shape index: {}]
  %s10 = inlined_call_operand.vmem [shape: f32[1,128], index: 10, kind: input, shape index: {}]
  %s11 = inlined_call_operand.vmem [shape: f32[2,128], index: 11, kind: output, shape index: {}]
  %s12 = sld [smem:[#allocation0]]
  $region54: #{agent_forward.1} parent=0
    _
  %s14 = ssub.s32 1, %s12
  %s15 = scalar_select 0, %s14, %s12
  // Predicated region
  $region2: #{agent_forward.1} parent=0 // pred_check
    _
  $region3: #{agent_forward.1} parent=0 // pred_check_branch
    %17 = sbr.rel (0) target = $region5
  $region4: #{agent_forward.1} parent=0 // pred_region
    _
  $region5: #{agent_forward.1} parent=0 // pred_fallthru
    _
  // Predicated region
  $region6: #{agent_forward.1} parent=0 // pred_check
    _
  $region7: #{agent_forward.1} parent=0 // pred_check_branch
    %19 = sbr.rel (0) target = $region9
  $region8: #{agent_forward.1} parent=0 // pred_region
    _
  $region9: #{agent_forward.1} parent=0 // pred_fallthru
    _
  // Predicated region
  $region10: #{agent_forward.1} parent=0 // pred_check
    _
  $region11: #{agent_forward.1} parent=0 // pred_check_branch
    %21 = sbr.rel (0) target = $region13
  $region12: #{agent_forward.1} parent=0 // pred_region
    _
  $region13: #{agent_forward.1} parent=0 // pred_fallthru
    _
  // Predicated region
  $region14: #{agent_forward.1} parent=0 // pred_check
    _
  $region15: #{agent_forward.1} parent=0 // pred_check_branch
    %23 = sbr.rel (0) target = $region17
  $region16: #{agent_forward.1} parent=0 // pred_region
    _
  $region17: #{agent_forward.1} parent=0 // pred_fallthru
    _
  // Predicated region
  $region18: #{agent_forward.1} parent=0 // pred_check
    _
  $region19: #{agent_forward.1} parent=0 // pred_check_branch
    %25 = sbr.rel (0) target = $region21
  $region20: #{agent_forward.1} parent=0 // pred_region
    _
  $region21: #{agent_forward.1} parent=0 // pred_fallthru
    _
  // Predicated region
  $region22: #{agent_forward.1} parent=0 // pred_check
    _
  $region23: #{agent_forward.1} parent=0 // pred_check_branch
    %27 = sbr.rel (0) target = $region25
  $region24: #{agent_forward.1} parent=0 // pred_region
    _
  $region25: #{agent_forward.1} parent=0 // pred_fallthru
    _
  // Predicated region
  $region26: #{agent_forward.1} parent=0 // pred_check
    _
  $region27: #{agent_forward.1} parent=0 // pred_check_branch
    %29 = sbr.rel (0) target = $region29
  $region28: #{agent_forward.1} parent=0 // pred_region
    _
  $region29: #{agent_forward.1} parent=0 // pred_fallthru
    _
  // Predicated region
  $region30: #{agent_forward.1} parent=0 // pred_check
    _
  $region31: #{agent_forward.1} parent=0 // pred_check_branch
    %31 = sbr.rel (0) target = $region33
  $region32: #{agent_forward.1} parent=0 // pred_region
    _
  $region33: #{agent_forward.1} parent=0 // pred_fallthru
    _
  // Predicated region
  $region34: #{agent_forward.1} parent=0 // pred_check
    _
  $region35: #{agent_forward.1} parent=0 // pred_check_branch
    %33 = sbr.rel (0) target = $region37
  $region36: #{agent_forward.1} parent=0 // pred_region
    _
  $region37: #{agent_forward.1} parent=0 // pred_fallthru
    _
  // Predicated region
  $region38: #{agent_forward.1} parent=0 // pred_check
    _
  $region39: #{agent_forward.1} parent=0 // pred_check_branch
    %35 = sbr.rel (0) target = $region41
  $region40: #{agent_forward.1} parent=0 // pred_region
    _
  $region41: #{agent_forward.1} parent=0 // pred_fallthru
    _
  // Predicated region
  $region42: #{agent_forward.1} parent=0 // pred_check
    _
  $region43: #{agent_forward.1} parent=0 // pred_check_branch
    %37 = sbr.rel (0) target = $region45
  $region44: #{agent_forward.1} parent=0 // pred_region
    _
  $region45: #{agent_forward.1} parent=0 // pred_fallthru
    _
  %v39 = vld [vmem:[%s0] sm:$0xff]
  %v40 = vld [vmem:[%s0 + $0x8] sm:$0xff]
  %v41 = vld [vmem:[%s0 + $0x10] sm:$0xff]
  %v42 = vld [vmem:[%s0 + $0x18] sm:$0xff]
  %v43 = vld [vmem:[%s0 + $0x20] sm:$0xff]
  %v44 = vld [vmem:[%s0 + $0x28] sm:$0xff]
  %v45 = vld [vmem:[%s0 + $0x30] sm:$0xff]
  %v46 = vld [vmem:[%s0 + $0x38] sm:$0xff]
  %v47 = vld [vmem:[%s0 + $0x40] sm:$0xff]
  %v48 = vld [vmem:[%s0 + $0x48] sm:$0xff]
  %v49 = vld [vmem:[%s0 + $0x50] sm:$0xff]
  %v50 = vld [vmem:[%s0 + $0x58] sm:$0xff]
  %v51 = vld [vmem:[%s0 + $0x60] sm:$0xff]
  %v52 = vld [vmem:[%s0 + $0x68] sm:$0xff]
  %v53 = vld [vmem:[%s0 + $0x70] sm:$0xff]
  %v54 = vld [vmem:[%s0 + $0x78] sm:$0xff]
  %v55 = vld [vmem:[%s0 + $0x80] sm:$0xff]
  %v56 = vld [vmem:[%s0 + $0x88] sm:$0xff]
  %v57 = vld [vmem:[%s0 + $0x90] sm:$0xff]
  %v58 = vld [vmem:[%s0 + $0x98] sm:$0xff]
  %v59 = vld [vmem:[%s0 + $0xa0] sm:$0xff]
  %v60 = vld [vmem:[%s0 + $0xa8] sm:$0xff]
  %v61 = vld [vmem:[%s0 + $0xb0] sm:$0xff]
  %v62 = vld [vmem:[%s0 + $0xb8] sm:$0xff]
  %v63 = vld [vmem:[%s0 + $0xc0] sm:$0xff]
  %v64 = vld [vmem:[%s0 + $0xc8] sm:$0xff]
  %v65 = vld [vmem:[%s0 + $0xd0] sm:$0xff]
  %v66 = vld [vmem:[%s0 + $0xd8] sm:$0xff]
  %v67 = vld [vmem:[%s0 + $0xe0] sm:$0xff]
  %v68 = vld [vmem:[%s0 + $0xe8] sm:$0xff]
  %v69 = vld [vmem:[%s0 + $0xf0] sm:$0xff]
  %v70 = vld [vmem:[%s0 + $0xf8] sm:$0xff]
  %v71 = vld [vmem:[%s0 + $0x100] sm:$0xff]
  %v72 = vld [vmem:[%s0 + $0x108] sm:$0xff]
  %v73 = vld [vmem:[%s0 + $0x110] sm:$0xff]
  %v74 = vld [vmem:[%s0 + $0x118] sm:$0xff]
  %v75 = vld [vmem:[%s0 + $0x120] sm:$0xff]
  %v76 = vld [vmem:[%s0 + $0x128] sm:$0xff]
  %v77 = vld [vmem:[%s0 + $0x130] sm:$0xff]
  %v78 = vld [vmem:[%s0 + $0x138] sm:$0xff]
  %v79 = vld [vmem:[%s0 + $0x140] sm:$0xff]
  %v80 = vld [vmem:[%s0 + $0x148] sm:$0xff]
  %v81 = vld [vmem:[%s0 + $0x150] sm:$0xff]
  %v82 = vld [vmem:[%s0 + $0x158] sm:$0xff]
  %v83 = vld [vmem:[%s0 + $0x160] sm:$0xff]
  %v84 = vld [vmem:[%s0 + $0x168] sm:$0xff]
  %v85 = vld [vmem:[%s0 + $0x170] sm:$0xff]
  %v86 = vld [vmem:[%s0 + $0x178] sm:$0xff]
  %v87 = vld [vmem:[%s1] sm:$0xf]
  %v88 = vld [vmem:[%s1 + $0x4] sm:$0xf]
  %v89 = vld [vmem:[%s1 + $0x8] sm:$0xf]
  %v90 = vld [vmem:[%s1 + $0xc] sm:$0xf]
  %v91 = vld [vmem:[%s1 + $0x10] sm:$0xf]
  %v92 = vld [vmem:[%s1 + $0x14] sm:$0xf]
  %v93 = vld [vmem:[%s1 + $0x18] sm:$0xf]
  %v94 = vld [vmem:[%s1 + $0x1c] sm:$0xf]
  %v95 = vld [vmem:[%s1 + $0x20] sm:$0xf]
  %v96 = vld [vmem:[%s1 + $0x24] sm:$0xf]
  %v97 = vld [vmem:[%s1 + $0x28] sm:$0xf]
  %v98 = vld [vmem:[%s1 + $0x2c] sm:$0xf]
  %v99 = vld [vmem:[%s1 + $0x30] sm:$0xf]
  %v100 = vld [vmem:[%s1 + $0x34] sm:$0xf]
  %v101 = vld [vmem:[%s1 + $0x38] sm:$0xf]
  %v102 = vld [vmem:[%s1 + $0x3c] sm:$0xf]
  %v103 = vld [vmem:[%s1 + $0x40] sm:$0xf]
  %v104 = vld [vmem:[%s1 + $0x44] sm:$0xf]
  %v105 = vld [vmem:[%s1 + $0x48] sm:$0xf]
  %v106 = vld [vmem:[%s1 + $0x4c] sm:$0xf]
  %v107 = vld [vmem:[%s1 + $0x50] sm:$0xf]
  %v108 = vld [vmem:[%s1 + $0x54] sm:$0xf]
  %v109 = vld [vmem:[%s1 + $0x58] sm:$0xf]
  %v110 = vld [vmem:[%s1 + $0x5c] sm:$0xf]
  %v111 = vld [vmem:[%s1 + $0x60] sm:$0xf]
  %v112 = vld [vmem:[%s1 + $0x64] sm:$0xf]
  %v113 = vld [vmem:[%s1 + $0x68] sm:$0xf]
  %v114 = vld [vmem:[%s1 + $0x6c] sm:$0xf]
  %v115 = vld [vmem:[%s1 + $0x70] sm:$0xf]
  %v116 = vld [vmem:[%s1 + $0x74] sm:$0xf]
  %v117 = vld [vmem:[%s1 + $0x78] sm:$0xf]
  %v118 = vld [vmem:[%s1 + $0x7c] sm:$0xf]
  %v119 = vld [vmem:[%s2] sm:$0x1]
  %v121 = vlaneseq
  %v122 = vshrl.u32 %v121, 7
  %v123 = vsub.s32 0, %v122
  %v124 = vrot.slane %v119, %v123
  %v174 = vunpack.c.l.b16 %v39
  %v175 = vunpack.c.h.b16 %v39
  %v176 = vunpack.c.l.b16 %v40
  %v177 = vunpack.c.h.b16 %v40
  %v178 = vunpack.c.l.b16 %v41
  %v179 = vunpack.c.h.b16 %v41
  %v180 = vunpack.c.l.b16 %v42
  %v181 = vunpack.c.h.b16 %v42
  %v182 = vunpack.c.l.b16 %v43
  %v183 = vunpack.c.h.b16 %v43
  %v184 = vunpack.c.l.b16 %v44
  %v185 = vunpack.c.h.b16 %v44
  %v186 = vunpack.c.l.b16 %v45
  %v187 = vunpack.c.h.b16 %v45
  %v188 = vunpack.c.l.b16 %v46
  %v189 = vunpack.c.h.b16 %v46
  %v190 = vunpack.c.l.b16 %v47
  %v191 = vunpack.c.h.b16 %v47
  %v192 = vunpack.c.l.b16 %v48
  %v193 = vunpack.c.h.b16 %v48
  %v194 = vunpack.c.l.b16 %v49
  %v195 = vunpack.c.h.b16 %v49
  %v196 = vunpack.c.l.b16 %v50
  %v197 = vunpack.c.h.b16 %v50
  %v198 = vunpack.c.l.b16 %v51
  %v199 = vunpack.c.h.b16 %v51
  %v200 = vunpack.c.l.b16 %v52
  %v201 = vunpack.c.h.b16 %v52
  %v202 = vunpack.c.l.b16 %v53
  %v203 = vunpack.c.h.b16 %v53
  %v204 = vunpack.c.l.b16 %v54
  %v205 = vunpack.c.h.b16 %v54
  %v206 = vunpack.c.l.b16 %v55
  %v207 = vunpack.c.h.b16 %v55
  %v208 = vunpack.c.l.b16 %v56
  %v209 = vunpack.c.h.b16 %v56
  %v210 = vunpack.c.l.b16 %v57
  %v211 = vunpack.c.h.b16 %v57
  %v212 = vunpack.c.l.b16 %v58
  %v213 = vunpack.c.h.b16 %v58
  %v214 = vunpack.c.l.b16 %v59
  %v215 = vunpack.c.h.b16 %v59
  %v216 = vunpack.c.l.b16 %v60
  %v217 = vunpack.c.h.b16 %v60
  %v218 = vunpack.c.l.b16 %v61
  %v219 = vunpack.c.h.b16 %v61
  %v220 = vunpack.c.l.b16 %v62
  %v221 = vunpack.c.h.b16 %v62
  %v222 = vunpack.c.l.b16 %v63
  %v223 = vunpack.c.h.b16 %v63
  %v224 = vunpack.c.l.b16 %v64
  %v225 = vunpack.c.h.b16 %v64
  %v226 = vunpack.c.l.b16 %v65
  %v227 = vunpack.c.h.b16 %v65
  %v228 = vunpack.c.l.b16 %v66
  %v229 = vunpack.c.h.b16 %v66
  %v230 = vunpack.c.l.b16 %v67
  %v231 = vunpack.c.h.b16 %v67
  %v232 = vunpack.c.l.b16 %v68
  %v233 = vunpack.c.h.b16 %v68
  %v234 = vunpack.c.l.b16 %v69
  %v235 = vunpack.c.h.b16 %v69
  %v236 = vunpack.c.l.b16 %v70
  %v237 = vunpack.c.h.b16 %v70
  %v238 = vunpack.c.l.b16 %v71
  %v239 = vunpack.c.h.b16 %v71
  %v240 = vunpack.c.l.b16 %v72
  %v241 = vunpack.c.h.b16 %v72
  %v242 = vunpack.c.l.b16 %v73
  %v243 = vunpack.c.h.b16 %v73
  %v244 = vunpack.c.l.b16 %v74
  %v245 = vunpack.c.h.b16 %v74
  %v246 = vunpack.c.l.b16 %v75
  %v247 = vunpack.c.h.b16 %v75
  %v248 = vunpack.c.l.b16 %v76
  %v249 = vunpack.c.h.b16 %v76
  %v250 = vunpack.c.l.b16 %v77
  %v251 = vunpack.c.h.b16 %v77
  %v252 = vunpack.c.l.b16 %v78
  %v253 = vunpack.c.h.b16 %v78
  %v254 = vunpack.c.l.b16 %v79
  %v255 = vunpack.c.h.b16 %v79
  %v256 = vunpack.c.l.b16 %v80
  %v257 = vunpack.c.h.b16 %v80
  %v258 = vunpack.c.l.b16 %v81
  %v259 = vunpack.c.h.b16 %v81
  %v260 = vunpack.c.l.b16 %v82
  %v261 = vunpack.c.h.b16 %v82
  %v262 = vunpack.c.l.b16 %v83
  %v263 = vunpack.c.h.b16 %v83
  %v264 = vunpack.c.l.b16 %v84
  %v265 = vunpack.c.h.b16 %v84
  %v266 = vunpack.c.l.b16 %v85
  %v267 = vunpack.c.h.b16 %v85
  %v268 = vunpack.c.l.b16 %v86
  %v269 = vunpack.c.h.b16 %v86
  %v270 = vpack.c.b16 %v176, %v174
  %v271 = vpack.c.b16 %v177, %v175
  %v272 = vpack.c.b16 %v180, %v178
  %v273 = vpack.c.b16 %v181, %v179
  %v274 = vpack.c.b16 %v184, %v182
  %v275 = vpack.c.b16 %v185, %v183
  %v276 = vpack.c.b16 %v188, %v186
  %v277 = vpack.c.b16 %v189, %v187
  %v278 = vpack.c.b16 %v192, %v190
  %v279 = vpack.c.b16 %v193, %v191
  %v280 = vpack.c.b16 %v196, %v194
  %v281 = vpack.c.b16 %v197, %v195
  %v282 = vpack.c.b16 %v200, %v198
  %v283 = vpack.c.b16 %v201, %v199
  %v284 = vpack.c.b16 %v204, %v202
  %v285 = vpack.c.b16 %v205, %v203
  %v286 = vpack.c.b16 %v208, %v206
  %v287 = vpack.c.b16 %v209, %v207
  %v288 = vpack.c.b16 %v212, %v210
  %v289 = vpack.c.b16 %v213, %v211
  %v290 = vpack.c.b16 %v216, %v214
  %v291 = vpack.c.b16 %v217, %v215
  %v292 = vpack.c.b16 %v220, %v218
  %v293 = vpack.c.b16 %v221, %v219
  %v294 = vpack.c.b16 %v224, %v222
  %v295 = vpack.c.b16 %v225, %v223
  %v296 = vpack.c.b16 %v228, %v226
  %v297 = vpack.c.b16 %v229, %v227
  %v298 = vpack.c.b16 %v232, %v230
  %v299 = vpack.c.b16 %v233, %v231
  %v300 = vpack.c.b16 %v236, %v234
  %v301 = vpack.c.b16 %v237, %v235
  %v302 = vpack.c.b16 %v240, %v238
  %v303 = vpack.c.b16 %v241, %v239
  %v304 = vpack.c.b16 %v244, %v242
  %v305 = vpack.c.b16 %v245, %v243
  %v306 = vpack.c.b16 %v248, %v246
  %v307 = vpack.c.b16 %v249, %v247
  %v308 = vpack.c.b16 %v252, %v250
  %v309 = vpack.c.b16 %v253, %v251
  %v310 = vpack.c.b16 %v256, %v254
  %v311 = vpack.c.b16 %v257, %v255
  %v312 = vpack.c.b16 %v260, %v258
  %v313 = vpack.c.b16 %v261, %v259
  %v314 = vpack.c.b16 %v264, %v262
  %v315 = vpack.c.b16 %v265, %v263
  %v316 = vpack.c.b16 %v268, %v266
  %v317 = vpack.c.b16 %v269, %v267
  %v398 = vunpack.c.l.b16 %v87
  %v399 = vunpack.c.l.b16 %v88
  %v400 = vunpack.c.l.b16 %v89
  %v401 = vunpack.c.l.b16 %v90
  %v402 = vunpack.c.l.b16 %v91
  %v403 = vunpack.c.l.b16 %v92
  %v404 = vunpack.c.l.b16 %v93
  %v405 = vunpack.c.l.b16 %v94
  %v406 = vunpack.c.l.b16 %v95
  %v407 = vunpack.c.l.b16 %v96
  %v408 = vunpack.c.l.b16 %v97
  %v409 = vunpack.c.l.b16 %v98
  %v410 = vunpack.c.l.b16 %v99
  %v411 = vunpack.c.l.b16 %v100
  %v412 = vunpack.c.l.b16 %v101
  %v413 = vunpack.c.l.b16 %v102
  %v414 = vunpack.c.l.b16 %v103
  %v415 = vunpack.c.l.b16 %v104
  %v416 = vunpack.c.l.b16 %v105
  %v417 = vunpack.c.l.b16 %v106
  %v418 = vunpack.c.l.b16 %v107
  %v419 = vunpack.c.l.b16 %v108
  %v420 = vunpack.c.l.b16 %v109
  %v421 = vunpack.c.l.b16 %v110
  %v422 = vunpack.c.l.b16 %v111
  %v423 = vunpack.c.l.b16 %v112
  %v424 = vunpack.c.l.b16 %v113
  %v425 = vunpack.c.l.b16 %v114
  %v426 = vunpack.c.l.b16 %v115
  %v427 = vunpack.c.l.b16 %v116
  %v428 = vunpack.c.l.b16 %v117
  %v429 = vunpack.c.l.b16 %v118
  %v430 = vpack.c.b16 %v399, %v398
  %v431 = vpack.c.b16 %v401, %v400
  %v432 = vpack.c.b16 %v403, %v402
  %v433 = vpack.c.b16 %v405, %v404
  %v434 = vpack.c.b16 %v407, %v406
  %v435 = vpack.c.b16 %v409, %v408
  %v436 = vpack.c.b16 %v411, %v410
  %v437 = vpack.c.b16 %v413, %v412
  %v438 = vpack.c.b16 %v415, %v414
  %v439 = vpack.c.b16 %v417, %v416
  %v440 = vpack.c.b16 %v419, %v418
  %v441 = vpack.c.b16 %v421, %v420
  %v442 = vpack.c.b16 %v423, %v422
  %v443 = vpack.c.b16 %v425, %v424
  %v444 = vpack.c.b16 %v427, %v426
  %v445 = vpack.c.b16 %v429, %v428
  %462 = vmatprep.subr.bf16.mxu0 0
  %463 = vmatpush1.bf16.msra.mxu0 %v437
  %464 = vmatprep.subr.bf16.mxu0 0
  %465 = vmatpush1.bf16.msra.mxu0 %v436
  %466 = vmatprep.subr.bf16.mxu0 0
  %467 = vmatpush1.bf16.msra.mxu0 %v435
  %468 = vmatprep.subr.bf16.mxu0 0
  %469 = vmatpush1.bf16.msra.mxu0 %v434
  %470 = vmatprep.subr.bf16.mxu0 0
  %471 = vmatpush1.bf16.msra.mxu0 %v433
  %472 = vmatprep.subr.bf16.mxu0 0
  %473 = vmatpush1.bf16.msra.mxu0 %v432
  %474 = vmatprep.subr.bf16.mxu0 0
  %475 = vmatpush1.bf16.msra.mxu0 %v431
  %476 = vmatprep.subr.bf16.mxu0 0
  %477 = vmatpush1.bf16.msra.mxu0 %v430
  %478 = vmatprep.subr.bf16.mxu0 0
  %479 = vmatpush2.bf16.msra.mxu0 %v445
  %480 = vmatprep.subr.bf16.mxu0 0
  %481 = vmatpush2.bf16.msra.mxu0 %v444
  %482 = vmatprep.subr.bf16.mxu0 0
  %483 = vmatpush2.bf16.msra.mxu0 %v443
  %484 = vmatprep.subr.bf16.mxu0 0
  %485 = vmatpush2.bf16.msra.mxu0 %v442
  %486 = vmatprep.subr.bf16.mxu0 0
  %487 = vmatpush2.bf16.msra.mxu0 %v441
  %488 = vmatprep.subr.bf16.mxu0 0
  %489 = vmatpush2.bf16.msra.mxu0 %v440
  %490 = vmatprep.subr.bf16.mxu0 0
  %491 = vmatpush2.bf16.msra.mxu0 %v439
  %492 = vmatprep.subr.bf16.mxu0 0
  %493 = vmatpush2.bf16.msra.mxu0 %v438
  %494 = vmatprep.mubr.bf16.mxu0 %v271
  %495 = vmatmul.mubr.bf16.gmra.mxu0 %v270
  %v496 = vpop.f32.mrf.mxu0
  %v497 = vadd.f32 %v124, %v496
  %v498 = vpop.f32.mrf.mxu0
  %v499 = vpop.f32.mrf.mxu0
  %v500 = vadd.f32 %v124, %v499
  %v501 = vpop.f32.mrf.mxu0
  %502 = vmatprep.mubr.bf16.mxu0 %v273
  %503 = vmatmul.mubr.bf16.gmra.mxu0 %v272
  %v504 = vpop.f32.mrf.mxu0
  %v505 = vadd.f32 %v124, %v504
  %v506 = vpop.f32.mrf.mxu0
  %v507 = vpop.f32.mrf.mxu0
  %v508 = vadd.f32 %v124, %v507
  %v509 = vpop.f32.mrf.mxu0
  %510 = vmatprep.mubr.bf16.mxu0 %v275
  %511 = vmatmul.mubr.bf16.gmra.mxu0 %v274
  %v512 = vpop.f32.mrf.mxu0
  %v513 = vadd.f32 %v124, %v512
  %v514 = vpop.f32.mrf.mxu0
  %v515 = vpop.f32.mrf.mxu0
  %v516 = vadd.f32 %v124, %v515
  %v517 = vpop.f32.mrf.mxu0
  %518 = vmatprep.mubr.bf16.mxu0 %v277
  %519 = vmatmul.mubr.bf16.gmra.mxu0 %v276
  %v520 = vpop.f32.mrf.mxu0
  %v521 = vadd.f32 %v124, %v520
  %v522 = vpop.f32.mrf.mxu0
  %v523 = vpop.f32.mrf.mxu0
  %v524 = vadd.f32 %v124, %v523
  %v525 = vpop.f32.mrf.mxu0
  %526 = vmatprep.mubr.bf16.mxu0 %v279
  %527 = vmatmul.mubr.bf16.gmra.mxu0 %v278
  %v528 = vpop.f32.mrf.mxu0
  %v529 = vadd.f32 %v124, %v528
  %v530 = vpop.f32.mrf.mxu0
  %v531 = vpop.f32.mrf.mxu0
  %v532 = vadd.f32 %v124, %v531
  %v533 = vpop.f32.mrf.mxu0
  %534 = vmatprep.mubr.bf16.mxu0 %v281
  %535 = vmatmul.mubr.bf16.gmra.mxu0 %v280
  %v536 = vpop.f32.mrf.mxu0
  %v537 = vadd.f32 %v124, %v536
  %v538 = vpop.f32.mrf.mxu0
  %v539 = vpop.f32.mrf.mxu0
  %v540 = vadd.f32 %v124, %v539
  %v541 = vpop.f32.mrf.mxu0
  %542 = vmatprep.mubr.bf16.mxu0 %v283
  %543 = vmatmul.mubr.bf16.gmra.mxu0 %v282
  %v544 = vpop.f32.mrf.mxu0
  %v545 = vadd.f32 %v124, %v544
  %v546 = vpop.f32.mrf.mxu0
  %v547 = vpop.f32.mrf.mxu0
  %v548 = vadd.f32 %v124, %v547
  %v549 = vpop.f32.mrf.mxu0
  %550 = vmatprep.mubr.bf16.mxu0 %v285
  %551 = vmatmul.mubr.bf16.gmra.mxu0 %v284
  %v552 = vpop.f32.mrf.mxu0
  %v553 = vadd.f32 %v124, %v552
  %v554 = vpop.f32.mrf.mxu0
  %v555 = vpop.f32.mrf.mxu0
  %v556 = vadd.f32 %v124, %v555
  %v557 = vpop.f32.mrf.mxu0
  %558 = vmatprep.mubr.bf16.mxu0 %v287
  %559 = vmatmul.mubr.bf16.gmra.mxu0 %v286
  %v560 = vpop.f32.mrf.mxu0
  %v561 = vadd.f32 %v124, %v560
  %v562 = vpop.f32.mrf.mxu0
  %v563 = vpop.f32.mrf.mxu0
  %v564 = vadd.f32 %v124, %v563
  %v565 = vpop.f32.mrf.mxu0
  %566 = vmatprep.mubr.bf16.mxu0 %v289
  %567 = vmatmul.mubr.bf16.gmra.mxu0 %v288
  %v568 = vpop.f32.mrf.mxu0
  %v569 = vadd.f32 %v124, %v568
  %v570 = vpop.f32.mrf.mxu0
  %v571 = vpop.f32.mrf.mxu0
  %v572 = vadd.f32 %v124, %v571
  %v573 = vpop.f32.mrf.mxu0
  %574 = vmatprep.mubr.bf16.mxu0 %v291
  %575 = vmatmul.mubr.bf16.gmra.mxu0 %v290
  %v576 = vpop.f32.mrf.mxu0
  %v577 = vadd.f32 %v124, %v576
  %v578 = vpop.f32.mrf.mxu0
  %v579 = vpop.f32.mrf.mxu0
  %v580 = vadd.f32 %v124, %v579
  %v581 = vpop.f32.mrf.mxu0
  %582 = vmatprep.mubr.bf16.mxu0 %v293
  %583 = vmatmul.mubr.bf16.gmra.mxu0 %v292
  %v584 = vpop.f32.mrf.mxu0
  %v585 = vadd.f32 %v124, %v584
  %v586 = vpop.f32.mrf.mxu0
  %v587 = vpop.f32.mrf.mxu0
  %v588 = vadd.f32 %v124, %v587
  %v589 = vpop.f32.mrf.mxu0
  %590 = vmatprep.mubr.bf16.mxu0 %v295
  %591 = vmatmul.mubr.bf16.gmra.mxu0 %v294
  %v592 = vpop.f32.mrf.mxu0
  %v593 = vadd.f32 %v124, %v592
  %v594 = vpop.f32.mrf.mxu0
  %v595 = vpop.f32.mrf.mxu0
  %v596 = vadd.f32 %v124, %v595
  %v597 = vpop.f32.mrf.mxu0
  %598 = vmatprep.mubr.bf16.mxu0 %v297
  %599 = vmatmul.mubr.bf16.gmra.mxu0 %v296
  %v600 = vpop.f32.mrf.mxu0
  %v601 = vadd.f32 %v124, %v600
  %v602 = vpop.f32.mrf.mxu0
  %v603 = vpop.f32.mrf.mxu0
  %v604 = vadd.f32 %v124, %v603
  %v605 = vpop.f32.mrf.mxu0
  %606 = vmatprep.mubr.bf16.mxu0 %v299
  %607 = vmatmul.mubr.bf16.gmra.mxu0 %v298
  %v608 = vpop.f32.mrf.mxu0
  %v609 = vadd.f32 %v124, %v608
  %v610 = vpop.f32.mrf.mxu0
  %v611 = vpop.f32.mrf.mxu0
  %v612 = vadd.f32 %v124, %v611
  %v613 = vpop.f32.mrf.mxu0
  %614 = vmatprep.mubr.bf16.mxu0 %v301
  %615 = vmatmul.mubr.bf16.gmra.mxu0 %v300
  %v616 = vpop.f32.mrf.mxu0
  %v617 = vadd.f32 %v124, %v616
  %v618 = vpop.f32.mrf.mxu0
  %v619 = vpop.f32.mrf.mxu0
  %v620 = vadd.f32 %v124, %v619
  %v621 = vpop.f32.mrf.mxu0
  %622 = vmatprep.mubr.bf16.mxu0 %v303
  %623 = vmatmul.mubr.bf16.gmra.mxu0 %v302
  %v624 = vpop.f32.mrf.mxu0
  %v625 = vadd.f32 %v124, %v624
  %v626 = vpop.f32.mrf.mxu0
  %v627 = vpop.f32.mrf.mxu0
  %v628 = vadd.f32 %v124, %v627
  %v629 = vpop.f32.mrf.mxu0
  %630 = vmatprep.mubr.bf16.mxu0 %v305
  %631 = vmatmul.mubr.bf16.gmra.mxu0 %v304
  %v632 = vpop.f32.mrf.mxu0
  %v633 = vadd.f32 %v124, %v632
  %v634 = vpop.f32.mrf.mxu0
  %v635 = vpop.f32.mrf.mxu0
  %v636 = vadd.f32 %v124, %v635
  %v637 = vpop.f32.mrf.mxu0
  %638 = vmatprep.mubr.bf16.mxu0 %v307
  %639 = vmatmul.mubr.bf16.gmra.mxu0 %v306
  %v640 = vpop.f32.mrf.mxu0
  %v641 = vadd.f32 %v124, %v640
  %v642 = vpop.f32.mrf.mxu0
  %v643 = vpop.f32.mrf.mxu0
  %v644 = vadd.f32 %v124, %v643
  %v645 = vpop.f32.mrf.mxu0
  %646 = vmatprep.mubr.bf16.mxu0 %v309
  %647 = vmatmul.mubr.bf16.gmra.mxu0 %v308
  %v648 = vpop.f32.mrf.mxu0
  %v649 = vadd.f32 %v124, %v648
  %v650 = vpop.f32.mrf.mxu0
  %v651 = vpop.f32.mrf.mxu0
  %v652 = vadd.f32 %v124, %v651
  %v653 = vpop.f32.mrf.mxu0
  %654 = vmatprep.mubr.bf16.mxu0 %v311
  %655 = vmatmul.mubr.bf16.gmra.mxu0 %v310
  %v656 = vpop.f32.mrf.mxu0
  %v657 = vadd.f32 %v124, %v656
  %v658 = vpop.f32.mrf.mxu0
  %v659 = vpop.f32.mrf.mxu0
  %v660 = vadd.f32 %v124, %v659
  %v661 = vpop.f32.mrf.mxu0
  %662 = vmatprep.mubr.bf16.mxu0 %v313
  %663 = vmatmul.mubr.bf16.gmra.mxu0 %v312
  %v664 = vpop.f32.mrf.mxu0
  %v665 = vadd.f32 %v124, %v664
  %v666 = vpop.f32.mrf.mxu0
  %v667 = vpop.f32.mrf.mxu0
  %v668 = vadd.f32 %v124, %v667
  %v669 = vpop.f32.mrf.mxu0
  %670 = vmatprep.mubr.bf16.mxu0 %v315
  %671 = vmatmul.mubr.bf16.gmra.mxu0 %v314
  %v672 = vpop.f32.mrf.mxu0
  %v673 = vadd.f32 %v124, %v672
  %v674 = vpop.f32.mrf.mxu0
  %v675 = vpop.f32.mrf.mxu0
  %v676 = vadd.f32 %v124, %v675
  %v677 = vpop.f32.mrf.mxu0
  %678 = vmatprep.mubr.bf16.mxu0 %v317
  %679 = vmatmul.mubr.bf16.gmra.mxu0 %v316
  %v680 = vpop.f32.mrf.mxu0
  %v681 = vadd.f32 %v124, %v680
  %v682 = vpop.f32.mrf.mxu0
  %v683 = vpop.f32.mrf.mxu0
  %v684 = vadd.f32 %v124, %v683
  %v685 = vpop.f32.mrf.mxu0
  %686 = vdwg.mxu0
  %v687 = vmax.f32 %v497, 0.0
  %v688 = vmax.f32 %v500, 0.0
  %v689 = vmax.f32 %v505, 0.0
  %v690 = vmax.f32 %v508, 0.0
  %v691 = vmax.f32 %v513, 0.0
  %v692 = vmax.f32 %v516, 0.0
  %v693 = vmax.f32 %v521, 0.0
  %v694 = vmax.f32 %v524, 0.0
  %v695 = vmax.f32 %v529, 0.0
  %v696 = vmax.f32 %v532, 0.0
  %v697 = vmax.f32 %v537, 0.0
  %v698 = vmax.f32 %v540, 0.0
  %v699 = vmax.f32 %v545, 0.0
  %v700 = vmax.f32 %v548, 0.0
  %v701 = vmax.f32 %v553, 0.0
  %v702 = vmax.f32 %v556, 0.0
  %v703 = vmax.f32 %v561, 0.0
  %v704 = vmax.f32 %v564, 0.0
  %v705 = vmax.f32 %v569, 0.0
  %v706 = vmax.f32 %v572, 0.0
  %v707 = vmax.f32 %v577, 0.0
  %v708 = vmax.f32 %v580, 0.0
  %v709 = vmax.f32 %v585, 0.0
  %v710 = vmax.f32 %v588, 0.0
  %v711 = vmax.f32 %v593, 0.0
  %v712 = vmax.f32 %v596, 0.0
  %v713 = vmax.f32 %v601, 0.0
  %v714 = vmax.f32 %v604, 0.0
  %v715 = vmax.f32 %v609, 0.0
  %v716 = vmax.f32 %v612, 0.0
  %v717 = vmax.f32 %v617, 0.0
  %v718 = vmax.f32 %v620, 0.0
  %v719 = vmax.f32 %v625, 0.0
  %v720 = vmax.f32 %v628, 0.0
  %v721 = vmax.f32 %v633, 0.0
  %v722 = vmax.f32 %v636, 0.0
  %v723 = vmax.f32 %v641, 0.0
  %v724 = vmax.f32 %v644, 0.0
  %v725 = vmax.f32 %v649, 0.0
  %v726 = vmax.f32 %v652, 0.0
  %v727 = vmax.f32 %v657, 0.0
  %v728 = vmax.f32 %v660, 0.0
  %v729 = vmax.f32 %v665, 0.0
  %v730 = vmax.f32 %v668, 0.0
  %v731 = vmax.f32 %v673, 0.0
  %v732 = vmax.f32 %v676, 0.0
  %v733 = vmax.f32 %v681, 0.0
  %v734 = vmax.f32 %v684, 0.0
  %v735 = vpack.c.bf16 %v688, %v687
  %v736 = vpack.c.bf16 %v690, %v689
  %v737 = vpack.c.bf16 %v692, %v691
  %v738 = vpack.c.bf16 %v694, %v693
  %v739 = vpack.c.bf16 %v696, %v695
  %v740 = vpack.c.bf16 %v698, %v697
  %v741 = vpack.c.bf16 %v700, %v699
  %v742 = vpack.c.bf16 %v702, %v701
  %v743 = vpack.c.bf16 %v704, %v703
  %v744 = vpack.c.bf16 %v706, %v705
  %v745 = vpack.c.bf16 %v708, %v707
  %v746 = vpack.c.bf16 %v710, %v709
  %v747 = vpack.c.bf16 %v712, %v711
  %v748 = vpack.c.bf16 %v714, %v713
  %v749 = vpack.c.bf16 %v716, %v715
  %v750 = vpack.c.bf16 %v718, %v717
  %v751 = vpack.c.bf16 %v720, %v719
  %v752 = vpack.c.bf16 %v722, %v721
  %v753 = vpack.c.bf16 %v724, %v723
  %v754 = vpack.c.bf16 %v726, %v725
  %v755 = vpack.c.bf16 %v728, %v727
  %v756 = vpack.c.bf16 %v730, %v729
  %v757 = vpack.c.bf16 %v732, %v731
  %v758 = vpack.c.bf16 %v734, %v733
  %v759 = vld [vmem:[%s3] sm:$0xf]
  %v760 = vld [vmem:[%s3 + $0x4] sm:$0xf]
  %v761 = vld [vmem:[%s3 + $0x8] sm:$0xf]
  %v762 = vld [vmem:[%s3 + $0xc] sm:$0xf]
  %v763 = vld [vmem:[%s3 + $0x10] sm:$0xf]
  %v764 = vld [vmem:[%s3 + $0x14] sm:$0xf]
  %v765 = vld [vmem:[%s3 + $0x18] sm:$0xf]
  %v766 = vld [vmem:[%s3 + $0x1c] sm:$0xf]
  %v767 = vld [vmem:[%s3 + $0x20] sm:$0xf]
  %v768 = vld [vmem:[%s3 + $0x24] sm:$0xf]
  %v769 = vld [vmem:[%s3 + $0x28] sm:$0xf]
  %v770 = vld [vmem:[%s3 + $0x2c] sm:$0xf]
  %v771 = vld [vmem:[%s3 + $0x30] sm:$0xf]
  %v772 = vld [vmem:[%s3 + $0x34] sm:$0xf]
  %v773 = vld [vmem:[%s3 + $0x38] sm:$0xf]
  %v774 = vld [vmem:[%s3 + $0x3c] sm:$0xf]
  %v775 = vld [vmem:[%s3 + $0x40] sm:$0xf]
  %v776 = vld [vmem:[%s3 + $0x44] sm:$0xf]
  %v777 = vld [vmem:[%s3 + $0x48] sm:$0xf]
  %v778 = vld [vmem:[%s3 + $0x4c] sm:$0xf]
  %v779 = vld [vmem:[%s3 + $0x50] sm:$0xf]
  %v780 = vld [vmem:[%s3 + $0x54] sm:$0xf]
  %v781 = vld [vmem:[%s3 + $0x58] sm:$0xf]
  %v782 = vld [vmem:[%s3 + $0x5c] sm:$0xf]
  %v783 = vld [vmem:[%s3 + $0x60] sm:$0xf]
  %v784 = vld [vmem:[%s3 + $0x64] sm:$0xf]
  %v785 = vld [vmem:[%s3 + $0x68] sm:$0xf]
  %v786 = vld [vmem:[%s3 + $0x6c] sm:$0xf]
  %v787 = vld [vmem:[%s3 + $0x70] sm:$0xf]
  %v788 = vld [vmem:[%s3 + $0x74] sm:$0xf]
  %v789 = vld [vmem:[%s3 + $0x78] sm:$0xf]
  %v790 = vld [vmem:[%s3 + $0x7c] sm:$0xf]
  %v791 = vld [vmem:[%s3 + $0x80] sm:$0xf]
  %v792 = vld [vmem:[%s3 + $0x84] sm:$0xf]
  %v793 = vld [vmem:[%s3 + $0x88] sm:$0xf]
  %v794 = vld [vmem:[%s3 + $0x8c] sm:$0xf]
  %v795 = vld [vmem:[%s3 + $0x90] sm:$0xf]
  %v796 = vld [vmem:[%s3 + $0x94] sm:$0xf]
  %v797 = vld [vmem:[%s3 + $0x98] sm:$0xf]
  %v798 = vld [vmem:[%s3 + $0x9c] sm:$0xf]
  %v799 = vld [vmem:[%s3 + $0xa0] sm:$0xf]
  %v800 = vld [vmem:[%s3 + $0xa4] sm:$0xf]
  %v801 = vld [vmem:[%s3 + $0xa8] sm:$0xf]
  %v802 = vld [vmem:[%s3 + $0xac] sm:$0xf]
  %v803 = vld [vmem:[%s3 + $0xb0] sm:$0xf]
  %v804 = vld [vmem:[%s3 + $0xb4] sm:$0xf]
  %v805 = vld [vmem:[%s3 + $0xb8] sm:$0xf]
  %v806 = vld [vmem:[%s3 + $0xbc] sm:$0xf]
  %v807 = vld [vmem:[%s3 + $0xc0] sm:$0xf]
  %v808 = vld [vmem:[%s3 + $0xc4] sm:$0xf]
  %v809 = vld [vmem:[%s3 + $0xc8] sm:$0xf]
  %v810 = vld [vmem:[%s3 + $0xcc] sm:$0xf]
  %v811 = vld [vmem:[%s3 + $0xd0] sm:$0xf]
  %v812 = vld [vmem:[%s3 + $0xd4] sm:$0xf]
  %v813 = vld [vmem:[%s3 + $0xd8] sm:$0xf]
  %v814 = vld [vmem:[%s3 + $0xdc] sm:$0xf]
  %v815 = vld [vmem:[%s3 + $0xe0] sm:$0xf]
  %v816 = vld [vmem:[%s3 + $0xe4] sm:$0xf]
  %v817 = vld [vmem:[%s3 + $0xe8] sm:$0xf]
  %v818 = vld [vmem:[%s3 + $0xec] sm:$0xf]
  %v819 = vld [vmem:[%s3 + $0xf0] sm:$0xf]
  %v820 = vld [vmem:[%s3 + $0xf4] sm:$0xf]
  %v821 = vld [vmem:[%s3 + $0xf8] sm:$0xf]
  %v822 = vld [vmem:[%s3 + $0xfc] sm:$0xf]
  %vm825 = vcmask 1043456
  %v826 = vrot.slane %v736, 4
  %v827 = vrot.slane %v737, 4
  %v828 = vsel %vm825, %v826, %v827
  %v833 = vunpack.c.l.b16 %v763
  %v834 = vunpack.c.l.b16 %v764
  %v835 = vunpack.c.l.b16 %v765
  %v836 = vunpack.c.l.b16 %v766
  %v837 = vpack.c.b16 %v834, %v833
  %v838 = vpack.c.b16 %v836, %v835
  %vm841 = vcmask 261120
  %v843 = vsel %vm841, %v828, 0
  %v846 = vsel %vm841, %v827, 0
  %848 = vmatprep.subr.bf16.mxu0 0
  %849 = vmatpush1.bf16.msra.mxu0 0
  %850 = vmatprep.subr.bf16.mxu0 0
  %851 = vmatpush1.bf16.msra.mxu0 0
  %852 = vmatprep.subr.bf16.mxu0 0
  %853 = vmatpush1.bf16.msra.mxu0 0
  %854 = vmatprep.subr.bf16.mxu0 0
  %855 = vmatpush1.bf16.msra.mxu0 0
  %856 = vmatprep.subr.bf16.mxu0 0
  %857 = vmatpush1.bf16.msra.mxu0 0
  %858 = vmatprep.subr.bf16.mxu0 0
  %859 = vmatpush1.bf16.msra.mxu0 0
  %860 = vmatprep.subr.bf16.mxu0 0
  %861 = vmatpush1.bf16.msra.mxu0 %v838
  %862 = vmatprep.subr.bf16.mxu0 0
  %863 = vmatpush1.bf16.msra.mxu0 %v837
  %864 = vmatprep.subr.bf16.mxu0 0
  %865 = vmatpush2.bf16.msra.mxu0 0
  %866 = vmatprep.subr.bf16.mxu0 0
  %867 = vmatpush2.bf16.msra.mxu0 0
  %868 = vmatprep.subr.bf16.mxu0 0
  %869 = vmatpush2.bf16.msra.mxu0 0
  %870 = vmatprep.subr.bf16.mxu0 0
  %871 = vmatpush2.bf16.msra.mxu0 0
  %872 = vmatprep.subr.bf16.mxu0 0
  %873 = vmatpush2.bf16.msra.mxu0 0
  %874 = vmatprep.subr.bf16.mxu0 0
  %875 = vmatpush2.bf16.msra.mxu0 0
  %876 = vmatprep.subr.bf16.mxu0 0
  %877 = vmatpush2.bf16.msra.mxu0 0
  %878 = vmatprep.subr.bf16.mxu0 0
  %879 = vmatpush2.bf16.msra.mxu0 0
  %880 = vmatprep.mubr.bf16.mxu0 0
  %881 = vmatmul.mubr.bf16.gmra.mxu0 %v843
  %v882 = vpop.f32.mrf.mxu0
  %v883 = vadd.f32 0.0, %v882
  %v884 = vpop.f32.mrf.mxu0
  %v885 = vpop.f32.mrf.mxu0
  %v886 = vadd.f32 0.0, %v885
  %v887 = vpop.f32.mrf.mxu0
  %888 = vmatprep.mubr.bf16.mxu0 0
  %889 = vmatmul.mubr.bf16.gmra.mxu0 %v846
  %v890 = vpop.f32.mrf.mxu0
  %v891 = vadd.f32 0.0, %v890
  %v892 = vpop.f32.mrf.mxu0
  %v893 = vpop.f32.mrf.mxu0
  %v894 = vpop.f32.mrf.mxu0
  %895 = vdwg.mxu0
  %v900 = vunpack.c.l.b16 %v759
  %v901 = vunpack.c.l.b16 %v760
  %v902 = vunpack.c.l.b16 %v761
  %v903 = vunpack.c.l.b16 %v762
  %v904 = vpack.c.b16 %v901, %v900
  %v905 = vpack.c.b16 %v903, %v902
  %v909 = vsel %vm841, %v735, 0
  %v912 = vsel %vm841, %v736, 0
  %914 = vmatprep.subr.bf16.mxu0 0
  %915 = vmatpush1.bf16.msra.mxu0 0
  %916 = vmatprep.subr.bf16.mxu0 0
  %917 = vmatpush1.bf16.msra.mxu0 0
  %918 = vmatprep.subr.bf16.mxu0 0
  %919 = vmatpush1.bf16.msra.mxu0 0
  %920 = vmatprep.subr.bf16.mxu0 0
  %921 = vmatpush1.bf16.msra.mxu0 0
  %922 = vmatprep.subr.bf16.mxu0 0
  %923 = vmatpush1.bf16.msra.mxu0 0
  %924 = vmatprep.subr.bf16.mxu0 0
  %925 = vmatpush1.bf16.msra.mxu0 0
  %926 = vmatprep.subr.bf16.mxu0 0
  %927 = vmatpush1.bf16.msra.mxu0 %v905
  %928 = vmatprep.subr.bf16.mxu0 0
  %929 = vmatpush1.bf16.msra.mxu0 %v904
  %930 = vmatprep.subr.bf16.mxu0 0
  %931 = vmatpush2.bf16.msra.mxu0 0
  %932 = vmatprep.subr.bf16.mxu0 0
  %933 = vmatpush2.bf16.msra.mxu0 0
  %934 = vmatprep.subr.bf16.mxu0 0
  %935 = vmatpush2.bf16.msra.mxu0 0
  %936 = vmatprep.subr.bf16.mxu0 0
  %937 = vmatpush2.bf16.msra.mxu0 0
  %938 = vmatprep.subr.bf16.mxu0 0
  %939 = vmatpush2.bf16.msra.mxu0 0
  %940 = vmatprep.subr.bf16.mxu0 0
  %941 = vmatpush2.bf16.msra.mxu0 0
  %942 = vmatprep.subr.bf16.mxu0 0
  %943 = vmatpush2.bf16.msra.mxu0 0
  %944 = vmatprep.subr.bf16.mxu0 0
  %945 = vmatpush2.bf16.msra.mxu0 0
  %946 = vmatprep.mubr.bf16.mxu0 0
  %947 = vmatmul.mubr.bf16.gmra.mxu0 %v909
  %v948 = vpop.f32.mrf.mxu0
  %v949 = vadd.f32 %v883, %v948
  %v950 = vpop.f32.mrf.mxu0
  %v951 = vpop.f32.mrf.mxu0
  %v952 = vadd.f32 %v886, %v951
  %v953 = vpop.f32.mrf.mxu0
  %954 = vmatprep.mubr.bf16.mxu0 0
  %955 = vmatmul.mubr.bf16.gmra.mxu0 %v912
  %v956 = vpop.f32.mrf.mxu0
  %v957 = vadd.f32 %v891, %v956
  %v958 = vpop.f32.mrf.mxu0
  %v959 = vpop.f32.mrf.mxu0
  %v960 = vpop.f32.mrf.mxu0
  %961 = vdwg.mxu0
  %v966 = vunpack.c.l.b16 %v767
  %v967 = vunpack.c.l.b16 %v768
  %v968 = vunpack.c.l.b16 %v769
  %v969 = vunpack.c.l.b16 %v770
  %v970 = vpack.c.b16 %v967, %v966
  %v971 = vpack.c.b16 %v969, %v968
  %v975 = vsel %vm841, %v738, 0
  %v978 = vsel %vm841, %v739, 0
  %980 = vmatprep.subr.bf16.mxu0 0
  %981 = vmatpush1.bf16.msra.mxu0 0
  %982 = vmatprep.subr.bf16.mxu0 0
  %983 = vmatpush1.bf16.msra.mxu0 0
  %984 = vmatprep.subr.bf16.mxu0 0
  %985 = vmatpush1.bf16.msra.mxu0 0
  %986 = vmatprep.subr.bf16.mxu0 0
  %987 = vmatpush1.bf16.msra.mxu0 0
  %988 = vmatprep.subr.bf16.mxu0 0
  %989 = vmatpush1.bf16.msra.mxu0 0
  %990 = vmatprep.subr.bf16.mxu0 0
  %991 = vmatpush1.bf16.msra.mxu0 0
  %992 = vmatprep.subr.bf16.mxu0 0
  %993 = vmatpush1.bf16.msra.mxu0 %v971
  %994 = vmatprep.subr.bf16.mxu0 0
  %995 = vmatpush1.bf16.msra.mxu0 %v970
  %996 = vmatprep.subr.bf16.mxu0 0
  %997 = vmatpush2.bf16.msra.mxu0 0
  %998 = vmatprep.subr.bf16.mxu0 0
  %999 = vmatpush2.bf16.msra.mxu0 0
  %1000 = vmatprep.subr.bf16.mxu0 0
  %1001 = vmatpush2.bf16.msra.mxu0 0
  %1002 = vmatprep.subr.bf16.mxu0 0
  %1003 = vmatpush2.bf16.msra.mxu0 0
  %1004 = vmatprep.subr.bf16.mxu0 0
  %1005 = vmatpush2.bf16.msra.mxu0 0
  %1006 = vmatprep.subr.bf16.mxu0 0
  %1007 = vmatpush2.bf16.msra.mxu0 0
  %1008 = vmatprep.subr.bf16.mxu0 0
  %1009 = vmatpush2.bf16.msra.mxu0 0
  %1010 = vmatprep.subr.bf16.mxu0 0
  %1011 = vmatpush2.bf16.msra.mxu0 0
  %1012 = vmatprep.mubr.bf16.mxu0 0
  %1013 = vmatmul.mubr.bf16.gmra.mxu0 %v975
  %v1014 = vpop.f32.mrf.mxu0
  %v1015 = vadd.f32 0.0, %v1014
  %v1016 = vpop.f32.mrf.mxu0
  %v1017 = vpop.f32.mrf.mxu0
  %v1018 = vadd.f32 0.0, %v1017
  %v1019 = vpop.f32.mrf.mxu0
  %1020 = vmatprep.mubr.bf16.mxu0 0
  %1021 = vmatmul.mubr.bf16.gmra.mxu0 %v978
  %v1022 = vpop.f32.mrf.mxu0
  %v1023 = vadd.f32 0.0, %v1022
  %v1024 = vpop.f32.mrf.mxu0
  %v1025 = vpop.f32.mrf.mxu0
  %v1026 = vpop.f32.mrf.mxu0
  %1027 = vdwg.mxu0
  %v1028 = vadd.f32 %v949, %v1015
  %v1029 = vadd.f32 %v952, %v1018
  %v1030 = vadd.f32 %v957, %v1023
  %v1033 = vrot.slane %v739, 4
  %v1034 = vrot.slane %v740, 4
  %v1035 = vsel %vm825, %v1033, %v1034
  %v1040 = vunpack.c.l.b16 %v771
  %v1041 = vunpack.c.l.b16 %v772
  %v1042 = vunpack.c.l.b16 %v773
  %v1043 = vunpack.c.l.b16 %v774
  %v1044 = vpack.c.b16 %v1041, %v1040
  %v1045 = vpack.c.b16 %v1043, %v1042
  %v1049 = vsel %vm841, %v1035, 0
  %v1052 = vsel %vm841, %v1034, 0
  %1054 = vmatprep.subr.bf16.mxu0 0
  %1055 = vmatpush1.bf16.msra.mxu0 0
  %1056 = vmatprep.subr.bf16.mxu0 0
  %1057 = vmatpush1.bf16.msra.mxu0 0
  %1058 = vmatprep.subr.bf16.mxu0 0
  %1059 = vmatpush1.bf16.msra.mxu0 0
  %1060 = vmatprep.subr.bf16.mxu0 0
  %1061 = vmatpush1.bf16.msra.mxu0 0
  %1062 = vmatprep.subr.bf16.mxu0 0
  %1063 = vmatpush1.bf16.msra.mxu0 0
  %1064 = vmatprep.subr.bf16.mxu0 0
  %1065 = vmatpush1.bf16.msra.mxu0 0
  %1066 = vmatprep.subr.bf16.mxu0 0
  %1067 = vmatpush1.bf16.msra.mxu0 %v1045
  %1068 = vmatprep.subr.bf16.mxu0 0
  %1069 = vmatpush1.bf16.msra.mxu0 %v1044
  %1070 = vmatprep.subr.bf16.mxu0 0
  %1071 = vmatpush2.bf16.msra.mxu0 0
  %1072 = vmatprep.subr.bf16.mxu0 0
  %1073 = vmatpush2.bf16.msra.mxu0 0
  %1074 = vmatprep.subr.bf16.mxu0 0
  %1075 = vmatpush2.bf16.msra.mxu0 0
  %1076 = vmatprep.subr.bf16.mxu0 0
  %1077 = vmatpush2.bf16.msra.mxu0 0
  %1078 = vmatprep.subr.bf16.mxu0 0
  %1079 = vmatpush2.bf16.msra.mxu0 0
  %1080 = vmatprep.subr.bf16.mxu0 0
  %1081 = vmatpush2.bf16.msra.mxu0 0
  %1082 = vmatprep.subr.bf16.mxu0 0
  %1083 = vmatpush2.bf16.msra.mxu0 0
  %1084 = vmatprep.subr.bf16.mxu0 0
  %1085 = vmatpush2.bf16.msra.mxu0 0
  %1086 = vmatprep.mubr.bf16.mxu0 0
  %1087 = vmatmul.mubr.bf16.gmra.mxu0 %v1049
  %v1088 = vpop.f32.mrf.mxu0
  %v1089 = vadd.f32 0.0, %v1088
  %v1090 = vpop.f32.mrf.mxu0
  %v1091 = vpop.f32.mrf.mxu0
  %v1092 = vadd.f32 0.0, %v1091
  %v1093 = vpop.f32.mrf.mxu0
  %1094 = vmatprep.mubr.bf16.mxu0 0
  %1095 = vmatmul.mubr.bf16.gmra.mxu0 %v1052
  %v1096 = vpop.f32.mrf.mxu0
  %v1097 = vadd.f32 0.0, %v1096
  %v1098 = vpop.f32.mrf.mxu0
  %v1099 = vpop.f32.mrf.mxu0
  %v1100 = vpop.f32.mrf.mxu0
  %1101 = vdwg.mxu0
  %v1102 = vadd.f32 %v1028, %v1089
  %v1103 = vadd.f32 %v1029, %v1092
  %v1104 = vadd.f32 %v1030, %v1097
  %v1109 = vunpack.c.l.b16 %v775
  %v1110 = vunpack.c.l.b16 %v776
  %v1111 = vunpack.c.l.b16 %v777
  %v1112 = vunpack.c.l.b16 %v778
  %v1113 = vpack.c.b16 %v1110, %v1109
  %v1114 = vpack.c.b16 %v1112, %v1111
  %v1118 = vsel %vm841, %v741, 0
  %v1121 = vsel %vm841, %v742, 0
  %1123 = vmatprep.subr.bf16.mxu0 0
  %1124 = vmatpush1.bf16.msra.mxu0 0
  %1125 = vmatprep.subr.bf16.mxu0 0
  %1126 = vmatpush1.bf16.msra.mxu0 0
  %1127 = vmatprep.subr.bf16.mxu0 0
  %1128 = vmatpush1.bf16.msra.mxu0 0
  %1129 = vmatprep.subr.bf16.mxu0 0
  %1130 = vmatpush1.bf16.msra.mxu0 0
  %1131 = vmatprep.subr.bf16.mxu0 0
  %1132 = vmatpush1.bf16.msra.mxu0 0
  %1133 = vmatprep.subr.bf16.mxu0 0
  %1134 = vmatpush1.bf16.msra.mxu0 0
  %1135 = vmatprep.subr.bf16.mxu0 0
  %1136 = vmatpush1.bf16.msra.mxu0 %v1114
  %1137 = vmatprep.subr.bf16.mxu0 0
  %1138 = vmatpush1.bf16.msra.mxu0 %v1113
  %1139 = vmatprep.subr.bf16.mxu0 0
  %1140 = vmatpush2.bf16.msra.mxu0 0
  %1141 = vmatprep.subr.bf16.mxu0 0
  %1142 = vmatpush2.bf16.msra.mxu0 0
  %1143 = vmatprep.subr.bf16.mxu0 0
  %1144 = vmatpush2.bf16.msra.mxu0 0
  %1145 = vmatprep.subr.bf16.mxu0 0
  %1146 = vmatpush2.bf16.msra.mxu0 0
  %1147 = vmatprep.subr.bf16.mxu0 0
  %1148 = vmatpush2.bf16.msra.mxu0 0
  %1149 = vmatprep.subr.bf16.mxu0 0
  %1150 = vmatpush2.bf16.msra.mxu0 0
  %1151 = vmatprep.subr.bf16.mxu0 0
  %1152 = vmatpush2.bf16.msra.mxu0 0
  %1153 = vmatprep.subr.bf16.mxu0 0
  %1154 = vmatpush2.bf16.msra.mxu0 0
  %1155 = vmatprep.mubr.bf16.mxu0 0
  %1156 = vmatmul.mubr.bf16.gmra.mxu0 %v1118
  %v1157 = vpop.f32.mrf.mxu0
  %v1158 = vadd.f32 0.0, %v1157
  %v1159 = vpop.f32.mrf.mxu0
  %v1160 = vpop.f32.mrf.mxu0
  %v1161 = vadd.f32 0.0, %v1160
  %v1162 = vpop.f32.mrf.mxu0
  %1163 = vmatprep.mubr.bf16.mxu0 0
  %1164 = vmatmul.mubr.bf16.gmra.mxu0 %v1121
  %v1165 = vpop.f32.mrf.mxu0
  %v1166 = vadd.f32 0.0, %v1165
  %v1167 = vpop.f32.mrf.mxu0
  %v1168 = vpop.f32.mrf.mxu0
  %v1169 = vpop.f32.mrf.mxu0
  %1170 = vdwg.mxu0
  %v1171 = vadd.f32 %v1102, %v1158
  %v1172 = vadd.f32 %v1103, %v1161
  %v1173 = vadd.f32 %v1104, %v1166
  %v1176 = vrot.slane %v742, 4
  %v1177 = vrot.slane %v743, 4
  %v1178 = vsel %vm825, %v1176, %v1177
  %v1183 = vunpack.c.l.b16 %v779
  %v1184 = vunpack.c.l.b16 %v780
  %v1185 = vunpack.c.l.b16 %v781
  %v1186 = vunpack.c.l.b16 %v782
  %v1187 = vpack.c.b16 %v1184, %v1183
  %v1188 = vpack.c.b16 %v1186, %v1185
  %v1192 = vsel %vm841, %v1178, 0
  %v1195 = vsel %vm841, %v1177, 0
  %1197 = vmatprep.subr.bf16.mxu0 0
  %1198 = vmatpush1.bf16.msra.mxu0 0
  %1199 = vmatprep.subr.bf16.mxu0 0
  %1200 = vmatpush1.bf16.msra.mxu0 0
  %1201 = vmatprep.subr.bf16.mxu0 0
  %1202 = vmatpush1.bf16.msra.mxu0 0
  %1203 = vmatprep.subr.bf16.mxu0 0
  %1204 = vmatpush1.bf16.msra.mxu0 0
  %1205 = vmatprep.subr.bf16.mxu0 0
  %1206 = vmatpush1.bf16.msra.mxu0 0
  %1207 = vmatprep.subr.bf16.mxu0 0
  %1208 = vmatpush1.bf16.msra.mxu0 0
  %1209 = vmatprep.subr.bf16.mxu0 0
  %1210 = vmatpush1.bf16.msra.mxu0 %v1188
  %1211 = vmatprep.subr.bf16.mxu0 0
  %1212 = vmatpush1.bf16.msra.mxu0 %v1187
  %1213 = vmatprep.subr.bf16.mxu0 0
  %1214 = vmatpush2.bf16.msra.mxu0 0
  %1215 = vmatprep.subr.bf16.mxu0 0
  %1216 = vmatpush2.bf16.msra.mxu0 0
  %1217 = vmatprep.subr.bf16.mxu0 0
  %1218 = vmatpush2.bf16.msra.mxu0 0
  %1219 = vmatprep.subr.bf16.mxu0 0
  %1220 = vmatpush2.bf16.msra.mxu0 0
  %1221 = vmatprep.subr.bf16.mxu0 0
  %1222 = vmatpush2.bf16.msra.mxu0 0
  %1223 = vmatprep.subr.bf16.mxu0 0
  %1224 = vmatpush2.bf16.msra.mxu0 0
  %1225 = vmatprep.subr.bf16.mxu0 0
  %1226 = vmatpush2.bf16.msra.mxu0 0
  %1227 = vmatprep.subr.bf16.mxu0 0
  %1228 = vmatpush2.bf16.msra.mxu0 0
  %1229 = vmatprep.mubr.bf16.mxu0 0
  %1230 = vmatmul.mubr.bf16.gmra.mxu0 %v1192
  %v1231 = vpop.f32.mrf.mxu0
  %v1232 = vadd.f32 0.0, %v1231
  %v1233 = vpop.f32.mrf.mxu0
  %v1234 = vpop.f32.mrf.mxu0
  %v1235 = vadd.f32 0.0, %v1234
  %v1236 = vpop.f32.mrf.mxu0
  %1237 = vmatprep.mubr.bf16.mxu0 0
  %1238 = vmatmul.mubr.bf16.gmra.mxu0 %v1195
  %v1239 = vpop.f32.mrf.mxu0
  %v1240 = vadd.f32 0.0, %v1239
  %v1241 = vpop.f32.mrf.mxu0
  %v1242 = vpop.f32.mrf.mxu0
  %v1243 = vpop.f32.mrf.mxu0
  %1244 = vdwg.mxu0
  %v1245 = vadd.f32 %v1171, %v1232
  %v1246 = vadd.f32 %v1172, %v1235
  %v1247 = vadd.f32 %v1173, %v1240
  %v1252 = vunpack.c.l.b16 %v783
  %v1253 = vunpack.c.l.b16 %v784
  %v1254 = vunpack.c.l.b16 %v785
  %v1255 = vunpack.c.l.b16 %v786
  %v1256 = vpack.c.b16 %v1253, %v1252
  %v1257 = vpack.c.b16 %v1255, %v1254
  %v1261 = vsel %vm841, %v744, 0
  %v1264 = vsel %vm841, %v745, 0
  %1266 = vmatprep.subr.bf16.mxu0 0
  %1267 = vmatpush1.bf16.msra.mxu0 0
  %1268 = vmatprep.subr.bf16.mxu0 0
  %1269 = vmatpush1.bf16.msra.mxu0 0
  %1270 = vmatprep.subr.bf16.mxu0 0
  %1271 = vmatpush1.bf16.msra.mxu0 0
  %1272 = vmatprep.subr.bf16.mxu0 0
  %1273 = vmatpush1.bf16.msra.mxu0 0
  %1274 = vmatprep.subr.bf16.mxu0 0
  %1275 = vmatpush1.bf16.msra.mxu0 0
  %1276 = vmatprep.subr.bf16.mxu0 0
  %1277 = vmatpush1.bf16.msra.mxu0 0
  %1278 = vmatprep.subr.bf16.mxu0 0
  %1279 = vmatpush1.bf16.msra.mxu0 %v1257
  %1280 = vmatprep.subr.bf16.mxu0 0
  %1281 = vmatpush1.bf16.msra.mxu0 %v1256
  %1282 = vmatprep.subr.bf16.mxu0 0
  %1283 = vmatpush2.bf16.msra.mxu0 0
  %1284 = vmatprep.subr.bf16.mxu0 0
  %1285 = vmatpush2.bf16.msra.mxu0 0
  %1286 = vmatprep.subr.bf16.mxu0 0
  %1287 = vmatpush2.bf16.msra.mxu0 0
  %1288 = vmatprep.subr.bf16.mxu0 0
  %1289 = vmatpush2.bf16.msra.mxu0 0
  %1290 = vmatprep.subr.bf16.mxu0 0
  %1291 = vmatpush2.bf16.msra.mxu0 0
  %1292 = vmatprep.subr.bf16.mxu0 0
  %1293 = vmatpush2.bf16.msra.mxu0 0
  %1294 = vmatprep.subr.bf16.mxu0 0
  %1295 = vmatpush2.bf16.msra.mxu0 0
  %1296 = vmatprep.subr.bf16.mxu0 0
  %1297 = vmatpush2.bf16.msra.mxu0 0
  %1298 = vmatprep.mubr.bf16.mxu0 0
  %1299 = vmatmul.mubr.bf16.gmra.mxu0 %v1261
  %v1300 = vpop.f32.mrf.mxu0
  %v1301 = vadd.f32 0.0, %v1300
  %v1302 = vpop.f32.mrf.mxu0
  %v1303 = vpop.f32.mrf.mxu0
  %v1304 = vadd.f32 0.0, %v1303
  %v1305 = vpop.f32.mrf.mxu0
  %1306 = vmatprep.mubr.bf16.mxu0 0
  %1307 = vmatmul.mubr.bf16.gmra.mxu0 %v1264
  %v1308 = vpop.f32.mrf.mxu0
  %v1309 = vadd.f32 0.0, %v1308
  %v1310 = vpop.f32.mrf.mxu0
  %v1311 = vpop.f32.mrf.mxu0
  %v1312 = vpop.f32.mrf.mxu0
  %1313 = vdwg.mxu0
  %v1314 = vadd.f32 %v1245, %v1301
  %v1315 = vadd.f32 %v1246, %v1304
  %v1316 = vadd.f32 %v1247, %v1309
  %v1319 = vrot.slane %v745, 4
  %v1320 = vrot.slane %v746, 4
  %v1321 = vsel %vm825, %v1319, %v1320
  %v1326 = vunpack.c.l.b16 %v787
  %v1327 = vunpack.c.l.b16 %v788
  %v1328 = vunpack.c.l.b16 %v789
  %v1329 = vunpack.c.l.b16 %v790
  %v1330 = vpack.c.b16 %v1327, %v1326
  %v1331 = vpack.c.b16 %v1329, %v1328
  %v1335 = vsel %vm841, %v1321, 0
  %v1338 = vsel %vm841, %v1320, 0
  %1340 = vmatprep.subr.bf16.mxu0 0
  %1341 = vmatpush1.bf16.msra.mxu0 0
  %1342 = vmatprep.subr.bf16.mxu0 0
  %1343 = vmatpush1.bf16.msra.mxu0 0
  %1344 = vmatprep.subr.bf16.mxu0 0
  %1345 = vmatpush1.bf16.msra.mxu0 0
  %1346 = vmatprep.subr.bf16.mxu0 0
  %1347 = vmatpush1.bf16.msra.mxu0 0
  %1348 = vmatprep.subr.bf16.mxu0 0
  %1349 = vmatpush1.bf16.msra.mxu0 0
  %1350 = vmatprep.subr.bf16.mxu0 0
  %1351 = vmatpush1.bf16.msra.mxu0 0
  %1352 = vmatprep.subr.bf16.mxu0 0
  %1353 = vmatpush1.bf16.msra.mxu0 %v1331
  %1354 = vmatprep.subr.bf16.mxu0 0
  %1355 = vmatpush1.bf16.msra.mxu0 %v1330
  %1356 = vmatprep.subr.bf16.mxu0 0
  %1357 = vmatpush2.bf16.msra.mxu0 0
  %1358 = vmatprep.subr.bf16.mxu0 0
  %1359 = vmatpush2.bf16.msra.mxu0 0
  %1360 = vmatprep.subr.bf16.mxu0 0
  %1361 = vmatpush2.bf16.msra.mxu0 0
  %1362 = vmatprep.subr.bf16.mxu0 0
  %1363 = vmatpush2.bf16.msra.mxu0 0
  %1364 = vmatprep.subr.bf16.mxu0 0
  %1365 = vmatpush2.bf16.msra.mxu0 0
  %1366 = vmatprep.subr.bf16.mxu0 0
  %1367 = vmatpush2.bf16.msra.mxu0 0
  %1368 = vmatprep.subr.bf16.mxu0 0
  %1369 = vmatpush2.bf16.msra.mxu0 0
  %1370 = vmatprep.subr.bf16.mxu0 0
  %1371 = vmatpush2.bf16.msra.mxu0 0
  %1372 = vmatprep.mubr.bf16.mxu0 0
  %1373 = vmatmul.mubr.bf16.gmra.mxu0 %v1335
  %v1374 = vpop.f32.mrf.mxu0
  %v1375 = vadd.f32 0.0, %v1374
  %v1376 = vpop.f32.mrf.mxu0
  %v1377 = vpop.f32.mrf.mxu0
  %v1378 = vadd.f32 0.0, %v1377
  %v1379 = vpop.f32.mrf.mxu0
  %1380 = vmatprep.mubr.bf16.mxu0 0
  %1381 = vmatmul.mubr.bf16.gmra.mxu0 %v1338
  %v1382 = vpop.f32.mrf.mxu0
  %v1383 = vadd.f32 0.0, %v1382
  %v1384 = vpop.f32.mrf.mxu0
  %v1385 = vpop.f32.mrf.mxu0
  %v1386 = vpop.f32.mrf.mxu0
  %1387 = vdwg.mxu0
  %v1388 = vadd.f32 %v1314, %v1375
  %v1389 = vadd.f32 %v1315, %v1378
  %v1390 = vadd.f32 %v1316, %v1383
  %v1395 = vunpack.c.l.b16 %v791
  %v1396 = vunpack.c.l.b16 %v792
  %v1397 = vunpack.c.l.b16 %v793
  %v1398 = vunpack.c.l.b16 %v794
  %v1399 = vpack.c.b16 %v1396, %v1395
  %v1400 = vpack.c.b16 %v1398, %v1397
  %v1404 = vsel %vm841, %v747, 0
  %v1407 = vsel %vm841, %v748, 0
  %1409 = vmatprep.subr.bf16.mxu0 0
  %1410 = vmatpush1.bf16.msra.mxu0 0
  %1411 = vmatprep.subr.bf16.mxu0 0
  %1412 = vmatpush1.bf16.msra.mxu0 0
  %1413 = vmatprep.subr.bf16.mxu0 0
  %1414 = vmatpush1.bf16.msra.mxu0 0
  %1415 = vmatprep.subr.bf16.mxu0 0
  %1416 = vmatpush1.bf16.msra.mxu0 0
  %1417 = vmatprep.subr.bf16.mxu0 0
  %1418 = vmatpush1.bf16.msra.mxu0 0
  %1419 = vmatprep.subr.bf16.mxu0 0
  %1420 = vmatpush1.bf16.msra.mxu0 0
  %1421 = vmatprep.subr.bf16.mxu0 0
  %1422 = vmatpush1.bf16.msra.mxu0 %v1400
  %1423 = vmatprep.subr.bf16.mxu0 0
  %1424 = vmatpush1.bf16.msra.mxu0 %v1399
  %1425 = vmatprep.subr.bf16.mxu0 0
  %1426 = vmatpush2.bf16.msra.mxu0 0
  %1427 = vmatprep.subr.bf16.mxu0 0
  %1428 = vmatpush2.bf16.msra.mxu0 0
  %1429 = vmatprep.subr.bf16.mxu0 0
  %1430 = vmatpush2.bf16.msra.mxu0 0
  %1431 = vmatprep.subr.bf16.mxu0 0
  %1432 = vmatpush2.bf16.msra.mxu0 0
  %1433 = vmatprep.subr.bf16.mxu0 0
  %1434 = vmatpush2.bf16.msra.mxu0 0
  %1435 = vmatprep.subr.bf16.mxu0 0
  %1436 = vmatpush2.bf16.msra.mxu0 0
  %1437 = vmatprep.subr.bf16.mxu0 0
  %1438 = vmatpush2.bf16.msra.mxu0 0
  %1439 = vmatprep.subr.bf16.mxu0 0
  %1440 = vmatpush2.bf16.msra.mxu0 0
  %1441 = vmatprep.mubr.bf16.mxu0 0
  %1442 = vmatmul.mubr.bf16.gmra.mxu0 %v1404
  %v1443 = vpop.f32.mrf.mxu0
  %v1444 = vadd.f32 0.0, %v1443
  %v1445 = vpop.f32.mrf.mxu0
  %v1446 = vpop.f32.mrf.mxu0
  %v1447 = vadd.f32 0.0, %v1446
  %v1448 = vpop.f32.mrf.mxu0
  %1449 = vmatprep.mubr.bf16.mxu0 0
  %1450 = vmatmul.mubr.bf16.gmra.mxu0 %v1407
  %v1451 = vpop.f32.mrf.mxu0
  %v1452 = vadd.f32 0.0, %v1451
  %v1453 = vpop.f32.mrf.mxu0
  %v1454 = vpop.f32.mrf.mxu0
  %v1455 = vpop.f32.mrf.mxu0
  %1456 = vdwg.mxu0
  %v1457 = vadd.f32 %v1388, %v1444
  %v1458 = vadd.f32 %v1389, %v1447
  %v1459 = vadd.f32 %v1390, %v1452
  %v1462 = vrot.slane %v748, 4
  %v1463 = vrot.slane %v749, 4
  %v1464 = vsel %vm825, %v1462, %v1463
  %v1469 = vunpack.c.l.b16 %v795
  %v1470 = vunpack.c.l.b16 %v796
  %v1471 = vunpack.c.l.b16 %v797
  %v1472 = vunpack.c.l.b16 %v798
  %v1473 = vpack.c.b16 %v1470, %v1469
  %v1474 = vpack.c.b16 %v1472, %v1471
  %v1478 = vsel %vm841, %v1464, 0
  %v1481 = vsel %vm841, %v1463, 0
  %1483 = vmatprep.subr.bf16.mxu0 0
  %1484 = vmatpush1.bf16.msra.mxu0 0
  %1485 = vmatprep.subr.bf16.mxu0 0
  %1486 = vmatpush1.bf16.msra.mxu0 0
  %1487 = vmatprep.subr.bf16.mxu0 0
  %1488 = vmatpush1.bf16.msra.mxu0 0
  %1489 = vmatprep.subr.bf16.mxu0 0
  %1490 = vmatpush1.bf16.msra.mxu0 0
  %1491 = vmatprep.subr.bf16.mxu0 0
  %1492 = vmatpush1.bf16.msra.mxu0 0
  %1493 = vmatprep.subr.bf16.mxu0 0
  %1494 = vmatpush1.bf16.msra.mxu0 0
  %1495 = vmatprep.subr.bf16.mxu0 0
  %1496 = vmatpush1.bf16.msra.mxu0 %v1474
  %1497 = vmatprep.subr.bf16.mxu0 0
  %1498 = vmatpush1.bf16.msra.mxu0 %v1473
  %1499 = vmatprep.subr.bf16.mxu0 0
  %1500 = vmatpush2.bf16.msra.mxu0 0
  %1501 = vmatprep.subr.bf16.mxu0 0
  %1502 = vmatpush2.bf16.msra.mxu0 0
  %1503 = vmatprep.subr.bf16.mxu0 0
  %1504 = vmatpush2.bf16.msra.mxu0 0
  %1505 = vmatprep.subr.bf16.mxu0 0
  %1506 = vmatpush2.bf16.msra.mxu0 0
  %1507 = vmatprep.subr.bf16.mxu0 0
  %1508 = vmatpush2.bf16.msra.mxu0 0
  %1509 = vmatprep.subr.bf16.mxu0 0
  %1510 = vmatpush2.bf16.msra.mxu0 0
  %1511 = vmatprep.subr.bf16.mxu0 0
  %1512 = vmatpush2.bf16.msra.mxu0 0
  %1513 = vmatprep.subr.bf16.mxu0 0
  %1514 = vmatpush2.bf16.msra.mxu0 0
  %1515 = vmatprep.mubr.bf16.mxu0 0
  %1516 = vmatmul.mubr.bf16.gmra.mxu0 %v1478
  %v1517 = vpop.f32.mrf.mxu0
  %v1518 = vadd.f32 0.0, %v1517
  %v1519 = vpop.f32.mrf.mxu0
  %v1520 = vpop.f32.mrf.mxu0
  %v1521 = vadd.f32 0.0, %v1520
  %v1522 = vpop.f32.mrf.mxu0
  %1523 = vmatprep.mubr.bf16.mxu0 0
  %1524 = vmatmul.mubr.bf16.gmra.mxu0 %v1481
  %v1525 = vpop.f32.mrf.mxu0
  %v1526 = vadd.f32 0.0, %v1525
  %v1527 = vpop.f32.mrf.mxu0
  %v1528 = vpop.f32.mrf.mxu0
  %v1529 = vpop.f32.mrf.mxu0
  %1530 = vdwg.mxu0
  %v1531 = vadd.f32 %v1457, %v1518
  %v1532 = vadd.f32 %v1458, %v1521
  %v1533 = vadd.f32 %v1459, %v1526
  %v1538 = vunpack.c.l.b16 %v799
  %v1539 = vunpack.c.l.b16 %v800
  %v1540 = vunpack.c.l.b16 %v801
  %v1541 = vunpack.c.l.b16 %v802
  %v1542 = vpack.c.b16 %v1539, %v1538
  %v1543 = vpack.c.b16 %v1541, %v1540
  %v1547 = vsel %vm841, %v750, 0
  %v1550 = vsel %vm841, %v751, 0
  %1552 = vmatprep.subr.bf16.mxu0 0
  %1553 = vmatpush1.bf16.msra.mxu0 0
  %1554 = vmatprep.subr.bf16.mxu0 0
  %1555 = vmatpush1.bf16.msra.mxu0 0
  %1556 = vmatprep.subr.bf16.mxu0 0
  %1557 = vmatpush1.bf16.msra.mxu0 0
  %1558 = vmatprep.subr.bf16.mxu0 0
  %1559 = vmatpush1.bf16.msra.mxu0 0
  %1560 = vmatprep.subr.bf16.mxu0 0
  %1561 = vmatpush1.bf16.msra.mxu0 0
  %1562 = vmatprep.subr.bf16.mxu0 0
  %1563 = vmatpush1.bf16.msra.mxu0 0
  %1564 = vmatprep.subr.bf16.mxu0 0
  %1565 = vmatpush1.bf16.msra.mxu0 %v1543
  %1566 = vmatprep.subr.bf16.mxu0 0
  %1567 = vmatpush1.bf16.msra.mxu0 %v1542
  %1568 = vmatprep.subr.bf16.mxu0 0
  %1569 = vmatpush2.bf16.msra.mxu0 0
  %1570 = vmatprep.subr.bf16.mxu0 0
  %1571 = vmatpush2.bf16.msra.mxu0 0
  %1572 = vmatprep.subr.bf16.mxu0 0
  %1573 = vmatpush2.bf16.msra.mxu0 0
  %1574 = vmatprep.subr.bf16.mxu0 0
  %1575 = vmatpush2.bf16.msra.mxu0 0
  %1576 = vmatprep.subr.bf16.mxu0 0
  %1577 = vmatpush2.bf16.msra.mxu0 0
  %1578 = vmatprep.subr.bf16.mxu0 0
  %1579 = vmatpush2.bf16.msra.mxu0 0
  %1580 = vmatprep.subr.bf16.mxu0 0
  %1581 = vmatpush2.bf16.msra.mxu0 0
  %1582 = vmatprep.subr.bf16.mxu0 0
  %1583 = vmatpush2.bf16.msra.mxu0 0
  %1584 = vmatprep.mubr.bf16.mxu0 0
  %1585 = vmatmul.mubr.bf16.gmra.mxu0 %v1547
  %v1586 = vpop.f32.mrf.mxu0
  %v1587 = vadd.f32 0.0, %v1586
  %v1588 = vpop.f32.mrf.mxu0
  %v1589 = vpop.f32.mrf.mxu0
  %v1590 = vadd.f32 0.0, %v1589
  %v1591 = vpop.f32.mrf.mxu0
  %1592 = vmatprep.mubr.bf16.mxu0 0
  %1593 = vmatmul.mubr.bf16.gmra.mxu0 %v1550
  %v1594 = vpop.f32.mrf.mxu0
  %v1595 = vadd.f32 0.0, %v1594
  %v1596 = vpop.f32.mrf.mxu0
  %v1597 = vpop.f32.mrf.mxu0
  %v1598 = vpop.f32.mrf.mxu0
  %1599 = vdwg.mxu0
  %v1600 = vadd.f32 %v1531, %v1587
  %v1601 = vadd.f32 %v1532, %v1590
  %v1602 = vadd.f32 %v1533, %v1595
  %v1605 = vrot.slane %v751, 4
  %v1606 = vrot.slane %v752, 4
  %v1607 = vsel %vm825, %v1605, %v1606
  %v1612 = vunpack.c.l.b16 %v803
  %v1613 = vunpack.c.l.b16 %v804
  %v1614 = vunpack.c.l.b16 %v805
  %v1615 = vunpack.c.l.b16 %v806
  %v1616 = vpack.c.b16 %v1613, %v1612
  %v1617 = vpack.c.b16 %v1615, %v1614
  %v1621 = vsel %vm841, %v1607, 0
  %v1624 = vsel %vm841, %v1606, 0
  %1626 = vmatprep.subr.bf16.mxu0 0
  %1627 = vmatpush1.bf16.msra.mxu0 0
  %1628 = vmatprep.subr.bf16.mxu0 0
  %1629 = vmatpush1.bf16.msra.mxu0 0
  %1630 = vmatprep.subr.bf16.mxu0 0
  %1631 = vmatpush1.bf16.msra.mxu0 0
  %1632 = vmatprep.subr.bf16.mxu0 0
  %1633 = vmatpush1.bf16.msra.mxu0 0
  %1634 = vmatprep.subr.bf16.mxu0 0
  %1635 = vmatpush1.bf16.msra.mxu0 0
  %1636 = vmatprep.subr.bf16.mxu0 0
  %1637 = vmatpush1.bf16.msra.mxu0 0
  %1638 = vmatprep.subr.bf16.mxu0 0
  %1639 = vmatpush1.bf16.msra.mxu0 %v1617
  %1640 = vmatprep.subr.bf16.mxu0 0
  %1641 = vmatpush1.bf16.msra.mxu0 %v1616
  %1642 = vmatprep.subr.bf16.mxu0 0
  %1643 = vmatpush2.bf16.msra.mxu0 0
  %1644 = vmatprep.subr.bf16.mxu0 0
  %1645 = vmatpush2.bf16.msra.mxu0 0
  %1646 = vmatprep.subr.bf16.mxu0 0
  %1647 = vmatpush2.bf16.msra.mxu0 0
  %1648 = vmatprep.subr.bf16.mxu0 0
  %1649 = vmatpush2.bf16.msra.mxu0 0
  %1650 = vmatprep.subr.bf16.mxu0 0
  %1651 = vmatpush2.bf16.msra.mxu0 0
  %1652 = vmatprep.subr.bf16.mxu0 0
  %1653 = vmatpush2.bf16.msra.mxu0 0
  %1654 = vmatprep.subr.bf16.mxu0 0
  %1655 = vmatpush2.bf16.msra.mxu0 0
  %1656 = vmatprep.subr.bf16.mxu0 0
  %1657 = vmatpush2.bf16.msra.mxu0 0
  %1658 = vmatprep.mubr.bf16.mxu0 0
  %1659 = vmatmul.mubr.bf16.gmra.mxu0 %v1621
  %v1660 = vpop.f32.mrf.mxu0
  %v1661 = vadd.f32 0.0, %v1660
  %v1662 = vpop.f32.mrf.mxu0
  %v1663 = vpop.f32.mrf.mxu0
  %v1664 = vadd.f32 0.0, %v1663
  %v1665 = vpop.f32.mrf.mxu0
  %1666 = vmatprep.mubr.bf16.mxu0 0
  %1667 = vmatmul.mubr.bf16.gmra.mxu0 %v1624
  %v1668 = vpop.f32.mrf.mxu0
  %v1669 = vadd.f32 0.0, %v1668
  %v1670 = vpop.f32.mrf.mxu0
  %v1671 = vpop.f32.mrf.mxu0
  %v1672 = vpop.f32.mrf.mxu0
  %1673 = vdwg.mxu0
  %v1674 = vadd.f32 %v1600, %v1661
  %v1675 = vadd.f32 %v1601, %v1664
  %v1676 = vadd.f32 %v1602, %v1669
  %v1681 = vunpack.c.l.b16 %v807
  %v1682 = vunpack.c.l.b16 %v808
  %v1683 = vunpack.c.l.b16 %v809
  %v1684 = vunpack.c.l.b16 %v810
  %v1685 = vpack.c.b16 %v1682, %v1681
  %v1686 = vpack.c.b16 %v1684, %v1683
  %v1690 = vsel %vm841, %v753, 0
  %v1693 = vsel %vm841, %v754, 0
  %1695 = vmatprep.subr.bf16.mxu0 0
  %1696 = vmatpush1.bf16.msra.mxu0 0
  %1697 = vmatprep.subr.bf16.mxu0 0
  %1698 = vmatpush1.bf16.msra.mxu0 0
  %1699 = vmatprep.subr.bf16.mxu0 0
  %1700 = vmatpush1.bf16.msra.mxu0 0
  %1701 = vmatprep.subr.bf16.mxu0 0
  %1702 = vmatpush1.bf16.msra.mxu0 0
  %1703 = vmatprep.subr.bf16.mxu0 0
  %1704 = vmatpush1.bf16.msra.mxu0 0
  %1705 = vmatprep.subr.bf16.mxu0 0
  %1706 = vmatpush1.bf16.msra.mxu0 0
  %1707 = vmatprep.subr.bf16.mxu0 0
  %1708 = vmatpush1.bf16.msra.mxu0 %v1686
  %1709 = vmatprep.subr.bf16.mxu0 0
  %1710 = vmatpush1.bf16.msra.mxu0 %v1685
  %1711 = vmatprep.subr.bf16.mxu0 0
  %1712 = vmatpush2.bf16.msra.mxu0 0
  %1713 = vmatprep.subr.bf16.mxu0 0
  %1714 = vmatpush2.bf16.msra.mxu0 0
  %1715 = vmatprep.subr.bf16.mxu0 0
  %1716 = vmatpush2.bf16.msra.mxu0 0
  %1717 = vmatprep.subr.bf16.mxu0 0
  %1718 = vmatpush2.bf16.msra.mxu0 0
  %1719 = vmatprep.subr.bf16.mxu0 0
  %1720 = vmatpush2.bf16.msra.mxu0 0
  %1721 = vmatprep.subr.bf16.mxu0 0
  %1722 = vmatpush2.bf16.msra.mxu0 0
  %1723 = vmatprep.subr.bf16.mxu0 0
  %1724 = vmatpush2.bf16.msra.mxu0 0
  %1725 = vmatprep.subr.bf16.mxu0 0
  %1726 = vmatpush2.bf16.msra.mxu0 0
  %1727 = vmatprep.mubr.bf16.mxu0 0
  %1728 = vmatmul.mubr.bf16.gmra.mxu0 %v1690
  %v1729 = vpop.f32.mrf.mxu0
  %v1730 = vadd.f32 0.0, %v1729
  %v1731 = vpop.f32.mrf.mxu0
  %v1732 = vpop.f32.mrf.mxu0
  %v1733 = vadd.f32 0.0, %v1732
  %v1734 = vpop.f32.mrf.mxu0
  %1735 = vmatprep.mubr.bf16.mxu0 0
  %1736 = vmatmul.mubr.bf16.gmra.mxu0 %v1693
  %v1737 = vpop.f32.mrf.mxu0
  %v1738 = vadd.f32 0.0, %v1737
  %v1739 = vpop.f32.mrf.mxu0
  %v1740 = vpop.f32.mrf.mxu0
  %v1741 = vpop.f32.mrf.mxu0
  %1742 = vdwg.mxu0
  %v1743 = vadd.f32 %v1674, %v1730
  %v1744 = vadd.f32 %v1675, %v1733
  %v1745 = vadd.f32 %v1676, %v1738
  %v1748 = vrot.slane %v754, 4
  %v1749 = vrot.slane %v755, 4
  %v1750 = vsel %vm825, %v1748, %v1749
  %v1755 = vunpack.c.l.b16 %v811
  %v1756 = vunpack.c.l.b16 %v812
  %v1757 = vunpack.c.l.b16 %v813
  %v1758 = vunpack.c.l.b16 %v814
  %v1759 = vpack.c.b16 %v1756, %v1755
  %v1760 = vpack.c.b16 %v1758, %v1757
  %v1764 = vsel %vm841, %v1750, 0
  %v1767 = vsel %vm841, %v1749, 0
  %1769 = vmatprep.subr.bf16.mxu0 0
  %1770 = vmatpush1.bf16.msra.mxu0 0
  %1771 = vmatprep.subr.bf16.mxu0 0
  %1772 = vmatpush1.bf16.msra.mxu0 0
  %1773 = vmatprep.subr.bf16.mxu0 0
  %1774 = vmatpush1.bf16.msra.mxu0 0
  %1775 = vmatprep.subr.bf16.mxu0 0
  %1776 = vmatpush1.bf16.msra.mxu0 0
  %1777 = vmatprep.subr.bf16.mxu0 0
  %1778 = vmatpush1.bf16.msra.mxu0 0
  %1779 = vmatprep.subr.bf16.mxu0 0
  %1780 = vmatpush1.bf16.msra.mxu0 0
  %1781 = vmatprep.subr.bf16.mxu0 0
  %1782 = vmatpush1.bf16.msra.mxu0 %v1760
  %1783 = vmatprep.subr.bf16.mxu0 0
  %1784 = vmatpush1.bf16.msra.mxu0 %v1759
  %1785 = vmatprep.subr.bf16.mxu0 0
  %1786 = vmatpush2.bf16.msra.mxu0 0
  %1787 = vmatprep.subr.bf16.mxu0 0
  %1788 = vmatpush2.bf16.msra.mxu0 0
  %1789 = vmatprep.subr.bf16.mxu0 0
  %1790 = vmatpush2.bf16.msra.mxu0 0
  %1791 = vmatprep.subr.bf16.mxu0 0
  %1792 = vmatpush2.bf16.msra.mxu0 0
  %1793 = vmatprep.subr.bf16.mxu0 0
  %1794 = vmatpush2.bf16.msra.mxu0 0
  %1795 = vmatprep.subr.bf16.mxu0 0
  %1796 = vmatpush2.bf16.msra.mxu0 0
  %1797 = vmatprep.subr.bf16.mxu0 0
  %1798 = vmatpush2.bf16.msra.mxu0 0
  %1799 = vmatprep.subr.bf16.mxu0 0
  %1800 = vmatpush2.bf16.msra.mxu0 0
  %1801 = vmatprep.mubr.bf16.mxu0 0
  %1802 = vmatmul.mubr.bf16.gmra.mxu0 %v1764
  %v1803 = vpop.f32.mrf.mxu0
  %v1804 = vadd.f32 0.0, %v1803
  %v1805 = vpop.f32.mrf.mxu0
  %v1806 = vpop.f32.mrf.mxu0
  %v1807 = vadd.f32 0.0, %v1806
  %v1808 = vpop.f32.mrf.mxu0
  %1809 = vmatprep.mubr.bf16.mxu0 0
  %1810 = vmatmul.mubr.bf16.gmra.mxu0 %v1767
  %v1811 = vpop.f32.mrf.mxu0
  %v1812 = vadd.f32 0.0, %v1811
  %v1813 = vpop.f32.mrf.mxu0
  %v1814 = vpop.f32.mrf.mxu0
  %v1815 = vpop.f32.mrf.mxu0
  %1816 = vdwg.mxu0
  %v1817 = vadd.f32 %v1743, %v1804
  %v1818 = vadd.f32 %v1744, %v1807
  %v1819 = vadd.f32 %v1745, %v1812
  %v1824 = vunpack.c.l.b16 %v815
  %v1825 = vunpack.c.l.b16 %v816
  %v1826 = vunpack.c.l.b16 %v817
  %v1827 = vunpack.c.l.b16 %v818
  %v1828 = vpack.c.b16 %v1825, %v1824
  %v1829 = vpack.c.b16 %v1827, %v1826
  %v1833 = vsel %vm841, %v756, 0
  %v1836 = vsel %vm841, %v757, 0
  %1838 = vmatprep.subr.bf16.mxu0 0
  %1839 = vmatpush1.bf16.msra.mxu0 0
  %1840 = vmatprep.subr.bf16.mxu0 0
  %1841 = vmatpush1.bf16.msra.mxu0 0
  %1842 = vmatprep.subr.bf16.mxu0 0
  %1843 = vmatpush1.bf16.msra.mxu0 0
  %1844 = vmatprep.subr.bf16.mxu0 0
  %1845 = vmatpush1.bf16.msra.mxu0 0
  %1846 = vmatprep.subr.bf16.mxu0 0
  %1847 = vmatpush1.bf16.msra.mxu0 0
  %1848 = vmatprep.subr.bf16.mxu0 0
  %1849 = vmatpush1.bf16.msra.mxu0 0
  %1850 = vmatprep.subr.bf16.mxu0 0
  %1851 = vmatpush1.bf16.msra.mxu0 %v1829
  %1852 = vmatprep.subr.bf16.mxu0 0
  %1853 = vmatpush1.bf16.msra.mxu0 %v1828
  %1854 = vmatprep.subr.bf16.mxu0 0
  %1855 = vmatpush2.bf16.msra.mxu0 0
  %1856 = vmatprep.subr.bf16.mxu0 0
  %1857 = vmatpush2.bf16.msra.mxu0 0
  %1858 = vmatprep.subr.bf16.mxu0 0
  %1859 = vmatpush2.bf16.msra.mxu0 0
  %1860 = vmatprep.subr.bf16.mxu0 0
  %1861 = vmatpush2.bf16.msra.mxu0 0
  %1862 = vmatprep.subr.bf16.mxu0 0
  %1863 = vmatpush2.bf16.msra.mxu0 0
  %1864 = vmatprep.subr.bf16.mxu0 0
  %1865 = vmatpush2.bf16.msra.mxu0 0
  %1866 = vmatprep.subr.bf16.mxu0 0
  %1867 = vmatpush2.bf16.msra.mxu0 0
  %1868 = vmatprep.subr.bf16.mxu0 0
  %1869 = vmatpush2.bf16.msra.mxu0 0
  %1870 = vmatprep.mubr.bf16.mxu0 0
  %1871 = vmatmul.mubr.bf16.gmra.mxu0 %v1833
  %v1872 = vpop.f32.mrf.mxu0
  %v1873 = vadd.f32 0.0, %v1872
  %v1874 = vpop.f32.mrf.mxu0
  %v1875 = vpop.f32.mrf.mxu0
  %v1876 = vadd.f32 0.0, %v1875
  %v1877 = vpop.f32.mrf.mxu0
  %1878 = vmatprep.mubr.bf16.mxu0 0
  %1879 = vmatmul.mubr.bf16.gmra.mxu0 %v1836
  %v1880 = vpop.f32.mrf.mxu0
  %v1881 = vadd.f32 0.0, %v1880
  %v1882 = vpop.f32.mrf.mxu0
  %v1883 = vpop.f32.mrf.mxu0
  %v1884 = vpop.f32.mrf.mxu0
  %1885 = vdwg.mxu0
  %v1886 = vadd.f32 %v1817, %v1873
  %v1887 = vadd.f32 %v1818, %v1876
  %v1888 = vadd.f32 %v1819, %v1881
  %v1891 = vrot.slane %v757, 4
  %v1892 = vrot.slane %v758, 4
  %v1893 = vsel %vm825, %v1891, %v1892
  %v1898 = vunpack.c.l.b16 %v819
  %v1899 = vunpack.c.l.b16 %v820
  %v1900 = vunpack.c.l.b16 %v821
  %v1901 = vunpack.c.l.b16 %v822
  %v1902 = vpack.c.b16 %v1899, %v1898
  %v1903 = vpack.c.b16 %v1901, %v1900
  %v1907 = vsel %vm841, %v1893, 0
  %v1910 = vsel %vm841, %v1892, 0
  %1912 = vmatprep.subr.bf16.mxu0 0
  %1913 = vmatpush1.bf16.msra.mxu0 0
  %1914 = vmatprep.subr.bf16.mxu0 0
  %1915 = vmatpush1.bf16.msra.mxu0 0
  %1916 = vmatprep.subr.bf16.mxu0 0
  %1917 = vmatpush1.bf16.msra.mxu0 0
  %1918 = vmatprep.subr.bf16.mxu0 0
  %1919 = vmatpush1.bf16.msra.mxu0 0
  %1920 = vmatprep.subr.bf16.mxu0 0
  %1921 = vmatpush1.bf16.msra.mxu0 0
  %1922 = vmatprep.subr.bf16.mxu0 0
  %1923 = vmatpush1.bf16.msra.mxu0 0
  %1924 = vmatprep.subr.bf16.mxu0 0
  %1925 = vmatpush1.bf16.msra.mxu0 %v1903
  %1926 = vmatprep.subr.bf16.mxu0 0
  %1927 = vmatpush1.bf16.msra.mxu0 %v1902
  %1928 = vmatprep.subr.bf16.mxu0 0
  %1929 = vmatpush2.bf16.msra.mxu0 0
  %1930 = vmatprep.subr.bf16.mxu0 0
  %1931 = vmatpush2.bf16.msra.mxu0 0
  %1932 = vmatprep.subr.bf16.mxu0 0
  %1933 = vmatpush2.bf16.msra.mxu0 0
  %1934 = vmatprep.subr.bf16.mxu0 0
  %1935 = vmatpush2.bf16.msra.mxu0 0
  %1936 = vmatprep.subr.bf16.mxu0 0
  %1937 = vmatpush2.bf16.msra.mxu0 0
  %1938 = vmatprep.subr.bf16.mxu0 0
  %1939 = vmatpush2.bf16.msra.mxu0 0
  %1940 = vmatprep.subr.bf16.mxu0 0
  %1941 = vmatpush2.bf16.msra.mxu0 0
  %1942 = vmatprep.subr.bf16.mxu0 0
  %1943 = vmatpush2.bf16.msra.mxu0 0
  %1944 = vmatprep.mubr.bf16.mxu0 0
  %1945 = vmatmul.mubr.bf16.gmra.mxu0 %v1907
  %v1946 = vpop.f32.mrf.mxu0
  %v1947 = vadd.f32 0.0, %v1946
  %v1948 = vpop.f32.mrf.mxu0
  %v1949 = vpop.f32.mrf.mxu0
  %v1950 = vadd.f32 0.0, %v1949
  %v1951 = vpop.f32.mrf.mxu0
  %1952 = vmatprep.mubr.bf16.mxu0 0
  %1953 = vmatmul.mubr.bf16.gmra.mxu0 %v1910
  %v1954 = vpop.f32.mrf.mxu0
  %v1955 = vadd.f32 0.0, %v1954
  %v1956 = vpop.f32.mrf.mxu0
  %v1957 = vpop.f32.mrf.mxu0
  %v1958 = vpop.f32.mrf.mxu0
  %1959 = vdwg.mxu0
  %v1960 = vadd.f32 %v1886, %v1947
  %v1961 = vadd.f32 %v1887, %v1950
  %v1962 = vadd.f32 %v1888, %v1955
  %v1963 = vld [vmem:[%s4] sm:$0x1]
  %v1965 = vlaneseq
  %v1966 = vshrl.u32 %v1965, 7
  %v1967 = vsub.s32 0, %v1966
  %v1968 = vrot.slane %v1963, %v1967
  %v1970 = vadd.f32 %v1960, %v1968
  %v1971 = vadd.f32 %v1961, %v1968
  %v1972 = vadd.f32 %v1962, %v1968
  %v1973 = vmax.f32 %v1970, 0.0
  %v1974 = vmax.f32 %v1971, 0.0
  %v1975 = vmax.f32 %v1972, 0.0
  %v1976 = vpack.c.bf16 %v1974, %v1973
  %v1977 = vpack.c.bf16 %v1975, %v1975
  %v1978 = vld [vmem:[%s5] sm:$0xf]
  %v1979 = vld [vmem:[%s5 + $0x4] sm:$0xf]
  %v1980 = vld [vmem:[%s5 + $0x8] sm:$0xf]
  %v1981 = vld [vmem:[%s5 + $0xc] sm:$0xf]
  %v1982 = vld [vmem:[%s5 + $0x10] sm:$0xf]
  %v1983 = vld [vmem:[%s5 + $0x14] sm:$0xf]
  %v1984 = vld [vmem:[%s5 + $0x18] sm:$0xf]
  %v1985 = vld [vmem:[%s5 + $0x1c] sm:$0xf]
  %v1986 = vld [vmem:[%s5 + $0x20] sm:$0xf]
  %v1987 = vld [vmem:[%s5 + $0x24] sm:$0xf]
  %v1988 = vld [vmem:[%s5 + $0x28] sm:$0xf]
  %v1989 = vld [vmem:[%s5 + $0x2c] sm:$0xf]
  %v1990 = vld [vmem:[%s5 + $0x30] sm:$0xf]
  %v1991 = vld [vmem:[%s5 + $0x34] sm:$0xf]
  %v1992 = vld [vmem:[%s5 + $0x38] sm:$0xf]
  %v1993 = vld [vmem:[%s5 + $0x3c] sm:$0xf]
  %v1994 = vld [vmem:[%s5 + $0x40] sm:$0xf]
  %v1995 = vld [vmem:[%s5 + $0x44] sm:$0xf]
  %v1996 = vld [vmem:[%s5 + $0x48] sm:$0xf]
  %v1997 = vld [vmem:[%s5 + $0x4c] sm:$0xf]
  %v1998 = vld [vmem:[%s5 + $0x50] sm:$0xf]
  %v1999 = vld [vmem:[%s5 + $0x54] sm:$0xf]
  %v2000 = vld [vmem:[%s5 + $0x58] sm:$0xf]
  %v2001 = vld [vmem:[%s5 + $0x5c] sm:$0xf]
  %v2002 = vld [vmem:[%s5 + $0x60] sm:$0xf]
  %v2003 = vld [vmem:[%s5 + $0x64] sm:$0xf]
  %v2004 = vld [vmem:[%s5 + $0x68] sm:$0xf]
  %v2005 = vld [vmem:[%s5 + $0x6c] sm:$0xf]
  %v2006 = vld [vmem:[%s5 + $0x70] sm:$0xf]
  %v2007 = vld [vmem:[%s5 + $0x74] sm:$0xf]
  %v2008 = vld [vmem:[%s5 + $0x78] sm:$0xf]
  %v2009 = vld [vmem:[%s5 + $0x7c] sm:$0xf]
  %v2010 = vld [vmem:[%s5 + $0x80] sm:$0xf]
  %v2011 = vld [vmem:[%s5 + $0x84] sm:$0xf]
  %v2012 = vld [vmem:[%s5 + $0x88] sm:$0xf]
  %v2013 = vld [vmem:[%s5 + $0x8c] sm:$0xf]
  %v2014 = vld [vmem:[%s5 + $0x90] sm:$0xf]
  %v2015 = vld [vmem:[%s5 + $0x94] sm:$0xf]
  %v2016 = vld [vmem:[%s5 + $0x98] sm:$0xf]
  %v2017 = vld [vmem:[%s5 + $0x9c] sm:$0xf]
  %v2018 = vld [vmem:[%s5 + $0xa0] sm:$0xf]
  %v2019 = vld [vmem:[%s5 + $0xa4] sm:$0xf]
  %v2020 = vld [vmem:[%s5 + $0xa8] sm:$0xf]
  %v2021 = vld [vmem:[%s5 + $0xac] sm:$0xf]
  %v2022 = vld [vmem:[%s5 + $0xb0] sm:$0xf]
  %v2023 = vld [vmem:[%s5 + $0xb4] sm:$0xf]
  %v2024 = vld [vmem:[%s5 + $0xb8] sm:$0xf]
  %v2025 = vld [vmem:[%s5 + $0xbc] sm:$0xf]
  %v2026 = vld [vmem:[%s5 + $0xc0] sm:$0xf]
  %v2027 = vld [vmem:[%s5 + $0xc4] sm:$0xf]
  %v2028 = vld [vmem:[%s5 + $0xc8] sm:$0xf]
  %v2029 = vld [vmem:[%s5 + $0xcc] sm:$0xf]
  %v2030 = vld [vmem:[%s5 + $0xd0] sm:$0xf]
  %v2031 = vld [vmem:[%s5 + $0xd4] sm:$0xf]
  %v2032 = vld [vmem:[%s5 + $0xd8] sm:$0xf]
  %v2033 = vld [vmem:[%s5 + $0xdc] sm:$0xf]
  %v2034 = vld [vmem:[%s5 + $0xe0] sm:$0xf]
  %v2035 = vld [vmem:[%s5 + $0xe4] sm:$0xf]
  %v2036 = vld [vmem:[%s5 + $0xe8] sm:$0xf]
  %v2037 = vld [vmem:[%s5 + $0xec] sm:$0xf]
  %v2038 = vld [vmem:[%s5 + $0xf0] sm:$0xf]
  %v2039 = vld [vmem:[%s5 + $0xf4] sm:$0xf]
  %v2040 = vld [vmem:[%s5 + $0xf8] sm:$0xf]
  %v2041 = vld [vmem:[%s5 + $0xfc] sm:$0xf]
  %v2042 = vld [vmem:[%s5 + $0x100] sm:$0xf]
  %v2043 = vld [vmem:[%s5 + $0x104] sm:$0xf]
  %v2044 = vld [vmem:[%s5 + $0x108] sm:$0xf]
  %v2045 = vld [vmem:[%s5 + $0x10c] sm:$0xf]
  %v2046 = vld [vmem:[%s5 + $0x110] sm:$0xf]
  %v2047 = vld [vmem:[%s5 + $0x114] sm:$0xf]
  %v2048 = vld [vmem:[%s5 + $0x118] sm:$0xf]
  %v2049 = vld [vmem:[%s5 + $0x11c] sm:$0xf]
  %v2051 = vrot.slane %v1976, 1
  %v2060 = vunpack.c.l.b16 %v1986
  %v2061 = vunpack.c.l.b16 %v1987
  %v2062 = vunpack.c.l.b16 %v1988
  %v2063 = vunpack.c.l.b16 %v1989
  %v2064 = vunpack.c.l.b16 %v1990
  %v2065 = vunpack.c.l.b16 %v1991
  %v2066 = vunpack.c.l.b16 %v1992
  %v2067 = vunpack.c.l.b16 %v1993
  %v2068 = vpack.c.b16 %v2061, %v2060
  %v2069 = vpack.c.b16 %v2063, %v2062
  %v2070 = vpack.c.b16 %v2065, %v2064
  %v2071 = vpack.c.b16 %v2067, %v2066
  %vm2076 = vcmask 523264
  %v2078 = vsel %vm2076, %v2051, 0
  %2080 = vmatprep.subr.bf16.mxu0 0
  %2081 = vmatpush1.bf16.msra.mxu0 0
  %2082 = vmatprep.subr.bf16.mxu0 0
  %2083 = vmatpush1.bf16.msra.mxu0 0
  %2084 = vmatprep.subr.bf16.mxu0 0
  %2085 = vmatpush1.bf16.msra.mxu0 0
  %2086 = vmatprep.subr.bf16.mxu0 0
  %2087 = vmatpush1.bf16.msra.mxu0 0
  %2088 = vmatprep.subr.bf16.mxu0 0
  %2089 = vmatpush1.bf16.msra.mxu0 %v2071
  %2090 = vmatprep.subr.bf16.mxu0 0
  %2091 = vmatpush1.bf16.msra.mxu0 %v2070
  %2092 = vmatprep.subr.bf16.mxu0 0
  %2093 = vmatpush1.bf16.msra.mxu0 %v2069
  %2094 = vmatprep.subr.bf16.mxu0 0
  %2095 = vmatpush1.bf16.msra.mxu0 %v2068
  %2096 = vmatprep.subr.bf16.mxu0 0
  %2097 = vmatpush2.bf16.msra.mxu0 0
  %2098 = vmatprep.subr.bf16.mxu0 0
  %2099 = vmatpush2.bf16.msra.mxu0 0
  %2100 = vmatprep.subr.bf16.mxu0 0
  %2101 = vmatpush2.bf16.msra.mxu0 0
  %2102 = vmatprep.subr.bf16.mxu0 0
  %2103 = vmatpush2.bf16.msra.mxu0 0
  %2104 = vmatprep.subr.bf16.mxu0 0
  %2105 = vmatpush2.bf16.msra.mxu0 0
  %2106 = vmatprep.subr.bf16.mxu0 0
  %2107 = vmatpush2.bf16.msra.mxu0 0
  %2108 = vmatprep.subr.bf16.mxu0 0
  %2109 = vmatpush2.bf16.msra.mxu0 0
  %2110 = vmatprep.subr.bf16.mxu0 0
  %2111 = vmatpush2.bf16.msra.mxu0 0
  %2112 = vmatprep.mubr.bf16.mxu0 0
  %2113 = vmatmul.mubr.bf16.gmra.mxu0 %v2078
  %v2114 = vpop.f32.mrf.mxu0
  %v2115 = vadd.f32 0.0, %v2114
  %v2116 = vpop.f32.mrf.mxu0
  %v2117 = vpop.f32.mrf.mxu0
  %v2118 = vpop.f32.mrf.mxu0
  %2119 = vdwg.mxu0
  %v2128 = vunpack.c.l.b16 %v1978
  %v2129 = vunpack.c.l.b16 %v1979
  %v2130 = vunpack.c.l.b16 %v1980
  %v2131 = vunpack.c.l.b16 %v1981
  %v2132 = vunpack.c.l.b16 %v1982
  %v2133 = vunpack.c.l.b16 %v1983
  %v2134 = vunpack.c.l.b16 %v1984
  %v2135 = vunpack.c.l.b16 %v1985
  %v2136 = vpack.c.b16 %v2129, %v2128
  %v2137 = vpack.c.b16 %v2131, %v2130
  %v2138 = vpack.c.b16 %v2133, %v2132
  %v2139 = vpack.c.b16 %v2135, %v2134
  %v2145 = vsel %vm2076, %v1976, 0
  %2147 = vmatprep.subr.bf16.mxu0 0
  %2148 = vmatpush1.bf16.msra.mxu0 0
  %2149 = vmatprep.subr.bf16.mxu0 0
  %2150 = vmatpush1.bf16.msra.mxu0 0
  %2151 = vmatprep.subr.bf16.mxu0 0
  %2152 = vmatpush1.bf16.msra.mxu0 0
  %2153 = vmatprep.subr.bf16.mxu0 0
  %2154 = vmatpush1.bf16.msra.mxu0 0
  %2155 = vmatprep.subr.bf16.mxu0 0
  %2156 = vmatpush1.bf16.msra.mxu0 %v2139
  %2157 = vmatprep.subr.bf16.mxu0 0
  %2158 = vmatpush1.bf16.msra.mxu0 %v2138
  %2159 = vmatprep.subr.bf16.mxu0 0
  %2160 = vmatpush1.bf16.msra.mxu0 %v2137
  %2161 = vmatprep.subr.bf16.mxu0 0
  %2162 = vmatpush1.bf16.msra.mxu0 %v2136
  %2163 = vmatprep.subr.bf16.mxu0 0
  %2164 = vmatpush2.bf16.msra.mxu0 0
  %2165 = vmatprep.subr.bf16.mxu0 0
  %2166 = vmatpush2.bf16.msra.mxu0 0
  %2167 = vmatprep.subr.bf16.mxu0 0
  %2168 = vmatpush2.bf16.msra.mxu0 0
  %2169 = vmatprep.subr.bf16.mxu0 0
  %2170 = vmatpush2.bf16.msra.mxu0 0
  %2171 = vmatprep.subr.bf16.mxu0 0
  %2172 = vmatpush2.bf16.msra.mxu0 0
  %2173 = vmatprep.subr.bf16.mxu0 0
  %2174 = vmatpush2.bf16.msra.mxu0 0
  %2175 = vmatprep.subr.bf16.mxu0 0
  %2176 = vmatpush2.bf16.msra.mxu0 0
  %2177 = vmatprep.subr.bf16.mxu0 0
  %2178 = vmatpush2.bf16.msra.mxu0 0
  %2179 = vmatprep.mubr.bf16.mxu0 0
  %2180 = vmatmul.mubr.bf16.gmra.mxu0 %v2145
  %v2181 = vpop.f32.mrf.mxu0
  %v2182 = vadd.f32 %v2115, %v2181
  %v2183 = vpop.f32.mrf.mxu0
  %v2184 = vpop.f32.mrf.mxu0
  %v2185 = vpop.f32.mrf.mxu0
  %2186 = vdwg.mxu0
  %v2187 = vrot.slane %v1976, 2
  %v2196 = vunpack.c.l.b16 %v1994
  %v2197 = vunpack.c.l.b16 %v1995
  %v2198 = vunpack.c.l.b16 %v1996
  %v2199 = vunpack.c.l.b16 %v1997
  %v2200 = vunpack.c.l.b16 %v1998
  %v2201 = vunpack.c.l.b16 %v1999
  %v2202 = vunpack.c.l.b16 %v2000
  %v2203 = vunpack.c.l.b16 %v2001
  %v2204 = vpack.c.b16 %v2197, %v2196
  %v2205 = vpack.c.b16 %v2199, %v2198
  %v2206 = vpack.c.b16 %v2201, %v2200
  %v2207 = vpack.c.b16 %v2203, %v2202
  %v2213 = vsel %vm2076, %v2187, 0
  %2215 = vmatprep.subr.bf16.mxu0 0
  %2216 = vmatpush1.bf16.msra.mxu0 0
  %2217 = vmatprep.subr.bf16.mxu0 0
  %2218 = vmatpush1.bf16.msra.mxu0 0
  %2219 = vmatprep.subr.bf16.mxu0 0
  %2220 = vmatpush1.bf16.msra.mxu0 0
  %2221 = vmatprep.subr.bf16.mxu0 0
  %2222 = vmatpush1.bf16.msra.mxu0 0
  %2223 = vmatprep.subr.bf16.mxu0 0
  %2224 = vmatpush1.bf16.msra.mxu0 %v2207
  %2225 = vmatprep.subr.bf16.mxu0 0
  %2226 = vmatpush1.bf16.msra.mxu0 %v2206
  %2227 = vmatprep.subr.bf16.mxu0 0
  %2228 = vmatpush1.bf16.msra.mxu0 %v2205
  %2229 = vmatprep.subr.bf16.mxu0 0
  %2230 = vmatpush1.bf16.msra.mxu0 %v2204
  %2231 = vmatprep.subr.bf16.mxu0 0
  %2232 = vmatpush2.bf16.msra.mxu0 0
  %2233 = vmatprep.subr.bf16.mxu0 0
  %2234 = vmatpush2.bf16.msra.mxu0 0
  %2235 = vmatprep.subr.bf16.mxu0 0
  %2236 = vmatpush2.bf16.msra.mxu0 0
  %2237 = vmatprep.subr.bf16.mxu0 0
  %2238 = vmatpush2.bf16.msra.mxu0 0
  %2239 = vmatprep.subr.bf16.mxu0 0
  %2240 = vmatpush2.bf16.msra.mxu0 0
  %2241 = vmatprep.subr.bf16.mxu0 0
  %2242 = vmatpush2.bf16.msra.mxu0 0
  %2243 = vmatprep.subr.bf16.mxu0 0
  %2244 = vmatpush2.bf16.msra.mxu0 0
  %2245 = vmatprep.subr.bf16.mxu0 0
  %2246 = vmatpush2.bf16.msra.mxu0 0
  %2247 = vmatprep.mubr.bf16.mxu0 0
  %2248 = vmatmul.mubr.bf16.gmra.mxu0 %v2213
  %v2249 = vpop.f32.mrf.mxu0
  %v2250 = vadd.f32 0.0, %v2249
  %v2251 = vpop.f32.mrf.mxu0
  %v2252 = vpop.f32.mrf.mxu0
  %v2253 = vpop.f32.mrf.mxu0
  %2254 = vdwg.mxu0
  %v2255 = vadd.f32 %v2182, %v2250
  %v2256 = vrot.slane %v1976, 3
  %v2265 = vunpack.c.l.b16 %v2002
  %v2266 = vunpack.c.l.b16 %v2003
  %v2267 = vunpack.c.l.b16 %v2004
  %v2268 = vunpack.c.l.b16 %v2005
  %v2269 = vunpack.c.l.b16 %v2006
  %v2270 = vunpack.c.l.b16 %v2007
  %v2271 = vunpack.c.l.b16 %v2008
  %v2272 = vunpack.c.l.b16 %v2009
  %v2273 = vpack.c.b16 %v2266, %v2265
  %v2274 = vpack.c.b16 %v2268, %v2267
  %v2275 = vpack.c.b16 %v2270, %v2269
  %v2276 = vpack.c.b16 %v2272, %v2271
  %v2282 = vsel %vm2076, %v2256, 0
  %2284 = vmatprep.subr.bf16.mxu0 0
  %2285 = vmatpush1.bf16.msra.mxu0 0
  %2286 = vmatprep.subr.bf16.mxu0 0
  %2287 = vmatpush1.bf16.msra.mxu0 0
  %2288 = vmatprep.subr.bf16.mxu0 0
  %2289 = vmatpush1.bf16.msra.mxu0 0
  %2290 = vmatprep.subr.bf16.mxu0 0
  %2291 = vmatpush1.bf16.msra.mxu0 0
  %2292 = vmatprep.subr.bf16.mxu0 0
  %2293 = vmatpush1.bf16.msra.mxu0 %v2276
  %2294 = vmatprep.subr.bf16.mxu0 0
  %2295 = vmatpush1.bf16.msra.mxu0 %v2275
  %2296 = vmatprep.subr.bf16.mxu0 0
  %2297 = vmatpush1.bf16.msra.mxu0 %v2274
  %2298 = vmatprep.subr.bf16.mxu0 0
  %2299 = vmatpush1.bf16.msra.mxu0 %v2273
  %2300 = vmatprep.subr.bf16.mxu0 0
  %2301 = vmatpush2.bf16.msra.mxu0 0
  %2302 = vmatprep.subr.bf16.mxu0 0
  %2303 = vmatpush2.bf16.msra.mxu0 0
  %2304 = vmatprep.subr.bf16.mxu0 0
  %2305 = vmatpush2.bf16.msra.mxu0 0
  %2306 = vmatprep.subr.bf16.mxu0 0
  %2307 = vmatpush2.bf16.msra.mxu0 0
  %2308 = vmatprep.subr.bf16.mxu0 0
  %2309 = vmatpush2.bf16.msra.mxu0 0
  %2310 = vmatprep.subr.bf16.mxu0 0
  %2311 = vmatpush2.bf16.msra.mxu0 0
  %2312 = vmatprep.subr.bf16.mxu0 0
  %2313 = vmatpush2.bf16.msra.mxu0 0
  %2314 = vmatprep.subr.bf16.mxu0 0
  %2315 = vmatpush2.bf16.msra.mxu0 0
  %2316 = vmatprep.mubr.bf16.mxu0 0
  %2317 = vmatmul.mubr.bf16.gmra.mxu0 %v2282
  %v2318 = vpop.f32.mrf.mxu0
  %v2319 = vadd.f32 0.0, %v2318
  %v2320 = vpop.f32.mrf.mxu0
  %v2321 = vpop.f32.mrf.mxu0
  %v2322 = vpop.f32.mrf.mxu0
  %2323 = vdwg.mxu0
  %v2324 = vadd.f32 %v2255, %v2319
  %v2325 = vrot.slane %v1976, 4
  %v2334 = vunpack.c.l.b16 %v2010
  %v2335 = vunpack.c.l.b16 %v2011
  %v2336 = vunpack.c.l.b16 %v2012
  %v2337 = vunpack.c.l.b16 %v2013
  %v2338 = vunpack.c.l.b16 %v2014
  %v2339 = vunpack.c.l.b16 %v2015
  %v2340 = vunpack.c.l.b16 %v2016
  %v2341 = vunpack.c.l.b16 %v2017
  %v2342 = vpack.c.b16 %v2335, %v2334
  %v2343 = vpack.c.b16 %v2337, %v2336
  %v2344 = vpack.c.b16 %v2339, %v2338
  %v2345 = vpack.c.b16 %v2341, %v2340
  %v2351 = vsel %vm2076, %v2325, 0
  %2353 = vmatprep.subr.bf16.mxu0 0
  %2354 = vmatpush1.bf16.msra.mxu0 0
  %2355 = vmatprep.subr.bf16.mxu0 0
  %2356 = vmatpush1.bf16.msra.mxu0 0
  %2357 = vmatprep.subr.bf16.mxu0 0
  %2358 = vmatpush1.bf16.msra.mxu0 0
  %2359 = vmatprep.subr.bf16.mxu0 0
  %2360 = vmatpush1.bf16.msra.mxu0 0
  %2361 = vmatprep.subr.bf16.mxu0 0
  %2362 = vmatpush1.bf16.msra.mxu0 %v2345
  %2363 = vmatprep.subr.bf16.mxu0 0
  %2364 = vmatpush1.bf16.msra.mxu0 %v2344
  %2365 = vmatprep.subr.bf16.mxu0 0
  %2366 = vmatpush1.bf16.msra.mxu0 %v2343
  %2367 = vmatprep.subr.bf16.mxu0 0
  %2368 = vmatpush1.bf16.msra.mxu0 %v2342
  %2369 = vmatprep.subr.bf16.mxu0 0
  %2370 = vmatpush2.bf16.msra.mxu0 0
  %2371 = vmatprep.subr.bf16.mxu0 0
  %2372 = vmatpush2.bf16.msra.mxu0 0
  %2373 = vmatprep.subr.bf16.mxu0 0
  %2374 = vmatpush2.bf16.msra.mxu0 0
  %2375 = vmatprep.subr.bf16.mxu0 0
  %2376 = vmatpush2.bf16.msra.mxu0 0
  %2377 = vmatprep.subr.bf16.mxu0 0
  %2378 = vmatpush2.bf16.msra.mxu0 0
  %2379 = vmatprep.subr.bf16.mxu0 0
  %2380 = vmatpush2.bf16.msra.mxu0 0
  %2381 = vmatprep.subr.bf16.mxu0 0
  %2382 = vmatpush2.bf16.msra.mxu0 0
  %2383 = vmatprep.subr.bf16.mxu0 0
  %2384 = vmatpush2.bf16.msra.mxu0 0
  %2385 = vmatprep.mubr.bf16.mxu0 0
  %2386 = vmatmul.mubr.bf16.gmra.mxu0 %v2351
  %v2387 = vpop.f32.mrf.mxu0
  %v2388 = vadd.f32 0.0, %v2387
  %v2389 = vpop.f32.mrf.mxu0
  %v2390 = vpop.f32.mrf.mxu0
  %v2391 = vpop.f32.mrf.mxu0
  %2392 = vdwg.mxu0
  %v2393 = vadd.f32 %v2324, %v2388
  %v2394 = vrot.slane %v1976, 5
  %v2403 = vunpack.c.l.b16 %v2018
  %v2404 = vunpack.c.l.b16 %v2019
  %v2405 = vunpack.c.l.b16 %v2020
  %v2406 = vunpack.c.l.b16 %v2021
  %v2407 = vunpack.c.l.b16 %v2022
  %v2408 = vunpack.c.l.b16 %v2023
  %v2409 = vunpack.c.l.b16 %v2024
  %v2410 = vunpack.c.l.b16 %v2025
  %v2411 = vpack.c.b16 %v2404, %v2403
  %v2412 = vpack.c.b16 %v2406, %v2405
  %v2413 = vpack.c.b16 %v2408, %v2407
  %v2414 = vpack.c.b16 %v2410, %v2409
  %v2420 = vsel %vm2076, %v2394, 0
  %2422 = vmatprep.subr.bf16.mxu0 0
  %2423 = vmatpush1.bf16.msra.mxu0 0
  %2424 = vmatprep.subr.bf16.mxu0 0
  %2425 = vmatpush1.bf16.msra.mxu0 0
  %2426 = vmatprep.subr.bf16.mxu0 0
  %2427 = vmatpush1.bf16.msra.mxu0 0
  %2428 = vmatprep.subr.bf16.mxu0 0
  %2429 = vmatpush1.bf16.msra.mxu0 0
  %2430 = vmatprep.subr.bf16.mxu0 0
  %2431 = vmatpush1.bf16.msra.mxu0 %v2414
  %2432 = vmatprep.subr.bf16.mxu0 0
  %2433 = vmatpush1.bf16.msra.mxu0 %v2413
  %2434 = vmatprep.subr.bf16.mxu0 0
  %2435 = vmatpush1.bf16.msra.mxu0 %v2412
  %2436 = vmatprep.subr.bf16.mxu0 0
  %2437 = vmatpush1.bf16.msra.mxu0 %v2411
  %2438 = vmatprep.subr.bf16.mxu0 0
  %2439 = vmatpush2.bf16.msra.mxu0 0
  %2440 = vmatprep.subr.bf16.mxu0 0
  %2441 = vmatpush2.bf16.msra.mxu0 0
  %2442 = vmatprep.subr.bf16.mxu0 0
  %2443 = vmatpush2.bf16.msra.mxu0 0
  %2444 = vmatprep.subr.bf16.mxu0 0
  %2445 = vmatpush2.bf16.msra.mxu0 0
  %2446 = vmatprep.subr.bf16.mxu0 0
  %2447 = vmatpush2.bf16.msra.mxu0 0
  %2448 = vmatprep.subr.bf16.mxu0 0
  %2449 = vmatpush2.bf16.msra.mxu0 0
  %2450 = vmatprep.subr.bf16.mxu0 0
  %2451 = vmatpush2.bf16.msra.mxu0 0
  %2452 = vmatprep.subr.bf16.mxu0 0
  %2453 = vmatpush2.bf16.msra.mxu0 0
  %2454 = vmatprep.mubr.bf16.mxu0 0
  %2455 = vmatmul.mubr.bf16.gmra.mxu0 %v2420
  %v2456 = vpop.f32.mrf.mxu0
  %v2457 = vadd.f32 0.0, %v2456
  %v2458 = vpop.f32.mrf.mxu0
  %v2459 = vpop.f32.mrf.mxu0
  %v2460 = vpop.f32.mrf.mxu0
  %2461 = vdwg.mxu0
  %v2462 = vadd.f32 %v2393, %v2457
  %v2463 = vrot.slane %v1976, 6
  %v2472 = vunpack.c.l.b16 %v2026
  %v2473 = vunpack.c.l.b16 %v2027
  %v2474 = vunpack.c.l.b16 %v2028
  %v2475 = vunpack.c.l.b16 %v2029
  %v2476 = vunpack.c.l.b16 %v2030
  %v2477 = vunpack.c.l.b16 %v2031
  %v2478 = vunpack.c.l.b16 %v2032
  %v2479 = vunpack.c.l.b16 %v2033
  %v2480 = vpack.c.b16 %v2473, %v2472
  %v2481 = vpack.c.b16 %v2475, %v2474
  %v2482 = vpack.c.b16 %v2477, %v2476
  %v2483 = vpack.c.b16 %v2479, %v2478
  %v2489 = vsel %vm2076, %v2463, 0
  %2491 = vmatprep.subr.bf16.mxu0 0
  %2492 = vmatpush1.bf16.msra.mxu0 0
  %2493 = vmatprep.subr.bf16.mxu0 0
  %2494 = vmatpush1.bf16.msra.mxu0 0
  %2495 = vmatprep.subr.bf16.mxu0 0
  %2496 = vmatpush1.bf16.msra.mxu0 0
  %2497 = vmatprep.subr.bf16.mxu0 0
  %2498 = vmatpush1.bf16.msra.mxu0 0
  %2499 = vmatprep.subr.bf16.mxu0 0
  %2500 = vmatpush1.bf16.msra.mxu0 %v2483
  %2501 = vmatprep.subr.bf16.mxu0 0
  %2502 = vmatpush1.bf16.msra.mxu0 %v2482
  %2503 = vmatprep.subr.bf16.mxu0 0
  %2504 = vmatpush1.bf16.msra.mxu0 %v2481
  %2505 = vmatprep.subr.bf16.mxu0 0
  %2506 = vmatpush1.bf16.msra.mxu0 %v2480
  %2507 = vmatprep.subr.bf16.mxu0 0
  %2508 = vmatpush2.bf16.msra.mxu0 0
  %2509 = vmatprep.subr.bf16.mxu0 0
  %2510 = vmatpush2.bf16.msra.mxu0 0
  %2511 = vmatprep.subr.bf16.mxu0 0
  %2512 = vmatpush2.bf16.msra.mxu0 0
  %2513 = vmatprep.subr.bf16.mxu0 0
  %2514 = vmatpush2.bf16.msra.mxu0 0
  %2515 = vmatprep.subr.bf16.mxu0 0
  %2516 = vmatpush2.bf16.msra.mxu0 0
  %2517 = vmatprep.subr.bf16.mxu0 0
  %2518 = vmatpush2.bf16.msra.mxu0 0
  %2519 = vmatprep.subr.bf16.mxu0 0
  %2520 = vmatpush2.bf16.msra.mxu0 0
  %2521 = vmatprep.subr.bf16.mxu0 0
  %2522 = vmatpush2.bf16.msra.mxu0 0
  %2523 = vmatprep.mubr.bf16.mxu0 0
  %2524 = vmatmul.mubr.bf16.gmra.mxu0 %v2489
  %v2525 = vpop.f32.mrf.mxu0
  %v2526 = vadd.f32 0.0, %v2525
  %v2527 = vpop.f32.mrf.mxu0
  %v2528 = vpop.f32.mrf.mxu0
  %v2529 = vpop.f32.mrf.mxu0
  %2530 = vdwg.mxu0
  %v2531 = vadd.f32 %v2462, %v2526
  %v2532 = vrot.slane %v1976, 7
  %v2541 = vunpack.c.l.b16 %v2034
  %v2542 = vunpack.c.l.b16 %v2035
  %v2543 = vunpack.c.l.b16 %v2036
  %v2544 = vunpack.c.l.b16 %v2037
  %v2545 = vunpack.c.l.b16 %v2038
  %v2546 = vunpack.c.l.b16 %v2039
  %v2547 = vunpack.c.l.b16 %v2040
  %v2548 = vunpack.c.l.b16 %v2041
  %v2549 = vpack.c.b16 %v2542, %v2541
  %v2550 = vpack.c.b16 %v2544, %v2543
  %v2551 = vpack.c.b16 %v2546, %v2545
  %v2552 = vpack.c.b16 %v2548, %v2547
  %v2558 = vsel %vm2076, %v2532, 0
  %2560 = vmatprep.subr.bf16.mxu0 0
  %2561 = vmatpush1.bf16.msra.mxu0 0
  %2562 = vmatprep.subr.bf16.mxu0 0
  %2563 = vmatpush1.bf16.msra.mxu0 0
  %2564 = vmatprep.subr.bf16.mxu0 0
  %2565 = vmatpush1.bf16.msra.mxu0 0
  %2566 = vmatprep.subr.bf16.mxu0 0
  %2567 = vmatpush1.bf16.msra.mxu0 0
  %2568 = vmatprep.subr.bf16.mxu0 0
  %2569 = vmatpush1.bf16.msra.mxu0 %v2552
  %2570 = vmatprep.subr.bf16.mxu0 0
  %2571 = vmatpush1.bf16.msra.mxu0 %v2551
  %2572 = vmatprep.subr.bf16.mxu0 0
  %2573 = vmatpush1.bf16.msra.mxu0 %v2550
  %2574 = vmatprep.subr.bf16.mxu0 0
  %2575 = vmatpush1.bf16.msra.mxu0 %v2549
  %2576 = vmatprep.subr.bf16.mxu0 0
  %2577 = vmatpush2.bf16.msra.mxu0 0
  %2578 = vmatprep.subr.bf16.mxu0 0
  %2579 = vmatpush2.bf16.msra.mxu0 0
  %2580 = vmatprep.subr.bf16.mxu0 0
  %2581 = vmatpush2.bf16.msra.mxu0 0
  %2582 = vmatprep.subr.bf16.mxu0 0
  %2583 = vmatpush2.bf16.msra.mxu0 0
  %2584 = vmatprep.subr.bf16.mxu0 0
  %2585 = vmatpush2.bf16.msra.mxu0 0
  %2586 = vmatprep.subr.bf16.mxu0 0
  %2587 = vmatpush2.bf16.msra.mxu0 0
  %2588 = vmatprep.subr.bf16.mxu0 0
  %2589 = vmatpush2.bf16.msra.mxu0 0
  %2590 = vmatprep.subr.bf16.mxu0 0
  %2591 = vmatpush2.bf16.msra.mxu0 0
  %2592 = vmatprep.mubr.bf16.mxu0 0
  %2593 = vmatmul.mubr.bf16.gmra.mxu0 %v2558
  %v2594 = vpop.f32.mrf.mxu0
  %v2595 = vadd.f32 0.0, %v2594
  %v2596 = vpop.f32.mrf.mxu0
  %v2597 = vpop.f32.mrf.mxu0
  %v2598 = vpop.f32.mrf.mxu0
  %2599 = vdwg.mxu0
  %v2600 = vadd.f32 %v2531, %v2595
  %v2609 = vunpack.c.l.b16 %v2042
  %v2610 = vunpack.c.l.b16 %v2043
  %v2611 = vunpack.c.l.b16 %v2044
  %v2612 = vunpack.c.l.b16 %v2045
  %v2613 = vunpack.c.l.b16 %v2046
  %v2614 = vunpack.c.l.b16 %v2047
  %v2615 = vunpack.c.l.b16 %v2048
  %v2616 = vunpack.c.l.b16 %v2049
  %v2617 = vpack.c.b16 %v2610, %v2609
  %v2618 = vpack.c.b16 %v2612, %v2611
  %v2619 = vpack.c.b16 %v2614, %v2613
  %v2620 = vpack.c.b16 %v2616, %v2615
  %v2626 = vsel %vm2076, %v1977, 0
  %2628 = vmatprep.subr.bf16.mxu0 0
  %2629 = vmatpush1.bf16.msra.mxu0 0
  %2630 = vmatprep.subr.bf16.mxu0 0
  %2631 = vmatpush1.bf16.msra.mxu0 0
  %2632 = vmatprep.subr.bf16.mxu0 0
  %2633 = vmatpush1.bf16.msra.mxu0 0
  %2634 = vmatprep.subr.bf16.mxu0 0
  %2635 = vmatpush1.bf16.msra.mxu0 0
  %2636 = vmatprep.subr.bf16.mxu0 0
  %2637 = vmatpush1.bf16.msra.mxu0 %v2620
  %2638 = vmatprep.subr.bf16.mxu0 0
  %2639 = vmatpush1.bf16.msra.mxu0 %v2619
  %2640 = vmatprep.subr.bf16.mxu0 0
  %2641 = vmatpush1.bf16.msra.mxu0 %v2618
  %2642 = vmatprep.subr.bf16.mxu0 0
  %2643 = vmatpush1.bf16.msra.mxu0 %v2617
  %2644 = vmatprep.subr.bf16.mxu0 0
  %2645 = vmatpush2.bf16.msra.mxu0 0
  %2646 = vmatprep.subr.bf16.mxu0 0
  %2647 = vmatpush2.bf16.msra.mxu0 0
  %2648 = vmatprep.subr.bf16.mxu0 0
  %2649 = vmatpush2.bf16.msra.mxu0 0
  %2650 = vmatprep.subr.bf16.mxu0 0
  %2651 = vmatpush2.bf16.msra.mxu0 0
  %2652 = vmatprep.subr.bf16.mxu0 0
  %2653 = vmatpush2.bf16.msra.mxu0 0
  %2654 = vmatprep.subr.bf16.mxu0 0
  %2655 = vmatpush2.bf16.msra.mxu0 0
  %2656 = vmatprep.subr.bf16.mxu0 0
  %2657 = vmatpush2.bf16.msra.mxu0 0
  %2658 = vmatprep.subr.bf16.mxu0 0
  %2659 = vmatpush2.bf16.msra.mxu0 0
  %2660 = vmatprep.mubr.bf16.mxu0 0
  %2661 = vmatmul.mubr.bf16.gmra.mxu0 %v2626
  %v2662 = vpop.f32.mrf.mxu0
  %v2663 = vadd.f32 0.0, %v2662
  %v2664 = vpop.f32.mrf.mxu0
  %v2665 = vpop.f32.mrf.mxu0
  %v2666 = vpop.f32.mrf.mxu0
  %2667 = vdwg.mxu0
  %v2668 = vadd.f32 %v2600, %v2663
  %v2669 = vld [vmem:[%s6] sm:$0x1]
  %v2671 = vlaneseq
  %v2672 = vshrl.u32 %v2671, 7
  %v2673 = vsub.s32 0, %v2672
  %v2674 = vrot.slane %v2669, %v2673
  %v2676 = vadd.f32 %v2668, %v2674
  %v2677 = vmax.f32 %v2676, 0.0
  %v2678 = vpack.c.bf16 %v2677, %v2677
  %v2679 = vld [vmem:[%s7] sm:$0xff]
  %v2680 = vld [vmem:[%s7 + $0x8] sm:$0xff]
  %v2681 = vld [vmem:[%s7 + $0x10] sm:$0xff]
  %v2682 = vld [vmem:[%s7 + $0x18] sm:$0xff]
  %v2683 = vld [vmem:[%s7 + $0x20] sm:$0xff]
  %v2684 = vld [vmem:[%s7 + $0x28] sm:$0xff]
  %v2685 = vld [vmem:[%s7 + $0x30] sm:$0xff]
  %v2686 = vld [vmem:[%s7 + $0x38] sm:$0xff]
  %v2687 = vld [vmem:[%s7 + $0x40] sm:$0xff]
  %v2688 = vld [vmem:[%s7 + $0x48] sm:$0xff]
  %v2689 = vld [vmem:[%s7 + $0x50] sm:$0xff]
  %v2690 = vld [vmem:[%s7 + $0x58] sm:$0xff]
  %v2691 = vld [vmem:[%s7 + $0x60] sm:$0xff]
  %v2692 = vld [vmem:[%s7 + $0x68] sm:$0xff]
  %v2693 = vld [vmem:[%s7 + $0x70] sm:$0xff]
  %v2694 = vld [vmem:[%s7 + $0x78] sm:$0xff]
  %v2695 = vld [vmem:[%s7 + $0x80] sm:$0xff]
  %v2696 = vld [vmem:[%s7 + $0x88] sm:$0xff]
  %v2697 = vld [vmem:[%s7 + $0x90] sm:$0xff]
  %v2698 = vld [vmem:[%s7 + $0x98] sm:$0xff]
  %v2699 = vld [vmem:[%s7 + $0xa0] sm:$0xff]
  %v2700 = vld [vmem:[%s7 + $0xa8] sm:$0xff]
  %v2701 = vld [vmem:[%s7 + $0xb0] sm:$0xff]
  %v2702 = vld [vmem:[%s7 + $0xb8] sm:$0xff]
  %v2703 = vld [vmem:[%s7 + $0xc0] sm:$0xff]
  %v2704 = vld [vmem:[%s7 + $0xc8] sm:$0xff]
  %v2705 = vld [vmem:[%s7 + $0xd0] sm:$0xff]
  %v2706 = vld [vmem:[%s7 + $0xd8] sm:$0xff]
  %v2707 = vld [vmem:[%s7 + $0xe0] sm:$0xff]
  %v2708 = vld [vmem:[%s7 + $0xe8] sm:$0xff]
  %v2709 = vld [vmem:[%s7 + $0xf0] sm:$0xff]
  %v2710 = vld [vmem:[%s7 + $0xf8] sm:$0xff]
  %v2711 = vld [vmem:[%s8] sm:$0xff]
  %v2713 = vlaneseq
  %v2714 = vshrl.u32 %v2713, 7
  %v2715 = vsub.s32 0, %v2714
  %v2716 = vrot.slane %v2711, %v2715
  %v2717 = vlaneseq
  %v2718 = vshrl.u32 %v2717, 7
  %v2719 = vsub.s32 1, %v2718
  %v2720 = vrot.slane %v2711, %v2719
  %v2721 = vlaneseq
  %v2722 = vshrl.u32 %v2721, 7
  %v2723 = vsub.s32 2, %v2722
  %v2724 = vrot.slane %v2711, %v2723
  %v2725 = vlaneseq
  %v2726 = vshrl.u32 %v2725, 7
  %v2727 = vsub.s32 3, %v2726
  %v2728 = vrot.slane %v2711, %v2727
  %v2729 = vlaneseq
  %v2730 = vshrl.u32 %v2729, 7
  %v2731 = vsub.s32 4, %v2730
  %v2732 = vrot.slane %v2711, %v2731
  %v2733 = vlaneseq
  %v2734 = vshrl.u32 %v2733, 7
  %v2735 = vsub.s32 5, %v2734
  %v2736 = vrot.slane %v2711, %v2735
  %v2737 = vlaneseq
  %v2738 = vshrl.u32 %v2737, 7
  %v2739 = vsub.s32 6, %v2738
  %v2740 = vrot.slane %v2711, %v2739
  %v2741 = vlaneseq
  %v2742 = vshrl.u32 %v2741, 7
  %v2743 = vsub.s32 7, %v2742
  %v2744 = vrot.slane %v2711, %v2743
  %v2785 = vunpack.c.l.b16 %v2679
  %v2786 = vunpack.c.h.b16 %v2679
  %v2787 = vunpack.c.l.b16 %v2680
  %v2788 = vunpack.c.h.b16 %v2680
  %v2789 = vunpack.c.l.b16 %v2681
  %v2790 = vunpack.c.h.b16 %v2681
  %v2791 = vunpack.c.l.b16 %v2682
  %v2792 = vunpack.c.h.b16 %v2682
  %v2793 = vunpack.c.l.b16 %v2683
  %v2794 = vunpack.c.h.b16 %v2683
  %v2795 = vunpack.c.l.b16 %v2684
  %v2796 = vunpack.c.h.b16 %v2684
  %v2797 = vunpack.c.l.b16 %v2685
  %v2798 = vunpack.c.h.b16 %v2685
  %v2799 = vunpack.c.l.b16 %v2686
  %v2800 = vunpack.c.h.b16 %v2686
  %v2801 = vunpack.c.l.b16 %v2687
  %v2802 = vunpack.c.h.b16 %v2687
  %v2803 = vunpack.c.l.b16 %v2688
  %v2804 = vunpack.c.h.b16 %v2688
  %v2805 = vunpack.c.l.b16 %v2689
  %v2806 = vunpack.c.h.b16 %v2689
  %v2807 = vunpack.c.l.b16 %v2690
  %v2808 = vunpack.c.h.b16 %v2690
  %v2809 = vunpack.c.l.b16 %v2691
  %v2810 = vunpack.c.h.b16 %v2691
  %v2811 = vunpack.c.l.b16 %v2692
  %v2812 = vunpack.c.h.b16 %v2692
  %v2813 = vunpack.c.l.b16 %v2693
  %v2814 = vunpack.c.h.b16 %v2693
  %v2815 = vunpack.c.l.b16 %v2694
  %v2816 = vunpack.c.h.b16 %v2694
  %v2817 = vunpack.c.l.b16 %v2695
  %v2818 = vunpack.c.h.b16 %v2695
  %v2819 = vunpack.c.l.b16 %v2696
  %v2820 = vunpack.c.h.b16 %v2696
  %v2821 = vunpack.c.l.b16 %v2697
  %v2822 = vunpack.c.h.b16 %v2697
  %v2823 = vunpack.c.l.b16 %v2698
  %v2824 = vunpack.c.h.b16 %v2698
  %v2825 = vunpack.c.l.b16 %v2699
  %v2826 = vunpack.c.h.b16 %v2699
  %v2827 = vunpack.c.l.b16 %v2700
  %v2828 = vunpack.c.h.b16 %v2700
  %v2829 = vunpack.c.l.b16 %v2701
  %v2830 = vunpack.c.h.b16 %v2701
  %v2831 = vunpack.c.l.b16 %v2702
  %v2832 = vunpack.c.h.b16 %v2702
  %v2833 = vunpack.c.l.b16 %v2703
  %v2834 = vunpack.c.h.b16 %v2703
  %v2835 = vunpack.c.l.b16 %v2704
  %v2836 = vunpack.c.h.b16 %v2704
  %v2837 = vunpack.c.l.b16 %v2705
  %v2838 = vunpack.c.h.b16 %v2705
  %v2839 = vunpack.c.l.b16 %v2706
  %v2840 = vunpack.c.h.b16 %v2706
  %v2841 = vunpack.c.l.b16 %v2707
  %v2842 = vunpack.c.h.b16 %v2707
  %v2843 = vunpack.c.l.b16 %v2708
  %v2844 = vunpack.c.h.b16 %v2708
  %v2845 = vunpack.c.l.b16 %v2709
  %v2846 = vunpack.c.h.b16 %v2709
  %v2847 = vunpack.c.l.b16 %v2710
  %v2848 = vunpack.c.h.b16 %v2710
  %v2849 = vpack.c.b16 %v2793, %v2785
  %v2850 = vpack.c.b16 %v2794, %v2786
  %v2851 = vpack.c.b16 %v2795, %v2787
  %v2852 = vpack.c.b16 %v2796, %v2788
  %v2853 = vpack.c.b16 %v2797, %v2789
  %v2854 = vpack.c.b16 %v2798, %v2790
  %v2855 = vpack.c.b16 %v2799, %v2791
  %v2856 = vpack.c.b16 %v2800, %v2792
  %v2857 = vpack.c.b16 %v2809, %v2801
  %v2858 = vpack.c.b16 %v2810, %v2802
  %v2859 = vpack.c.b16 %v2811, %v2803
  %v2860 = vpack.c.b16 %v2812, %v2804
  %v2861 = vpack.c.b16 %v2813, %v2805
  %v2862 = vpack.c.b16 %v2814, %v2806
  %v2863 = vpack.c.b16 %v2815, %v2807
  %v2864 = vpack.c.b16 %v2816, %v2808
  %v2865 = vpack.c.b16 %v2825, %v2817
  %v2866 = vpack.c.b16 %v2826, %v2818
  %v2867 = vpack.c.b16 %v2827, %v2819
  %v2868 = vpack.c.b16 %v2828, %v2820
  %v2869 = vpack.c.b16 %v2829, %v2821
  %v2870 = vpack.c.b16 %v2830, %v2822
  %v2871 = vpack.c.b16 %v2831, %v2823
  %v2872 = vpack.c.b16 %v2832, %v2824
  %v2873 = vpack.c.b16 %v2841, %v2833
  %v2874 = vpack.c.b16 %v2842, %v2834
  %v2875 = vpack.c.b16 %v2843, %v2835
  %v2876 = vpack.c.b16 %v2844, %v2836
  %v2877 = vpack.c.b16 %v2845, %v2837
  %v2878 = vpack.c.b16 %v2846, %v2838
  %v2879 = vpack.c.b16 %v2847, %v2839
  %v2880 = vpack.c.b16 %v2848, %v2840
  %v2914 = vsel %vm2076, %v2678, 0
  %2916 = vmatprep.subr.bf16.mxu0 0
  %2917 = vmatpush1.bf16.msra.mxu0 0
  %2918 = vmatprep.subr.bf16.mxu0 0
  %2919 = vmatpush1.bf16.msra.mxu0 0
  %2920 = vmatprep.subr.bf16.mxu0 0
  %2921 = vmatpush1.bf16.msra.mxu0 0
  %2922 = vmatprep.subr.bf16.mxu0 0
  %2923 = vmatpush1.bf16.msra.mxu0 0
  %2924 = vmatprep.subr.bf16.mxu0 %v2874
  %2925 = vmatpush1.bf16.msra.mxu0 %v2873
  %2926 = vmatprep.subr.bf16.mxu0 %v2866
  %2927 = vmatpush1.bf16.msra.mxu0 %v2865
  %2928 = vmatprep.subr.bf16.mxu0 %v2858
  %2929 = vmatpush1.bf16.msra.mxu0 %v2857
  %2930 = vmatprep.subr.bf16.mxu0 %v2850
  %2931 = vmatpush1.bf16.msra.mxu0 %v2849
  %2932 = vmatprep.subr.bf16.mxu0 0
  %2933 = vmatpush2.bf16.msra.mxu0 0
  %2934 = vmatprep.subr.bf16.mxu0 0
  %2935 = vmatpush2.bf16.msra.mxu0 0
  %2936 = vmatprep.subr.bf16.mxu0 0
  %2937 = vmatpush2.bf16.msra.mxu0 0
  %2938 = vmatprep.subr.bf16.mxu0 0
  %2939 = vmatpush2.bf16.msra.mxu0 0
  %2940 = vmatprep.subr.bf16.mxu0 0
  %2941 = vmatpush2.bf16.msra.mxu0 0
  %2942 = vmatprep.subr.bf16.mxu0 0
  %2943 = vmatpush2.bf16.msra.mxu0 0
  %2944 = vmatprep.subr.bf16.mxu0 0
  %2945 = vmatpush2.bf16.msra.mxu0 0
  %2946 = vmatprep.subr.bf16.mxu0 0
  %2947 = vmatpush2.bf16.msra.mxu0 0
  %2948 = vmatprep.mubr.bf16.mxu0 0
  %2949 = vmatmul.mubr.bf16.gmra.mxu0 %v2914
  %v2950 = vpop.f32.mrf.mxu0
  %v2951 = vadd.f32 %v2716, %v2950
  %v2952 = vpop.f32.mrf.mxu0
  %v2953 = vadd.f32 %v2720, %v2952
  %v2954 = vpop.f32.mrf.mxu0
  %v2955 = vpop.f32.mrf.mxu0
  %2956 = vdwg.mxu0
  %2957 = vmatprep.subr.bf16.mxu0 0
  %2958 = vmatpush1.bf16.msra.mxu0 0
  %2959 = vmatprep.subr.bf16.mxu0 0
  %2960 = vmatpush1.bf16.msra.mxu0 0
  %2961 = vmatprep.subr.bf16.mxu0 0
  %2962 = vmatpush1.bf16.msra.mxu0 0
  %2963 = vmatprep.subr.bf16.mxu0 0
  %2964 = vmatpush1.bf16.msra.mxu0 0
  %2965 = vmatprep.subr.bf16.mxu0 %v2876
  %2966 = vmatpush1.bf16.msra.mxu0 %v2875
  %2967 = vmatprep.subr.bf16.mxu0 %v2868
  %2968 = vmatpush1.bf16.msra.mxu0 %v2867
  %2969 = vmatprep.subr.bf16.mxu0 %v2860
  %2970 = vmatpush1.bf16.msra.mxu0 %v2859
  %2971 = vmatprep.subr.bf16.mxu0 %v2852
  %2972 = vmatpush1.bf16.msra.mxu0 %v2851
  %2973 = vmatprep.subr.bf16.mxu0 0
  %2974 = vmatpush2.bf16.msra.mxu0 0
  %2975 = vmatprep.subr.bf16.mxu0 0
  %2976 = vmatpush2.bf16.msra.mxu0 0
  %2977 = vmatprep.subr.bf16.mxu0 0
  %2978 = vmatpush2.bf16.msra.mxu0 0
  %2979 = vmatprep.subr.bf16.mxu0 0
  %2980 = vmatpush2.bf16.msra.mxu0 0
  %2981 = vmatprep.subr.bf16.mxu0 0
  %2982 = vmatpush2.bf16.msra.mxu0 0
  %2983 = vmatprep.subr.bf16.mxu0 0
  %2984 = vmatpush2.bf16.msra.mxu0 0
  %2985 = vmatprep.subr.bf16.mxu0 0
  %2986 = vmatpush2.bf16.msra.mxu0 0
  %2987 = vmatprep.subr.bf16.mxu0 0
  %2988 = vmatpush2.bf16.msra.mxu0 0
  %2989 = vmatprep.mubr.bf16.mxu0 0
  %2990 = vmatmul.mubr.bf16.gmra.mxu0 %v2914
  %v2991 = vpop.f32.mrf.mxu0
  %v2992 = vadd.f32 %v2724, %v2991
  %v2993 = vpop.f32.mrf.mxu0
  %v2994 = vadd.f32 %v2728, %v2993
  %v2995 = vpop.f32.mrf.mxu0
  %v2996 = vpop.f32.mrf.mxu0
  %2997 = vdwg.mxu0
  %2998 = vmatprep.subr.bf16.mxu0 0
  %2999 = vmatpush1.bf16.msra.mxu0 0
  %3000 = vmatprep.subr.bf16.mxu0 0
  %3001 = vmatpush1.bf16.msra.mxu0 0
  %3002 = vmatprep.subr.bf16.mxu0 0
  %3003 = vmatpush1.bf16.msra.mxu0 0
  %3004 = vmatprep.subr.bf16.mxu0 0
  %3005 = vmatpush1.bf16.msra.mxu0 0
  %3006 = vmatprep.subr.bf16.mxu0 %v2878
  %3007 = vmatpush1.bf16.msra.mxu0 %v2877
  %3008 = vmatprep.subr.bf16.mxu0 %v2870
  %3009 = vmatpush1.bf16.msra.mxu0 %v2869
  %3010 = vmatprep.subr.bf16.mxu0 %v2862
  %3011 = vmatpush1.bf16.msra.mxu0 %v2861
  %3012 = vmatprep.subr.bf16.mxu0 %v2854
  %3013 = vmatpush1.bf16.msra.mxu0 %v2853
  %3014 = vmatprep.subr.bf16.mxu0 0
  %3015 = vmatpush2.bf16.msra.mxu0 0
  %3016 = vmatprep.subr.bf16.mxu0 0
  %3017 = vmatpush2.bf16.msra.mxu0 0
  %3018 = vmatprep.subr.bf16.mxu0 0
  %3019 = vmatpush2.bf16.msra.mxu0 0
  %3020 = vmatprep.subr.bf16.mxu0 0
  %3021 = vmatpush2.bf16.msra.mxu0 0
  %3022 = vmatprep.subr.bf16.mxu0 0
  %3023 = vmatpush2.bf16.msra.mxu0 0
  %3024 = vmatprep.subr.bf16.mxu0 0
  %3025 = vmatpush2.bf16.msra.mxu0 0
  %3026 = vmatprep.subr.bf16.mxu0 0
  %3027 = vmatpush2.bf16.msra.mxu0 0
  %3028 = vmatprep.subr.bf16.mxu0 0
  %3029 = vmatpush2.bf16.msra.mxu0 0
  %3030 = vmatprep.mubr.bf16.mxu0 0
  %3031 = vmatmul.mubr.bf16.gmra.mxu0 %v2914
  %v3032 = vpop.f32.mrf.mxu0
  %v3033 = vadd.f32 %v2732, %v3032
  %v3034 = vpop.f32.mrf.mxu0
  %v3035 = vadd.f32 %v2736, %v3034
  %v3036 = vpop.f32.mrf.mxu0
  %v3037 = vpop.f32.mrf.mxu0
  %3038 = vdwg.mxu0
  %3039 = vmatprep.subr.bf16.mxu0 0
  %3040 = vmatpush1.bf16.msra.mxu0 0
  %3041 = vmatprep.subr.bf16.mxu0 0
  %3042 = vmatpush1.bf16.msra.mxu0 0
  %3043 = vmatprep.subr.bf16.mxu0 0
  %3044 = vmatpush1.bf16.msra.mxu0 0
  %3045 = vmatprep.subr.bf16.mxu0 0
  %3046 = vmatpush1.bf16.msra.mxu0 0
  %3047 = vmatprep.subr.bf16.mxu0 %v2880
  %3048 = vmatpush1.bf16.msra.mxu0 %v2879
  %3049 = vmatprep.subr.bf16.mxu0 %v2872
  %3050 = vmatpush1.bf16.msra.mxu0 %v2871
  %3051 = vmatprep.subr.bf16.mxu0 %v2864
  %3052 = vmatpush1.bf16.msra.mxu0 %v2863
  %3053 = vmatprep.subr.bf16.mxu0 %v2856
  %3054 = vmatpush1.bf16.msra.mxu0 %v2855
  %3055 = vmatprep.subr.bf16.mxu0 0
  %3056 = vmatpush2.bf16.msra.mxu0 0
  %3057 = vmatprep.subr.bf16.mxu0 0
  %3058 = vmatpush2.bf16.msra.mxu0 0
  %3059 = vmatprep.subr.bf16.mxu0 0
  %3060 = vmatpush2.bf16.msra.mxu0 0
  %3061 = vmatprep.subr.bf16.mxu0 0
  %3062 = vmatpush2.bf16.msra.mxu0 0
  %3063 = vmatprep.subr.bf16.mxu0 0
  %3064 = vmatpush2.bf16.msra.mxu0 0
  %3065 = vmatprep.subr.bf16.mxu0 0
  %3066 = vmatpush2.bf16.msra.mxu0 0
  %3067 = vmatprep.subr.bf16.mxu0 0
  %3068 = vmatpush2.bf16.msra.mxu0 0
  %3069 = vmatprep.subr.bf16.mxu0 0
  %3070 = vmatpush2.bf16.msra.mxu0 0
  %3071 = vmatprep.mubr.bf16.mxu0 0
  %3072 = vmatmul.mubr.bf16.gmra.mxu0 %v2914
  %v3073 = vpop.f32.mrf.mxu0
  %v3074 = vadd.f32 %v2740, %v3073
  %v3075 = vpop.f32.mrf.mxu0
  %v3076 = vadd.f32 %v2744, %v3075
  %v3077 = vpop.f32.mrf.mxu0
  %v3078 = vpop.f32.mrf.mxu0
  %3079 = vdwg.mxu0
  %v3080 = vmax.f32 %v2951, 0.0
  %v3081 = vmax.f32 %v2953, 0.0
  %v3082 = vmax.f32 %v2992, 0.0
  %v3083 = vmax.f32 %v2994, 0.0
  %v3084 = vmax.f32 %v3033, 0.0
  %v3085 = vmax.f32 %v3035, 0.0
  %v3086 = vmax.f32 %v3074, 0.0
  %v3087 = vmax.f32 %v3076, 0.0
  %v3088 = vpack.c.bf16 %v3080, %v3080
  %v3089 = vpack.c.bf16 %v3081, %v3081
  %v3090 = vpack.c.bf16 %v3082, %v3082
  %v3091 = vpack.c.bf16 %v3083, %v3083
  %v3092 = vpack.c.bf16 %v3084, %v3084
  %v3093 = vpack.c.bf16 %v3085, %v3085
  %v3094 = vpack.c.bf16 %v3086, %v3086
  %v3095 = vpack.c.bf16 %v3087, %v3087
  %v3096 = vld [vmem:[%s9] sm:$0xf]
  %v3097 = vld [vmem:[%s9 + $0x4] sm:$0xf]
  %v3098 = vld [vmem:[%s9 + $0x8] sm:$0xf]
  %v3099 = vld [vmem:[%s9 + $0xc] sm:$0xf]
  %v3100 = vld [vmem:[%s9 + $0x10] sm:$0xf]
  %v3101 = vld [vmem:[%s9 + $0x14] sm:$0xf]
  %v3102 = vld [vmem:[%s9 + $0x18] sm:$0xf]
  %v3103 = vld [vmem:[%s9 + $0x1c] sm:$0xf]
  %v3104 = vld [vmem:[%s9 + $0x20] sm:$0xf]
  %v3105 = vld [vmem:[%s9 + $0x24] sm:$0xf]
  %v3106 = vld [vmem:[%s9 + $0x28] sm:$0xf]
  %v3107 = vld [vmem:[%s9 + $0x2c] sm:$0xf]
  %v3108 = vld [vmem:[%s9 + $0x30] sm:$0xf]
  %v3109 = vld [vmem:[%s9 + $0x34] sm:$0xf]
  %v3110 = vld [vmem:[%s9 + $0x38] sm:$0xf]
  %v3111 = vld [vmem:[%s9 + $0x3c] sm:$0xf]
  %v3112 = vld [vmem:[%s9 + $0x40] sm:$0xf]
  %v3113 = vld [vmem:[%s9 + $0x44] sm:$0xf]
  %v3114 = vld [vmem:[%s9 + $0x48] sm:$0xf]
  %v3115 = vld [vmem:[%s9 + $0x4c] sm:$0xf]
  %v3116 = vld [vmem:[%s9 + $0x50] sm:$0xf]
  %v3117 = vld [vmem:[%s9 + $0x54] sm:$0xf]
  %v3118 = vld [vmem:[%s9 + $0x58] sm:$0xf]
  %v3119 = vld [vmem:[%s9 + $0x5c] sm:$0xf]
  %v3120 = vld [vmem:[%s9 + $0x60] sm:$0xf]
  %v3121 = vld [vmem:[%s9 + $0x64] sm:$0xf]
  %v3122 = vld [vmem:[%s9 + $0x68] sm:$0xf]
  %v3123 = vld [vmem:[%s9 + $0x6c] sm:$0xf]
  %v3124 = vld [vmem:[%s9 + $0x70] sm:$0xf]
  %v3125 = vld [vmem:[%s9 + $0x74] sm:$0xf]
  %v3126 = vld [vmem:[%s9 + $0x78] sm:$0xf]
  %v3127 = vld [vmem:[%s9 + $0x7c] sm:$0xf]
  %v3128 = vld [vmem:[%s9 + $0x80] sm:$0xf]
  %v3129 = vld [vmem:[%s9 + $0x84] sm:$0xf]
  %v3130 = vld [vmem:[%s9 + $0x88] sm:$0xf]
  %v3131 = vld [vmem:[%s9 + $0x8c] sm:$0xf]
  %v3132 = vld [vmem:[%s9 + $0x90] sm:$0xf]
  %v3133 = vld [vmem:[%s9 + $0x94] sm:$0xf]
  %v3134 = vld [vmem:[%s9 + $0x98] sm:$0xf]
  %v3135 = vld [vmem:[%s9 + $0x9c] sm:$0xf]
  %v3136 = vld [vmem:[%s9 + $0xa0] sm:$0xf]
  %v3137 = vld [vmem:[%s9 + $0xa4] sm:$0xf]
  %v3138 = vld [vmem:[%s9 + $0xa8] sm:$0xf]
  %v3139 = vld [vmem:[%s9 + $0xac] sm:$0xf]
  %v3140 = vld [vmem:[%s9 + $0xb0] sm:$0xf]
  %v3141 = vld [vmem:[%s9 + $0xb4] sm:$0xf]
  %v3142 = vld [vmem:[%s9 + $0xb8] sm:$0xf]
  %v3143 = vld [vmem:[%s9 + $0xbc] sm:$0xf]
  %v3144 = vld [vmem:[%s9 + $0xc0] sm:$0xf]
  %v3145 = vld [vmem:[%s9 + $0xc4] sm:$0xf]
  %v3146 = vld [vmem:[%s9 + $0xc8] sm:$0xf]
  %v3147 = vld [vmem:[%s9 + $0xcc] sm:$0xf]
  %v3148 = vld [vmem:[%s9 + $0xd0] sm:$0xf]
  %v3149 = vld [vmem:[%s9 + $0xd4] sm:$0xf]
  %v3150 = vld [vmem:[%s9 + $0xd8] sm:$0xf]
  %v3151 = vld [vmem:[%s9 + $0xdc] sm:$0xf]
  %v3152 = vld [vmem:[%s9 + $0xe0] sm:$0xf]
  %v3153 = vld [vmem:[%s9 + $0xe4] sm:$0xf]
  %v3154 = vld [vmem:[%s9 + $0xe8] sm:$0xf]
  %v3155 = vld [vmem:[%s9 + $0xec] sm:$0xf]
  %v3156 = vld [vmem:[%s9 + $0xf0] sm:$0xf]
  %v3157 = vld [vmem:[%s9 + $0xf4] sm:$0xf]
  %v3158 = vld [vmem:[%s9 + $0xf8] sm:$0xf]
  %v3159 = vld [vmem:[%s9 + $0xfc] sm:$0xf]
  %v3160 = vld [vmem:[%s9 + $0x100] sm:$0xf]
  %v3161 = vld [vmem:[%s9 + $0x104] sm:$0xf]
  %v3162 = vld [vmem:[%s9 + $0x108] sm:$0xf]
  %v3163 = vld [vmem:[%s9 + $0x10c] sm:$0xf]
  %v3164 = vld [vmem:[%s9 + $0x110] sm:$0xf]
  %v3165 = vld [vmem:[%s9 + $0x114] sm:$0xf]
  %v3166 = vld [vmem:[%s9 + $0x118] sm:$0xf]
  %v3167 = vld [vmem:[%s9 + $0x11c] sm:$0xf]
  %v3168 = vld [vmem:[%s9 + $0x120] sm:$0xf]
  %v3169 = vld [vmem:[%s9 + $0x124] sm:$0xf]
  %v3170 = vld [vmem:[%s9 + $0x128] sm:$0xf]
  %v3171 = vld [vmem:[%s9 + $0x12c] sm:$0xf]
  %v3172 = vld [vmem:[%s9 + $0x130] sm:$0xf]
  %v3173 = vld [vmem:[%s9 + $0x134] sm:$0xf]
  %v3174 = vld [vmem:[%s9 + $0x138] sm:$0xf]
  %v3175 = vld [vmem:[%s9 + $0x13c] sm:$0xf]
  %v3176 = vld [vmem:[%s9 + $0x140] sm:$0xf]
  %v3177 = vld [vmem:[%s9 + $0x144] sm:$0xf]
  %v3178 = vld [vmem:[%s9 + $0x148] sm:$0xf]
  %v3179 = vld [vmem:[%s9 + $0x14c] sm:$0xf]
  %v3180 = vld [vmem:[%s9 + $0x150] sm:$0xf]
  %v3181 = vld [vmem:[%s9 + $0x154] sm:$0xf]
  %v3182 = vld [vmem:[%s9 + $0x158] sm:$0xf]
  %v3183 = vld [vmem:[%s9 + $0x15c] sm:$0xf]
  %v3184 = vld [vmem:[%s9 + $0x160] sm:$0xf]
  %v3185 = vld [vmem:[%s9 + $0x164] sm:$0xf]
  %v3186 = vld [vmem:[%s9 + $0x168] sm:$0xf]
  %v3187 = vld [vmem:[%s9 + $0x16c] sm:$0xf]
  %v3188 = vld [vmem:[%s9 + $0x170] sm:$0xf]
  %v3189 = vld [vmem:[%s9 + $0x174] sm:$0xf]
  %v3190 = vld [vmem:[%s9 + $0x178] sm:$0xf]
  %v3191 = vld [vmem:[%s9 + $0x17c] sm:$0xf]
  %v3192 = vld [vmem:[%s9 + $0x180] sm:$0xf]
  %v3193 = vld [vmem:[%s9 + $0x184] sm:$0xf]
  %v3194 = vld [vmem:[%s9 + $0x188] sm:$0xf]
  %v3195 = vld [vmem:[%s9 + $0x18c] sm:$0xf]
  %v3196 = vld [vmem:[%s9 + $0x190] sm:$0xf]
  %v3197 = vld [vmem:[%s9 + $0x194] sm:$0xf]
  %v3198 = vld [vmem:[%s9 + $0x198] sm:$0xf]
  %v3199 = vld [vmem:[%s9 + $0x19c] sm:$0xf]
  %v3200 = vld [vmem:[%s9 + $0x1a0] sm:$0xf]
  %v3201 = vld [vmem:[%s9 + $0x1a4] sm:$0xf]
  %v3202 = vld [vmem:[%s9 + $0x1a8] sm:$0xf]
  %v3203 = vld [vmem:[%s9 + $0x1ac] sm:$0xf]
  %v3204 = vld [vmem:[%s9 + $0x1b0] sm:$0xf]
  %v3205 = vld [vmem:[%s9 + $0x1b4] sm:$0xf]
  %v3206 = vld [vmem:[%s9 + $0x1b8] sm:$0xf]
  %v3207 = vld [vmem:[%s9 + $0x1bc] sm:$0xf]
  %v3208 = vld [vmem:[%s9 + $0x1c0] sm:$0xf]
  %v3209 = vld [vmem:[%s9 + $0x1c4] sm:$0xf]
  %v3210 = vld [vmem:[%s9 + $0x1c8] sm:$0xf]
  %v3211 = vld [vmem:[%s9 + $0x1cc] sm:$0xf]
  %v3212 = vld [vmem:[%s9 + $0x1d0] sm:$0xf]
  %v3213 = vld [vmem:[%s9 + $0x1d4] sm:$0xf]
  %v3214 = vld [vmem:[%s9 + $0x1d8] sm:$0xf]
  %v3215 = vld [vmem:[%s9 + $0x1dc] sm:$0xf]
  %v3216 = vld [vmem:[%s9 + $0x1e0] sm:$0xf]
  %v3217 = vld [vmem:[%s9 + $0x1e4] sm:$0xf]
  %v3218 = vld [vmem:[%s9 + $0x1e8] sm:$0xf]
  %v3219 = vld [vmem:[%s9 + $0x1ec] sm:$0xf]
  %v3220 = vld [vmem:[%s9 + $0x1f0] sm:$0xf]
  %v3221 = vld [vmem:[%s9 + $0x1f4] sm:$0xf]
  %v3222 = vld [vmem:[%s9 + $0x1f8] sm:$0xf]
  %v3223 = vld [vmem:[%s9 + $0x1fc] sm:$0xf]
  %v3224 = vld [vmem:[%s10] sm:$0x1]
  %v3226 = vlaneseq
  %v3227 = vshrl.u32 %v3226, 7
  %v3228 = vsub.s32 0, %v3227
  %v3229 = vrot.slane %v3224, %v3228
  %v3359 = vunpack.c.l.b16 %v3096
  %v3360 = vunpack.c.l.b16 %v3097
  %v3361 = vunpack.c.l.b16 %v3098
  %v3362 = vunpack.c.l.b16 %v3099
  %v3363 = vunpack.c.l.b16 %v3100
  %v3364 = vunpack.c.l.b16 %v3101
  %v3365 = vunpack.c.l.b16 %v3102
  %v3366 = vunpack.c.l.b16 %v3103
  %v3367 = vunpack.c.l.b16 %v3104
  %v3368 = vunpack.c.l.b16 %v3105
  %v3369 = vunpack.c.l.b16 %v3106
  %v3370 = vunpack.c.l.b16 %v3107
  %v3371 = vunpack.c.l.b16 %v3108
  %v3372 = vunpack.c.l.b16 %v3109
  %v3373 = vunpack.c.l.b16 %v3110
  %v3374 = vunpack.c.l.b16 %v3111
  %v3375 = vunpack.c.l.b16 %v3112
  %v3376 = vunpack.c.l.b16 %v3113
  %v3377 = vunpack.c.l.b16 %v3114
  %v3378 = vunpack.c.l.b16 %v3115
  %v3379 = vunpack.c.l.b16 %v3116
  %v3380 = vunpack.c.l.b16 %v3117
  %v3381 = vunpack.c.l.b16 %v3118
  %v3382 = vunpack.c.l.b16 %v3119
  %v3383 = vunpack.c.l.b16 %v3120
  %v3384 = vunpack.c.l.b16 %v3121
  %v3385 = vunpack.c.l.b16 %v3122
  %v3386 = vunpack.c.l.b16 %v3123
  %v3387 = vunpack.c.l.b16 %v3124
  %v3388 = vunpack.c.l.b16 %v3125
  %v3389 = vunpack.c.l.b16 %v3126
  %v3390 = vunpack.c.l.b16 %v3127
  %v3391 = vunpack.c.l.b16 %v3128
  %v3392 = vunpack.c.l.b16 %v3129
  %v3393 = vunpack.c.l.b16 %v3130
  %v3394 = vunpack.c.l.b16 %v3131
  %v3395 = vunpack.c.l.b16 %v3132
  %v3396 = vunpack.c.l.b16 %v3133
  %v3397 = vunpack.c.l.b16 %v3134
  %v3398 = vunpack.c.l.b16 %v3135
  %v3399 = vunpack.c.l.b16 %v3136
  %v3400 = vunpack.c.l.b16 %v3137
  %v3401 = vunpack.c.l.b16 %v3138
  %v3402 = vunpack.c.l.b16 %v3139
  %v3403 = vunpack.c.l.b16 %v3140
  %v3404 = vunpack.c.l.b16 %v3141
  %v3405 = vunpack.c.l.b16 %v3142
  %v3406 = vunpack.c.l.b16 %v3143
  %v3407 = vunpack.c.l.b16 %v3144
  %v3408 = vunpack.c.l.b16 %v3145
  %v3409 = vunpack.c.l.b16 %v3146
  %v3410 = vunpack.c.l.b16 %v3147
  %v3411 = vunpack.c.l.b16 %v3148
  %v3412 = vunpack.c.l.b16 %v3149
  %v3413 = vunpack.c.l.b16 %v3150
  %v3414 = vunpack.c.l.b16 %v3151
  %v3415 = vunpack.c.l.b16 %v3152
  %v3416 = vunpack.c.l.b16 %v3153
  %v3417 = vunpack.c.l.b16 %v3154
  %v3418 = vunpack.c.l.b16 %v3155
  %v3419 = vunpack.c.l.b16 %v3156
  %v3420 = vunpack.c.l.b16 %v3157
  %v3421 = vunpack.c.l.b16 %v3158
  %v3422 = vunpack.c.l.b16 %v3159
  %v3423 = vunpack.c.l.b16 %v3160
  %v3424 = vunpack.c.l.b16 %v3161
  %v3425 = vunpack.c.l.b16 %v3162
  %v3426 = vunpack.c.l.b16 %v3163
  %v3427 = vunpack.c.l.b16 %v3164
  %v3428 = vunpack.c.l.b16 %v3165
  %v3429 = vunpack.c.l.b16 %v3166
  %v3430 = vunpack.c.l.b16 %v3167
  %v3431 = vunpack.c.l.b16 %v3168
  %v3432 = vunpack.c.l.b16 %v3169
  %v3433 = vunpack.c.l.b16 %v3170
  %v3434 = vunpack.c.l.b16 %v3171
  %v3435 = vunpack.c.l.b16 %v3172
  %v3436 = vunpack.c.l.b16 %v3173
  %v3437 = vunpack.c.l.b16 %v3174
  %v3438 = vunpack.c.l.b16 %v3175
  %v3439 = vunpack.c.l.b16 %v3176
  %v3440 = vunpack.c.l.b16 %v3177
  %v3441 = vunpack.c.l.b16 %v3178
  %v3442 = vunpack.c.l.b16 %v3179
  %v3443 = vunpack.c.l.b16 %v3180
  %v3444 = vunpack.c.l.b16 %v3181
  %v3445 = vunpack.c.l.b16 %v3182
  %v3446 = vunpack.c.l.b16 %v3183
  %v3447 = vunpack.c.l.b16 %v3184
  %v3448 = vunpack.c.l.b16 %v3185
  %v3449 = vunpack.c.l.b16 %v3186
  %v3450 = vunpack.c.l.b16 %v3187
  %v3451 = vunpack.c.l.b16 %v3188
  %v3452 = vunpack.c.l.b16 %v3189
  %v3453 = vunpack.c.l.b16 %v3190
  %v3454 = vunpack.c.l.b16 %v3191
  %v3455 = vunpack.c.l.b16 %v3192
  %v3456 = vunpack.c.l.b16 %v3193
  %v3457 = vunpack.c.l.b16 %v3194
  %v3458 = vunpack.c.l.b16 %v3195
  %v3459 = vunpack.c.l.b16 %v3196
  %v3460 = vunpack.c.l.b16 %v3197
  %v3461 = vunpack.c.l.b16 %v3198
  %v3462 = vunpack.c.l.b16 %v3199
  %v3463 = vunpack.c.l.b16 %v3200
  %v3464 = vunpack.c.l.b16 %v3201
  %v3465 = vunpack.c.l.b16 %v3202
  %v3466 = vunpack.c.l.b16 %v3203
  %v3467 = vunpack.c.l.b16 %v3204
  %v3468 = vunpack.c.l.b16 %v3205
  %v3469 = vunpack.c.l.b16 %v3206
  %v3470 = vunpack.c.l.b16 %v3207
  %v3471 = vunpack.c.l.b16 %v3208
  %v3472 = vunpack.c.l.b16 %v3209
  %v3473 = vunpack.c.l.b16 %v3210
  %v3474 = vunpack.c.l.b16 %v3211
  %v3475 = vunpack.c.l.b16 %v3212
  %v3476 = vunpack.c.l.b16 %v3213
  %v3477 = vunpack.c.l.b16 %v3214
  %v3478 = vunpack.c.l.b16 %v3215
  %v3479 = vunpack.c.l.b16 %v3216
  %v3480 = vunpack.c.l.b16 %v3217
  %v3481 = vunpack.c.l.b16 %v3218
  %v3482 = vunpack.c.l.b16 %v3219
  %v3483 = vunpack.c.l.b16 %v3220
  %v3484 = vunpack.c.l.b16 %v3221
  %v3485 = vunpack.c.l.b16 %v3222
  %v3486 = vunpack.c.l.b16 %v3223
  %v3487 = vpack.c.b16 %v3360, %v3359
  %v3488 = vpack.c.b16 %v3362, %v3361
  %v3489 = vpack.c.b16 %v3364, %v3363
  %v3490 = vpack.c.b16 %v3366, %v3365
  %v3491 = vpack.c.b16 %v3368, %v3367
  %v3492 = vpack.c.b16 %v3370, %v3369
  %v3493 = vpack.c.b16 %v3372, %v3371
  %v3494 = vpack.c.b16 %v3374, %v3373
  %v3495 = vpack.c.b16 %v3376, %v3375
  %v3496 = vpack.c.b16 %v3378, %v3377
  %v3497 = vpack.c.b16 %v3380, %v3379
  %v3498 = vpack.c.b16 %v3382, %v3381
  %v3499 = vpack.c.b16 %v3384, %v3383
  %v3500 = vpack.c.b16 %v3386, %v3385
  %v3501 = vpack.c.b16 %v3388, %v3387
  %v3502 = vpack.c.b16 %v3390, %v3389
  %v3503 = vpack.c.b16 %v3392, %v3391
  %v3504 = vpack.c.b16 %v3394, %v3393
  %v3505 = vpack.c.b16 %v3396, %v3395
  %v3506 = vpack.c.b16 %v3398, %v3397
  %v3507 = vpack.c.b16 %v3400, %v3399
  %v3508 = vpack.c.b16 %v3402, %v3401
  %v3509 = vpack.c.b16 %v3404, %v3403
  %v3510 = vpack.c.b16 %v3406, %v3405
  %v3511 = vpack.c.b16 %v3408, %v3407
  %v3512 = vpack.c.b16 %v3410, %v3409
  %v3513 = vpack.c.b16 %v3412, %v3411
  %v3514 = vpack.c.b16 %v3414, %v3413
  %v3515 = vpack.c.b16 %v3416, %v3415
  %v3516 = vpack.c.b16 %v3418, %v3417
  %v3517 = vpack.c.b16 %v3420, %v3419
  %v3518 = vpack.c.b16 %v3422, %v3421
  %v3519 = vpack.c.b16 %v3424, %v3423
  %v3520 = vpack.c.b16 %v3426, %v3425
  %v3521 = vpack.c.b16 %v3428, %v3427
  %v3522 = vpack.c.b16 %v3430, %v3429
  %v3523 = vpack.c.b16 %v3432, %v3431
  %v3524 = vpack.c.b16 %v3434, %v3433
  %v3525 = vpack.c.b16 %v3436, %v3435
  %v3526 = vpack.c.b16 %v3438, %v3437
  %v3527 = vpack.c.b16 %v3440, %v3439
  %v3528 = vpack.c.b16 %v3442, %v3441
  %v3529 = vpack.c.b16 %v3444, %v3443
  %v3530 = vpack.c.b16 %v3446, %v3445
  %v3531 = vpack.c.b16 %v3448, %v3447
  %v3532 = vpack.c.b16 %v3450, %v3449
  %v3533 = vpack.c.b16 %v3452, %v3451
  %v3534 = vpack.c.b16 %v3454, %v3453
  %v3535 = vpack.c.b16 %v3456, %v3455
  %v3536 = vpack.c.b16 %v3458, %v3457
  %v3537 = vpack.c.b16 %v3460, %v3459
  %v3538 = vpack.c.b16 %v3462, %v3461
  %v3539 = vpack.c.b16 %v3464, %v3463
  %v3540 = vpack.c.b16 %v3466, %v3465
  %v3541 = vpack.c.b16 %v3468, %v3467
  %v3542 = vpack.c.b16 %v3470, %v3469
  %v3543 = vpack.c.b16 %v3472, %v3471
  %v3544 = vpack.c.b16 %v3474, %v3473
  %v3545 = vpack.c.b16 %v3476, %v3475
  %v3546 = vpack.c.b16 %v3478, %v3477
  %v3547 = vpack.c.b16 %v3480, %v3479
  %v3548 = vpack.c.b16 %v3482, %v3481
  %v3549 = vpack.c.b16 %v3484, %v3483
  %v3550 = vpack.c.b16 %v3486, %v3485
  %3615 = vmatprep.subr.bf16.mxu0 0
  %3616 = vmatpush1.bf16.msra.mxu0 %v3494
  %3617 = vmatprep.subr.bf16.mxu0 0
  %3618 = vmatpush1.bf16.msra.mxu0 %v3493
  %3619 = vmatprep.subr.bf16.mxu0 0
  %3620 = vmatpush1.bf16.msra.mxu0 %v3492
  %3621 = vmatprep.subr.bf16.mxu0 0
  %3622 = vmatpush1.bf16.msra.mxu0 %v3491
  %3623 = vmatprep.subr.bf16.mxu0 0
  %3624 = vmatpush1.bf16.msra.mxu0 %v3490
  %3625 = vmatprep.subr.bf16.mxu0 0
  %3626 = vmatpush1.bf16.msra.mxu0 %v3489
  %3627 = vmatprep.subr.bf16.mxu0 0
  %3628 = vmatpush1.bf16.msra.mxu0 %v3488
  %3629 = vmatprep.subr.bf16.mxu0 0
  %3630 = vmatpush1.bf16.msra.mxu0 %v3487
  %3631 = vmatprep.subr.bf16.mxu0 0
  %3632 = vmatpush2.bf16.msra.mxu0 %v3502
  %3633 = vmatprep.subr.bf16.mxu0 0
  %3634 = vmatpush2.bf16.msra.mxu0 %v3501
  %3635 = vmatprep.subr.bf16.mxu0 0
  %3636 = vmatpush2.bf16.msra.mxu0 %v3500
  %3637 = vmatprep.subr.bf16.mxu0 0
  %3638 = vmatpush2.bf16.msra.mxu0 %v3499
  %3639 = vmatprep.subr.bf16.mxu0 0
  %3640 = vmatpush2.bf16.msra.mxu0 %v3498
  %3641 = vmatprep.subr.bf16.mxu0 0
  %3642 = vmatpush2.bf16.msra.mxu0 %v3497
  %3643 = vmatprep.subr.bf16.mxu0 0
  %3644 = vmatpush2.bf16.msra.mxu0 %v3496
  %3645 = vmatprep.subr.bf16.mxu0 0
  %3646 = vmatpush2.bf16.msra.mxu0 %v3495
  %3647 = vmatprep.mubr.bf16.mxu0 %v3089
  %3648 = vmatmul.mubr.bf16.gmra.mxu0 %v3088
  %v3649 = vpop.f32.mrf.mxu0
  %v3650 = vadd.f32 %v3229, %v3649
  %v3651 = vpop.f32.mrf.mxu0
  %v3652 = vpop.f32.mrf.mxu0
  %v3653 = vpop.f32.mrf.mxu0
  %3654 = vdwg.mxu0
  %3655 = vmatprep.subr.bf16.mxu0 0
  %3656 = vmatpush1.bf16.msra.mxu0 %v3510
  %3657 = vmatprep.subr.bf16.mxu0 0
  %3658 = vmatpush1.bf16.msra.mxu0 %v3509
  %3659 = vmatprep.subr.bf16.mxu0 0
  %3660 = vmatpush1.bf16.msra.mxu0 %v3508
  %3661 = vmatprep.subr.bf16.mxu0 0
  %3662 = vmatpush1.bf16.msra.mxu0 %v3507
  %3663 = vmatprep.subr.bf16.mxu0 0
  %3664 = vmatpush1.bf16.msra.mxu0 %v3506
  %3665 = vmatprep.subr.bf16.mxu0 0
  %3666 = vmatpush1.bf16.msra.mxu0 %v3505
  %3667 = vmatprep.subr.bf16.mxu0 0
  %3668 = vmatpush1.bf16.msra.mxu0 %v3504
  %3669 = vmatprep.subr.bf16.mxu0 0
  %3670 = vmatpush1.bf16.msra.mxu0 %v3503
  %3671 = vmatprep.subr.bf16.mxu0 0
  %3672 = vmatpush2.bf16.msra.mxu0 %v3518
  %3673 = vmatprep.subr.bf16.mxu0 0
  %3674 = vmatpush2.bf16.msra.mxu0 %v3517
  %3675 = vmatprep.subr.bf16.mxu0 0
  %3676 = vmatpush2.bf16.msra.mxu0 %v3516
  %3677 = vmatprep.subr.bf16.mxu0 0
  %3678 = vmatpush2.bf16.msra.mxu0 %v3515
  %3679 = vmatprep.subr.bf16.mxu0 0
  %3680 = vmatpush2.bf16.msra.mxu0 %v3514
  %3681 = vmatprep.subr.bf16.mxu0 0
  %3682 = vmatpush2.bf16.msra.mxu0 %v3513
  %3683 = vmatprep.subr.bf16.mxu0 0
  %3684 = vmatpush2.bf16.msra.mxu0 %v3512
  %3685 = vmatprep.subr.bf16.mxu0 0
  %3686 = vmatpush2.bf16.msra.mxu0 %v3511
  %3687 = vmatprep.mubr.bf16.mxu0 %v3091
  %3688 = vmatmul.mubr.bf16.gmra.mxu0 %v3090
  %v3689 = vpop.f32.mrf.mxu0
  %v3690 = vadd.f32 %v3650, %v3689
  %v3691 = vpop.f32.mrf.mxu0
  %v3692 = vpop.f32.mrf.mxu0
  %v3693 = vpop.f32.mrf.mxu0
  %3694 = vdwg.mxu0
  %3695 = vmatprep.subr.bf16.mxu0 0
  %3696 = vmatpush1.bf16.msra.mxu0 %v3526
  %3697 = vmatprep.subr.bf16.mxu0 0
  %3698 = vmatpush1.bf16.msra.mxu0 %v3525
  %3699 = vmatprep.subr.bf16.mxu0 0
  %3700 = vmatpush1.bf16.msra.mxu0 %v3524
  %3701 = vmatprep.subr.bf16.mxu0 0
  %3702 = vmatpush1.bf16.msra.mxu0 %v3523
  %3703 = vmatprep.subr.bf16.mxu0 0
  %3704 = vmatpush1.bf16.msra.mxu0 %v3522
  %3705 = vmatprep.subr.bf16.mxu0 0
  %3706 = vmatpush1.bf16.msra.mxu0 %v3521
  %3707 = vmatprep.subr.bf16.mxu0 0
  %3708 = vmatpush1.bf16.msra.mxu0 %v3520
  %3709 = vmatprep.subr.bf16.mxu0 0
  %3710 = vmatpush1.bf16.msra.mxu0 %v3519
  %3711 = vmatprep.subr.bf16.mxu0 0
  %3712 = vmatpush2.bf16.msra.mxu0 %v3534
  %3713 = vmatprep.subr.bf16.mxu0 0
  %3714 = vmatpush2.bf16.msra.mxu0 %v3533
  %3715 = vmatprep.subr.bf16.mxu0 0
  %3716 = vmatpush2.bf16.msra.mxu0 %v3532
  %3717 = vmatprep.subr.bf16.mxu0 0
  %3718 = vmatpush2.bf16.msra.mxu0 %v3531
  %3719 = vmatprep.subr.bf16.mxu0 0
  %3720 = vmatpush2.bf16.msra.mxu0 %v3530
  %3721 = vmatprep.subr.bf16.mxu0 0
  %3722 = vmatpush2.bf16.msra.mxu0 %v3529
  %3723 = vmatprep.subr.bf16.mxu0 0
  %3724 = vmatpush2.bf16.msra.mxu0 %v3528
  %3725 = vmatprep.subr.bf16.mxu0 0
  %3726 = vmatpush2.bf16.msra.mxu0 %v3527
  %3727 = vmatprep.mubr.bf16.mxu0 %v3093
  %3728 = vmatmul.mubr.bf16.gmra.mxu0 %v3092
  %v3729 = vpop.f32.mrf.mxu0
  %v3730 = vadd.f32 %v3690, %v3729
  %v3731 = vpop.f32.mrf.mxu0
  %v3732 = vpop.f32.mrf.mxu0
  %v3733 = vpop.f32.mrf.mxu0
  %3734 = vdwg.mxu0
  %3735 = vmatprep.subr.bf16.mxu0 0
  %3736 = vmatpush1.bf16.msra.mxu0 %v3542
  %3737 = vmatprep.subr.bf16.mxu0 0
  %3738 = vmatpush1.bf16.msra.mxu0 %v3541
  %3739 = vmatprep.subr.bf16.mxu0 0
  %3740 = vmatpush1.bf16.msra.mxu0 %v3540
  %3741 = vmatprep.subr.bf16.mxu0 0
  %3742 = vmatpush1.bf16.msra.mxu0 %v3539
  %3743 = vmatprep.subr.bf16.mxu0 0
  %3744 = vmatpush1.bf16.msra.mxu0 %v3538
  %3745 = vmatprep.subr.bf16.mxu0 0
  %3746 = vmatpush1.bf16.msra.mxu0 %v3537
  %3747 = vmatprep.subr.bf16.mxu0 0
  %3748 = vmatpush1.bf16.msra.mxu0 %v3536
  %3749 = vmatprep.subr.bf16.mxu0 0
  %3750 = vmatpush1.bf16.msra.mxu0 %v3535
  %3751 = vmatprep.subr.bf16.mxu0 0
  %3752 = vmatpush2.bf16.msra.mxu0 %v3550
  %3753 = vmatprep.subr.bf16.mxu0 0
  %3754 = vmatpush2.bf16.msra.mxu0 %v3549
  %3755 = vmatprep.subr.bf16.mxu0 0
  %3756 = vmatpush2.bf16.msra.mxu0 %v3548
  %3757 = vmatprep.subr.bf16.mxu0 0
  %3758 = vmatpush2.bf16.msra.mxu0 %v3547
  %3759 = vmatprep.subr.bf16.mxu0 0
  %3760 = vmatpush2.bf16.msra.mxu0 %v3546
  %3761 = vmatprep.subr.bf16.mxu0 0
  %3762 = vmatpush2.bf16.msra.mxu0 %v3545
  %3763 = vmatprep.subr.bf16.mxu0 0
  %3764 = vmatpush2.bf16.msra.mxu0 %v3544
  %3765 = vmatprep.subr.bf16.mxu0 0
  %3766 = vmatpush2.bf16.msra.mxu0 %v3543
  %3767 = vmatprep.mubr.bf16.mxu0 %v3095
  %3768 = vmatmul.mubr.bf16.gmra.mxu0 %v3094
  %v3769 = vpop.f32.mrf.mxu0
  %v3770 = vadd.f32 %v3730, %v3769
  %v3771 = vpop.f32.mrf.mxu0
  %v3772 = vpop.f32.mrf.mxu0
  %v3773 = vpop.f32.mrf.mxu0
  %3774 = vdwg.mxu0
  %3775 = vst [vmem:[%s11] sm:$0x3] %v3770
  // Predicated region
  $region46: #{agent_forward.1} parent=0 // pred_check
    _
  $region47: #{agent_forward.1} parent=0 // pred_check_branch
    %3777 = sbr.rel (0) target = $region49
  $region48: #{agent_forward.1} parent=0 // pred_region
    _
  $region49: #{agent_forward.1} parent=0 // pred_fallthru
    _
  // Predicated region
  $region50: #{agent_forward.1} parent=0 // pred_check
    _
  $region51: #{agent_forward.1} parent=0 // pred_check_branch
    %3779 = sbr.rel (0) target = $region53
  $region52: #{agent_forward.1} parent=0 // pred_region
    _
  $region53: #{agent_forward.1} parent=0 // pred_fallthru
    _

</llo_original>
